<compile_context>
chip_gen: v6e
topology: v6e:2x2x1
jax: 0.10.0
libtpu: 0.0.40
codegen_flags: <defaults>
</compile_context>

<pallas_src>
import jax
import jax.numpy as jnp
from jax import lax
from jax.experimental import pallas as pl
from jax.experimental.pallas import tpu as pltpu

EPS = 1e-5

# 3x3 tap offsets, row-major (kh, kw) order -> matches weight reshape below.
_OFFSETS = [(dh, dw) for dh in (-1, 0, 1) for dw in (-1, 0, 1)]


def _round8(c):
    return -(-c // 8) * 8


def _make_kernel(H, W, Cin, Cout, Cs1, Cs2, has_proj):
    HW = H * W
    PADF = HW + 2 * (W + 1)   # flat activation with W+1 zeros on each end
    Cmax = max(Cin, Cout)

    def body(x_ref, m_ref, w1_ref, s1_ref, b1_ref, w2_ref, s2_ref, b2_ref, *rest):
        if has_proj:
            wsc_ref, ssc_ref, bsc_ref, out_ref, pad_ref, p_ref = rest
        else:
            out_ref, pad_ref, p_ref = rest

        # Precomputed (1, H*W) column-border masks (hoisted to the wrapper).
        m_left = m_ref[0:1, :]
        m_right = m_ref[1:2, :]

        # Zero the two (W+1)-wide halo pads of the shared staging buffer.
        # (Not hoisted behind program_id==0: unsafe on megacore with the
        # "parallel" batch axis -- see header note.  Interior writes never
        # touch these columns, so once per step for all Cmax rows suffices.)
        zpad = jnp.zeros((Cmax, W + 1), jnp.float32)
        pad_ref[:, 0:W + 1] = zpad
        pad_ref[:, W + 1 + HW:PADF] = zpad

        def conv3x3(C, Cs, w_ref):
            # pad_ref[0:C, W+1:W+1+HW] holds the activation.  Write the 9
            # shifted taps (border-masked in f32, then cast) as bf16 row slabs
            # at stride Cs into the shared patch buffer and run ONE K = 9*Cs
            # MXU contraction with f32 accumulation.
            for k, (dh, dw) in enumerate(_OFFSETS):
                start = (W + 1) + dh * W + dw
                blk = pad_ref[0:C, start:start + HW]              # (C, HW) f32
                if dw == -1:
                    blk = blk * m_left                            # exact zeros
                elif dw == 1:
                    blk = blk * m_right
                if Cs > C:  # channel count not 8-aligned: explicit zero rows
                    blk = jnp.concatenate(
                        [blk, jnp.zeros((Cs - C, HW), jnp.float32)], axis=0)
                p_ref[k * Cs:(k + 1) * Cs, :] = blk.astype(jnp.bfloat16)
            return jnp.dot(w_ref[...], p_ref[0:9 * Cs, :],
                           preferred_element_type=jnp.float32)    # (Cout, HW)

        # ---- conv1 (3x3) -> BN1 -> ReLU ----
        pad_ref[0:Cin, W + 1:W + 1 + HW] = x_ref[...]
        y1 = jnp.maximum(conv3x3(Cin, Cs1, w1_ref) * s1_ref[...] + b1_ref[...],
                         0.0)

        # ---- conv2 (3x3) -> BN2 (reuses the same staging + patch scratch) ----
        pad_ref[0:Cout, W + 1:W + 1 + HW] = y1
        y2 = conv3x3(Cout, Cs2, w2_ref) * s2_ref[...] + b2_ref[...]

        # ---- shortcut + residual add + ReLU ----
        if has_proj:
            sc = jnp.dot(wsc_ref[...], x_ref[...].astype(jnp.bfloat16),
                         preferred_element_type=jnp.float32)      # 1x1 conv
            sc = sc * ssc_ref[...] + bsc_ref[...]                 # folded BNsc
        else:
            sc = x_ref[...]   # identity: re-read the VMEM block at its use
        out_ref[...] = jnp.maximum(y2 + sc, 0.0).astype(out_ref.dtype)

    return body


def _fold_bn(bn):
    gamma, beta, mean, var = bn
    scale = gamma / jnp.sqrt(var + EPS)
    bias = beta - mean * scale
    return (scale.reshape(-1, 1).astype(jnp.float32),
            bias.reshape(-1, 1).astype(jnp.float32))


def _conv_lhs(w, cs):
    # HWIO (3,3,Ci,Co) -> (Co, 9*cs) bf16, tap-major / channel-minor columns;
    # input channels zero-padded to the sublane-aligned patch stride cs.
    kh, kw, ci, co = w.shape
    wp = jnp.pad(w, ((0, 0), (0, 0), (0, cs - ci), (0, 0)))
    return jnp.transpose(wp, (3, 0, 1, 2)).reshape(co, kh * kw * cs).astype(
        jnp.bfloat16)


def _border_masks(H, W):
    j = jnp.arange(W)
    m_left = (j >= 1).astype(jnp.float32)        # reading column j-1 is valid
    m_right = (j <= W - 2).astype(jnp.float32)   # reading column j+1 is valid
    return jnp.stack([jnp.tile(m_left, H), jnp.tile(m_right, H)], axis=0)


def standard_res_block(x_nchw, params, stride=1):
    """x_nchw: (N, Cin, H, W) float32 (PyTorch layout). BN in inference mode."""
    assert stride == 1  # TODO(synk): stride > 1 not supported by this kernel
    N, Cin, H, W = x_nchw.shape
    Cout = params['w1'].shape[-1]
    HW = H * W
    PADF = HW + 2 * (W + 1)
    Cs1, Cs2 = _round8(Cin), _round8(Cout)
    Cmax = max(Cin, Cout)
    Csmax = max(Cs1, Cs2)

    w1 = _conv_lhs(params['w1'], Cs1)     # (Cout, 9*Cs1) bf16
    w2 = _conv_lhs(params['w2'], Cs2)     # (Cout, 9*Cs2) bf16
    s1, b1 = _fold_bn(params['bn1'])      # (Cout, 1) f32
    s2, b2 = _fold_bn(params['bn2'])

    has_proj = 'wsc' in params
    if not has_proj:
        assert Cin == Cout

    x_flat = x_nchw.reshape(N, Cin, HW).astype(jnp.float32)
    masks = _border_masks(H, W)           # (2, HW) f32

    args = [x_flat, masks, w1, s1, b1, w2, s2, b2]
    const_shapes = [(2, HW), (Cout, 9 * Cs1), (Cout, 1), (Cout, 1),
                    (Cout, 9 * Cs2), (Cout, 1), (Cout, 1)]
    if has_proj:
        wsc = params['wsc'].reshape(Cin, Cout).T.astype(jnp.bfloat16)  # (Cout, Cin)
        ssc, bsc = _fold_bn(params['bnsc'])
        args += [wsc, ssc, bsc]
        const_shapes += [(Cout, Cin), (Cout, 1), (Cout, 1)]

    kernel = _make_kernel(H, W, Cin, Cout, Cs1, Cs2, has_proj)

    scratch_shapes = [
        pltpu.VMEM((Cmax, PADF), jnp.float32),       # shared row-padded staging
        pltpu.VMEM((9 * Csmax, HW), jnp.bfloat16),   # shared bf16 im2col patches
    ]

    # Explicit scoped-VMEM budget: double-buffered blocks + constants + scratch,
    # with 2x headroom for compiler temporaries.
    block_bytes = 2 * (Cin * HW * 4 + Cout * HW * 4)
    const_bytes = 2 * sum(int(a.size) * a.dtype.itemsize for a in args[1:])
    scratch_bytes = Cmax * PADF * 4 + 9 * Csmax * HW * 2
    vmem_limit = int(min(max(32 << 20,
                             2 * (block_bytes + const_bytes + scratch_bytes)
                             + (4 << 20)),
                         100 << 20))

    flops = 2 * N * HW * Cout * (9 * Cin + 9 * Cout + (Cin if has_proj else 0))
    bytes_accessed = int(x_flat.size * 4 + N * Cout * HW * 4
                         + sum(int(a.size) * a.dtype.itemsize for a in args[1:]))

    rep = lambda n: (0, 0)

    def build_specs(single_buffer_consts):
        if single_buffer_consts:
            # Grid-invariant inputs: no need for double buffering.
            const = lambda s: pl.BlockSpec(s, rep, pipeline_mode=pl.Buffered(1))
        else:
            const = lambda s: pl.BlockSpec(s, rep)
        in_specs = [pl.BlockSpec((pl.Squeezed(), Cin, HW), lambda n: (n, 0, 0))]
        in_specs += [const(s) for s in const_shapes]
        out_specs = pl.BlockSpec((pl.Squeezed(), Cout, HW), lambda n: (n, 0, 0))
        return in_specs, out_specs

    def run(single_buffer_consts):
        in_specs, out_specs = build_specs(single_buffer_consts)
        out = pl.pallas_call(
            kernel,
            out_shape=jax.ShapeDtypeStruct((N, Cout, HW), jnp.float32),
            grid_spec=pltpu.PrefetchScalarGridSpec(
                num_scalar_prefetch=0,
                grid=(N,),
                in_specs=in_specs,
                out_specs=out_specs,
                scratch_shapes=scratch_shapes,
            ),
            compiler_params=pltpu.CompilerParams(
                dimension_semantics=("parallel",),
                vmem_limit_bytes=vmem_limit),
            cost_estimate=pl.CostEstimate(flops=flops, transcendentals=0,
                                          bytes_accessed=bytes_accessed),
        )(*args)
        return jax.block_until_ready(out)

    try:
        out = run(True)      # single-buffer the grid-invariant inputs
    except Exception:
        # pipeline_mode=pl.Buffered(1) not supported by this jax build:
        # fall back to default double-buffering (correctness unchanged).
        out = run(False)

    return out.reshape(N, Cout, H, W)


def reference(x_nchw, params):
    """Pure-JAX reference of the PyTorch forward (BN in inference mode), NCHW."""
    def conv(x, w):  # w is HWIO
        return lax.conv_general_dilated(x, w, (1, 1), 'SAME',
                                        dimension_numbers=('NCHW', 'HWIO', 'NCHW'))

    def bn(x, p):
        gamma, beta, mean, var = (t.reshape(1, -1, 1, 1) for t in p)
        return (x - mean) / jnp.sqrt(var + EPS) * gamma + beta

    identity = x_nchw
    if 'wsc' in params:
        identity = bn(conv(x_nchw, params['wsc']), params['bnsc'])
    out = jnp.maximum(bn(conv(x_nchw, params['w1']), params['bn1']), 0.0)
    out = bn(conv(out, params['w2']), params['bn2'])
    return jnp.maximum(out + identity, 0.0)


if __name__ == "__main__":
    key = jax.random.PRNGKey(0)
    N, H, W = 2, 16, 16

    def bn_params(k, c):
        k1, k2, k3, k4 = jax.random.split(k, 4)
        gamma = 1.0 + 0.1 * jax.random.normal(k1, (c,), jnp.float32)
        beta = 0.1 * jax.random.normal(k2, (c,), jnp.float32)
        mean = 0.1 * jax.random.normal(k3, (c,), jnp.float32)
        var = jnp.abs(1.0 + 0.1 * jax.random.normal(k4, (c,), jnp.float32))
        return gamma, beta, mean, var

    ks = jax.random.split(key, 12)

    # Case 1: Cin != Cout -> projection shortcut (conv1x1 + BN) path.
    Cin, Cout = 4, 8
    x = jax.random.normal(ks[0], (N, Cin, H, W), jnp.float32)   # NCHW, like PyTorch
    params = {
        'w1': 0.1 * jax.random.normal(ks[1], (3, 3, Cin, Cout), jnp.float32),
        'bn1': bn_params(ks[2], Cout),
        'w2': 0.1 * jax.random.normal(ks[3], (3, 3, Cout, Cout), jnp.float32),
        'bn2': bn_params(ks[4], Cout),
        'wsc': 0.1 * jax.random.normal(ks[5], (1, 1, Cin, Cout), jnp.float32),
        'bnsc': bn_params(ks[6], Cout),
    }
    out = jax.block_until_ready(standard_res_block(x, params, stride=1))
    ref = reference(x, params)
    err = float(jnp.max(jnp.abs(out - ref)))
    # bf16 MXU operands -> looser tolerance than a pure-f32 kernel.
    assert jnp.allclose(out, ref, atol=8e-2, rtol=5e-2), f"proj path max abs err = {err}"

    # Case 2: Cin == Cout -> identity shortcut (no 1x1 matmul in the kernel).
    C = 8
    x2 = jax.random.normal(ks[7], (N, C, H, W), jnp.float32)
    params2 = {
        'w1': 0.1 * jax.random.normal(ks[8], (3, 3, C, C), jnp.float32),
        'bn1': bn_params(ks[9], C),
        'w2': 0.1 * jax.random.normal(ks[10], (3, 3, C, C), jnp.float32),
        'bn2': bn_params(ks[11], C),
    }
    out2 = jax.block_until_ready(standard_res_block(x2, params2, stride=1))
    ref2 = reference(x2, params2)
    err2 = float(jnp.max(jnp.abs(out2 - ref2)))
    assert jnp.allclose(out2, ref2, atol=8e-2, rtol=5e-2), f"identity path max abs err = {err2}"

    print("KERNEL_OK")
</pallas_src>

<mosaic_0001>
module attributes {stable_mosaic.version = 11 : i64} {
  func.func @body(%arg0: i32, %arg1: memref<1x4x256xf32, #tpu.memory_space<vmem>>, %arg2: memref<2x256xf32, #tpu.memory_space<vmem>>, %arg3: memref<8x72xbf16, #tpu.memory_space<vmem>>, %arg4: memref<8x1xf32, #tpu.memory_space<vmem>>, %arg5: memref<8x1xf32, #tpu.memory_space<vmem>>, %arg6: memref<8x72xbf16, #tpu.memory_space<vmem>>, %arg7: memref<8x1xf32, #tpu.memory_space<vmem>>, %arg8: memref<8x1xf32, #tpu.memory_space<vmem>>, %arg9: memref<8x4xbf16, #tpu.memory_space<vmem>>, %arg10: memref<8x1xf32, #tpu.memory_space<vmem>>, %arg11: memref<8x1xf32, #tpu.memory_space<vmem>>, %arg12: memref<1x8x256xf32, #tpu.memory_space<vmem>>, %arg13: memref<8x290xf32, #tpu.memory_space<vmem>>, %arg14: memref<72x256xbf16, #tpu.memory_space<vmem>>) attributes {dimension_semantics = [#tpu.dimension_semantics<parallel>], iteration_bounds = array<i64: 2>, scalar_prefetch = 0 : i64, scratch_operands = 2 : i64, tpu.core_type = #tpu.core_type<tc>, window_params = [{transform_indices = @transform_0, window_bounds = array<i64: 1, 4, 256>}, {pipeline_mode = #tpu.pipeline_mode<synchronous>, transform_indices = @transform_1, window_bounds = array<i64: 2, 256>}, {pipeline_mode = #tpu.pipeline_mode<synchronous>, transform_indices = @transform_2, window_bounds = array<i64: 8, 72>}, {pipeline_mode = #tpu.pipeline_mode<synchronous>, transform_indices = @transform_3, window_bounds = array<i64: 8, 1>}, {pipeline_mode = #tpu.pipeline_mode<synchronous>, transform_indices = @transform_4, window_bounds = array<i64: 8, 1>}, {pipeline_mode = #tpu.pipeline_mode<synchronous>, transform_indices = @transform_5, window_bounds = array<i64: 8, 72>}, {pipeline_mode = #tpu.pipeline_mode<synchronous>, transform_indices = @transform_6, window_bounds = array<i64: 8, 1>}, {pipeline_mode = #tpu.pipeline_mode<synchronous>, transform_indices = @transform_7, window_bounds = array<i64: 8, 1>}, {pipeline_mode = #tpu.pipeline_mode<synchronous>, transform_indices = @transform_8, window_bounds = array<i64: 8, 4>}, {pipeline_mode = #tpu.pipeline_mode<synchronous>, transform_indices = @transform_9, window_bounds = array<i64: 8, 1>}, {pipeline_mode = #tpu.pipeline_mode<synchronous>, transform_indices = @transform_10, window_bounds = array<i64: 8, 1>}, {transform_indices = @transform_11, window_bounds = array<i64: 1, 8, 256>}]} {
    %c0 = arith.constant 0 : index
    %c0_0 = arith.constant 0 : index
    %0 = vector.load %arg2[%c0, %c0_0] : memref<2x256xf32, #tpu.memory_space<vmem>>, vector<1x256xf32>
    %c1 = arith.constant 1 : index
    %c0_1 = arith.constant 0 : index
    %1 = vector.load %arg2[%c1, %c0_1] : memref<2x256xf32, #tpu.memory_space<vmem>>, vector<1x256xf32>
    %cst = arith.constant 0.000000e+00 : f32
    %2 = vector.broadcast %cst : f32 to vector<8x17xf32>
    %c0_2 = arith.constant 0 : index
    %c0_3 = arith.constant 0 : index
    %3 = vector.load %arg13[%c0_2, %c0_3] : memref<8x290xf32, #tpu.memory_space<vmem>>, vector<8x17xf32>
    tpu.vector_store %arg13[%c0_2, %c0_3], %2 {strides = array<i32>} : memref<8x290xf32, #tpu.memory_space<vmem>>, vector<8x17xf32>,
    %c0_4 = arith.constant 0 : index
    %c273 = arith.constant 273 : index
    %4 = vector.load %arg13[%c0_4, %c273] : memref<8x290xf32, #tpu.memory_space<vmem>>, vector<8x17xf32>
    tpu.vector_store %arg13[%c0_4, %c273], %2 {strides = array<i32>} : memref<8x290xf32, #tpu.memory_space<vmem>>, vector<8x17xf32>,
    %c0_5 = arith.constant 0 : index
    %c0_6 = arith.constant 0 : index
    %c0_7 = arith.constant 0 : index
    %5 = vector.load %arg1[%c0_5, %c0_6, %c0_7] : memref<1x4x256xf32, #tpu.memory_space<vmem>>, vector<1x4x256xf32>
    %6 = vector.shape_cast %5 : vector<1x4x256xf32> to vector<4x256xf32>
    %c0_8 = arith.constant 0 : index
    %c17 = arith.constant 17 : index
    %7 = vector.load %arg13[%c0_8, %c17] : memref<8x290xf32, #tpu.memory_space<vmem>>, vector<4x256xf32>
    tpu.vector_store %arg13[%c0_8, %c17], %6 {strides = array<i32>} : memref<8x290xf32, #tpu.memory_space<vmem>>, vector<4x256xf32>,
    %c0_9 = arith.constant 0 : index
    %c0_10 = arith.constant 0 : index
    %8 = vector.load %arg13[%c0_9, %c0_10] : memref<8x290xf32, #tpu.memory_space<vmem>>, vector<4x256xf32>
    %9 = vector.broadcast %0 : vector<1x256xf32> to vector<4x256xf32>
    %10 = arith.mulf %8, %9 : vector<4x256xf32>
    %cst_11 = arith.constant 0.000000e+00 : f32
    %11 = vector.broadcast %cst_11 : f32 to vector<4x256xf32>
    %12 = tpu.concatenate %10, %11 in 0 : vector<4x256xf32>, vector<4x256xf32> -> vector<8x256xf32>
    %13 = arith.truncf %12 : vector<8x256xf32> to vector<8x256xbf16>
    %c0_12 = arith.constant 0 : index
    %c0_13 = arith.constant 0 : index
    %14 = vector.load %arg14[%c0_12, %c0_13] : memref<72x256xbf16, #tpu.memory_space<vmem>>, vector<8x256xbf16>
    tpu.vector_store %arg14[%c0_12, %c0_13], %13 {strides = array<i32>} : memref<72x256xbf16, #tpu.memory_space<vmem>>, vector<8x256xbf16>,
    %c0_14 = arith.constant 0 : index
    %c1_15 = arith.constant 1 : index
    %15 = vector.load %arg13[%c0_14, %c1_15] : memref<8x290xf32, #tpu.memory_space<vmem>>, vector<4x256xf32>
    %cst_16 = arith.constant 0.000000e+00 : f32
    %16 = vector.broadcast %cst_16 : f32 to vector<4x256xf32>
    %17 = tpu.concatenate %15, %16 in 0 : vector<4x256xf32>, vector<4x256xf32> -> vector<8x256xf32>
    %18 = arith.truncf %17 : vector<8x256xf32> to vector<8x256xbf16>
    %c8 = arith.constant 8 : index
    %c0_17 = arith.constant 0 : index
    %19 = vector.load %arg14[%c8, %c0_17] : memref<72x256xbf16, #tpu.memory_space<vmem>>, vector<8x256xbf16>
    tpu.vector_store %arg14[%c8, %c0_17], %18 {strides = array<i32>} : memref<72x256xbf16, #tpu.memory_space<vmem>>, vector<8x256xbf16>,
    %c0_18 = arith.constant 0 : index
    %c2 = arith.constant 2 : index
    %20 = vector.load %arg13[%c0_18, %c2] : memref<8x290xf32, #tpu.memory_space<vmem>>, vector<4x256xf32>
    %21 = vector.broadcast %1 : vector<1x256xf32> to vector<4x256xf32>
    %22 = arith.mulf %20, %21 : vector<4x256xf32>
    %cst_19 = arith.constant 0.000000e+00 : f32
    %23 = vector.broadcast %cst_19 : f32 to vector<4x256xf32>
    %24 = tpu.concatenate %22, %23 in 0 : vector<4x256xf32>, vector<4x256xf32> -> vector<8x256xf32>
    %25 = arith.truncf %24 : vector<8x256xf32> to vector<8x256xbf16>
    %c16 = arith.constant 16 : index
    %c0_20 = arith.constant 0 : index
    %26 = vector.load %arg14[%c16, %c0_20] : memref<72x256xbf16, #tpu.memory_space<vmem>>, vector<8x256xbf16>
    tpu.vector_store %arg14[%c16, %c0_20], %25 {strides = array<i32>} : memref<72x256xbf16, #tpu.memory_space<vmem>>, vector<8x256xbf16>,
    %c0_21 = arith.constant 0 : index
    %c16_22 = arith.constant 16 : index
    %27 = vector.load %arg13[%c0_21, %c16_22] : memref<8x290xf32, #tpu.memory_space<vmem>>, vector<4x256xf32>
    %28 = vector.broadcast %0 : vector<1x256xf32> to vector<4x256xf32>
    %29 = arith.mulf %27, %28 : vector<4x256xf32>
    %cst_23 = arith.constant 0.000000e+00 : f32
    %30 = vector.broadcast %cst_23 : f32 to vector<4x256xf32>
    %31 = tpu.concatenate %29, %30 in 0 : vector<4x256xf32>, vector<4x256xf32> -> vector<8x256xf32>
    %32 = arith.truncf %31 : vector<8x256xf32> to vector<8x256xbf16>
    %c24 = arith.constant 24 : index
    %c0_24 = arith.constant 0 : index
    %33 = vector.load %arg14[%c24, %c0_24] : memref<72x256xbf16, #tpu.memory_space<vmem>>, vector<8x256xbf16>
    tpu.vector_store %arg14[%c24, %c0_24], %32 {strides = array<i32>} : memref<72x256xbf16, #tpu.memory_space<vmem>>, vector<8x256xbf16>,
    %c0_25 = arith.constant 0 : index
    %c17_26 = arith.constant 17 : index
    %34 = vector.load %arg13[%c0_25, %c17_26] : memref<8x290xf32, #tpu.memory_space<vmem>>, vector<4x256xf32>
    %cst_27 = arith.constant 0.000000e+00 : f32
    %35 = vector.broadcast %cst_27 : f32 to vector<4x256xf32>
    %36 = tpu.concatenate %34, %35 in 0 : vector<4x256xf32>, vector<4x256xf32> -> vector<8x256xf32>
    %37 = arith.truncf %36 : vector<8x256xf32> to vector<8x256xbf16>
    %c32 = arith.constant 32 : index
    %c0_28 = arith.constant 0 : index
    %38 = vector.load %arg14[%c32, %c0_28] : memref<72x256xbf16, #tpu.memory_space<vmem>>, vector<8x256xbf16>
    tpu.vector_store %arg14[%c32, %c0_28], %37 {strides = array<i32>} : memref<72x256xbf16, #tpu.memory_space<vmem>>, vector<8x256xbf16>,
    %c0_29 = arith.constant 0 : index
    %c18 = arith.constant 18 : index
    %39 = vector.load %arg13[%c0_29, %c18] : memref<8x290xf32, #tpu.memory_space<vmem>>, vector<4x256xf32>
    %40 = vector.broadcast %1 : vector<1x256xf32> to vector<4x256xf32>
    %41 = arith.mulf %39, %40 : vector<4x256xf32>
    %cst_30 = arith.constant 0.000000e+00 : f32
    %42 = vector.broadcast %cst_30 : f32 to vector<4x256xf32>
    %43 = tpu.concatenate %41, %42 in 0 : vector<4x256xf32>, vector<4x256xf32> -> vector<8x256xf32>
    %44 = arith.truncf %43 : vector<8x256xf32> to vector<8x256xbf16>
    %c40 = arith.constant 40 : index
    %c0_31 = arith.constant 0 : index
    %45 = vector.load %arg14[%c40, %c0_31] : memref<72x256xbf16, #tpu.memory_space<vmem>>, vector<8x256xbf16>
    tpu.vector_store %arg14[%c40, %c0_31], %44 {strides = array<i32>} : memref<72x256xbf16, #tpu.memory_space<vmem>>, vector<8x256xbf16>,
    %c0_32 = arith.constant 0 : index
    %c32_33 = arith.constant 32 : index
    %46 = vector.load %arg13[%c0_32, %c32_33] : memref<8x290xf32, #tpu.memory_space<vmem>>, vector<4x256xf32>
    %47 = vector.broadcast %0 : vector<1x256xf32> to vector<4x256xf32>
    %48 = arith.mulf %46, %47 : vector<4x256xf32>
    %cst_34 = arith.constant 0.000000e+00 : f32
    %49 = vector.broadcast %cst_34 : f32 to vector<4x256xf32>
    %50 = tpu.concatenate %48, %49 in 0 : vector<4x256xf32>, vector<4x256xf32> -> vector<8x256xf32>
    %51 = arith.truncf %50 : vector<8x256xf32> to vector<8x256xbf16>
    %c48 = arith.constant 48 : index
    %c0_35 = arith.constant 0 : index
    %52 = vector.load %arg14[%c48, %c0_35] : memref<72x256xbf16, #tpu.memory_space<vmem>>, vector<8x256xbf16>
    tpu.vector_store %arg14[%c48, %c0_35], %51 {strides = array<i32>} : memref<72x256xbf16, #tpu.memory_space<vmem>>, vector<8x256xbf16>,
    %c0_36 = arith.constant 0 : index
    %c33 = arith.constant 33 : index
    %53 = vector.load %arg13[%c0_36, %c33] : memref<8x290xf32, #tpu.memory_space<vmem>>, vector<4x256xf32>
    %cst_37 = arith.constant 0.000000e+00 : f32
    %54 = vector.broadcast %cst_37 : f32 to vector<4x256xf32>
    %55 = tpu.concatenate %53, %54 in 0 : vector<4x256xf32>, vector<4x256xf32> -> vector<8x256xf32>
    %56 = arith.truncf %55 : vector<8x256xf32> to vector<8x256xbf16>
    %c56 = arith.constant 56 : index
    %c0_38 = arith.constant 0 : index
    %57 = vector.load %arg14[%c56, %c0_38] : memref<72x256xbf16, #tpu.memory_space<vmem>>, vector<8x256xbf16>
    tpu.vector_store %arg14[%c56, %c0_38], %56 {strides = array<i32>} : memref<72x256xbf16, #tpu.memory_space<vmem>>, vector<8x256xbf16>,
    %c0_39 = arith.constant 0 : index
    %c34 = arith.constant 34 : index
    %58 = vector.load %arg13[%c0_39, %c34] : memref<8x290xf32, #tpu.memory_space<vmem>>, vector<4x256xf32>
    %59 = vector.broadcast %1 : vector<1x256xf32> to vector<4x256xf32>
    %60 = arith.mulf %58, %59 : vector<4x256xf32>
    %cst_40 = arith.constant 0.000000e+00 : f32
    %61 = vector.broadcast %cst_40 : f32 to vector<4x256xf32>
    %62 = tpu.concatenate %60, %61 in 0 : vector<4x256xf32>, vector<4x256xf32> -> vector<8x256xf32>
    %63 = arith.truncf %62 : vector<8x256xf32> to vector<8x256xbf16>
    %c64 = arith.constant 64 : index
    %c0_41 = arith.constant 0 : index
    %64 = vector.load %arg14[%c64, %c0_41] : memref<72x256xbf16, #tpu.memory_space<vmem>>, vector<8x256xbf16>
    tpu.vector_store %arg14[%c64, %c0_41], %63 {strides = array<i32>} : memref<72x256xbf16, #tpu.memory_space<vmem>>, vector<8x256xbf16>,
    %c0_42 = arith.constant 0 : index
    %c0_43 = arith.constant 0 : index
    %65 = vector.load %arg3[%c0_42, %c0_43] : memref<8x72xbf16, #tpu.memory_space<vmem>>, vector<8x72xbf16>
    %c0_44 = arith.constant 0 : index
    %c0_45 = arith.constant 0 : index
    %66 = vector.load %arg14[%c0_44, %c0_45] : memref<72x256xbf16, #tpu.memory_space<vmem>>, vector<72x256xbf16>
    %cst_46 = arith.constant dense<0.000000e+00> : vector<8x256xf32>
    %67 = tpu.matmul %65, %66, %cst_46 {dimension_numbers = #tpu.dot_dimension_numbers<[1], [0], [0], [1], [0, 0, 1, 1], [], []>} : vector<8x72xbf16>, vector<72x256xbf16>, vector<8x256xf32> -> vector<8x256xf32>
    %c0_47 = arith.constant 0 : index
    %c0_48 = arith.constant 0 : index
    %68 = vector.load %arg4[%c0_47, %c0_48] : memref<8x1xf32, #tpu.memory_space<vmem>>, vector<8x1xf32>
    %69 = vector.broadcast %68 : vector<8x1xf32> to vector<8x256xf32>
    %70 = arith.mulf %67, %69 : vector<8x256xf32>
    %c0_49 = arith.constant 0 : index
    %c0_50 = arith.constant 0 : index
    %71 = vector.load %arg5[%c0_49, %c0_50] : memref<8x1xf32, #tpu.memory_space<vmem>>, vector<8x1xf32>
    %72 = vector.broadcast %71 : vector<8x1xf32> to vector<8x256xf32>
    %73 = arith.addf %70, %72 : vector<8x256xf32>
    %cst_51 = arith.constant 0.000000e+00 : f32
    %74 = vector.broadcast %cst_51 : f32 to vector<8x256xf32>
    %75 = arith.maximumf %73, %74 : vector<8x256xf32>
    %c0_52 = arith.constant 0 : index
    %c17_53 = arith.constant 17 : index
    %76 = vector.load %arg13[%c0_52, %c17_53] : memref<8x290xf32, #tpu.memory_space<vmem>>, vector<8x256xf32>
    tpu.vector_store %arg13[%c0_52, %c17_53], %75 {strides = array<i32>} : memref<8x290xf32, #tpu.memory_space<vmem>>, vector<8x256xf32>,
    %c0_54 = arith.constant 0 : index
    %c0_55 = arith.constant 0 : index
    %77 = vector.load %arg13[%c0_54, %c0_55] : memref<8x290xf32, #tpu.memory_space<vmem>>, vector<8x256xf32>
    %78 = vector.broadcast %0 : vector<1x256xf32> to vector<8x256xf32>
    %79 = arith.mulf %77, %78 : vector<8x256xf32>
    %80 = arith.truncf %79 : vector<8x256xf32> to vector<8x256xbf16>
    %c0_56 = arith.constant 0 : index
    %c0_57 = arith.constant 0 : index
    %81 = vector.load %arg14[%c0_56, %c0_57] : memref<72x256xbf16, #tpu.memory_space<vmem>>, vector<8x256xbf16>
    tpu.vector_store %arg14[%c0_56, %c0_57], %80 {strides = array<i32>} : memref<72x256xbf16, #tpu.memory_space<vmem>>, vector<8x256xbf16>,
    %c0_58 = arith.constant 0 : index
    %c1_59 = arith.constant 1 : index
    %82 = vector.load %arg13[%c0_58, %c1_59] : memref<8x290xf32, #tpu.memory_space<vmem>>, vector<8x256xf32>
    %83 = arith.truncf %82 : vector<8x256xf32> to vector<8x256xbf16>
    %c8_60 = arith.constant 8 : index
    %c0_61 = arith.constant 0 : index
    %84 = vector.load %arg14[%c8_60, %c0_61] : memref<72x256xbf16, #tpu.memory_space<vmem>>, vector<8x256xbf16>
    tpu.vector_store %arg14[%c8_60, %c0_61], %83 {strides = array<i32>} : memref<72x256xbf16, #tpu.memory_space<vmem>>, vector<8x256xbf16>,
    %c0_62 = arith.constant 0 : index
    %c2_63 = arith.constant 2 : index
    %85 = vector.load %arg13[%c0_62, %c2_63] : memref<8x290xf32, #tpu.memory_space<vmem>>, vector<8x256xf32>
    %86 = vector.broadcast %1 : vector<1x256xf32> to vector<8x256xf32>
    %87 = arith.mulf %85, %86 : vector<8x256xf32>
    %88 = arith.truncf %87 : vector<8x256xf32> to vector<8x256xbf16>
    %c16_64 = arith.constant 16 : index
    %c0_65 = arith.constant 0 : index
    %89 = vector.load %arg14[%c16_64, %c0_65] : memref<72x256xbf16, #tpu.memory_space<vmem>>, vector<8x256xbf16>
    tpu.vector_store %arg14[%c16_64, %c0_65], %88 {strides = array<i32>} : memref<72x256xbf16, #tpu.memory_space<vmem>>, vector<8x256xbf16>,
    %c0_66 = arith.constant 0 : index
    %c16_67 = arith.constant 16 : index
    %90 = vector.load %arg13[%c0_66, %c16_67] : memref<8x290xf32, #tpu.memory_space<vmem>>, vector<8x256xf32>
    %91 = vector.broadcast %0 : vector<1x256xf32> to vector<8x256xf32>
    %92 = arith.mulf %90, %91 : vector<8x256xf32>
    %93 = arith.truncf %92 : vector<8x256xf32> to vector<8x256xbf16>
    %c24_68 = arith.constant 24 : index
    %c0_69 = arith.constant 0 : index
    %94 = vector.load %arg14[%c24_68, %c0_69] : memref<72x256xbf16, #tpu.memory_space<vmem>>, vector<8x256xbf16>
    tpu.vector_store %arg14[%c24_68, %c0_69], %93 {strides = array<i32>} : memref<72x256xbf16, #tpu.memory_space<vmem>>, vector<8x256xbf16>,
    %c0_70 = arith.constant 0 : index
    %c17_71 = arith.constant 17 : index
    %95 = vector.load %arg13[%c0_70, %c17_71] : memref<8x290xf32, #tpu.memory_space<vmem>>, vector<8x256xf32>
    %96 = arith.truncf %95 : vector<8x256xf32> to vector<8x256xbf16>
    %c32_72 = arith.constant 32 : index
    %c0_73 = arith.constant 0 : index
    %97 = vector.load %arg14[%c32_72, %c0_73] : memref<72x256xbf16, #tpu.memory_space<vmem>>, vector<8x256xbf16>
    tpu.vector_store %arg14[%c32_72, %c0_73], %96 {strides = array<i32>} : memref<72x256xbf16, #tpu.memory_space<vmem>>, vector<8x256xbf16>,
    %c0_74 = arith.constant 0 : index
    %c18_75 = arith.constant 18 : index
    %98 = vector.load %arg13[%c0_74, %c18_75] : memref<8x290xf32, #tpu.memory_space<vmem>>, vector<8x256xf32>
    %99 = vector.broadcast %1 : vector<1x256xf32> to vector<8x256xf32>
    %100 = arith.mulf %98, %99 : vector<8x256xf32>
    %101 = arith.truncf %100 : vector<8x256xf32> to vector<8x256xbf16>
    %c40_76 = arith.constant 40 : index
    %c0_77 = arith.constant 0 : index
    %102 = vector.load %arg14[%c40_76, %c0_77] : memref<72x256xbf16, #tpu.memory_space<vmem>>, vector<8x256xbf16>
    tpu.vector_store %arg14[%c40_76, %c0_77], %101 {strides = array<i32>} : memref<72x256xbf16, #tpu.memory_space<vmem>>, vector<8x256xbf16>,
    %c0_78 = arith.constant 0 : index
    %c32_79 = arith.constant 32 : index
    %103 = vector.load %arg13[%c0_78, %c32_79] : memref<8x290xf32, #tpu.memory_space<vmem>>, vector<8x256xf32>
    %104 = vector.broadcast %0 : vector<1x256xf32> to vector<8x256xf32>
    %105 = arith.mulf %103, %104 : vector<8x256xf32>
    %106 = arith.truncf %105 : vector<8x256xf32> to vector<8x256xbf16>
    %c48_80 = arith.constant 48 : index
    %c0_81 = arith.constant 0 : index
    %107 = vector.load %arg14[%c48_80, %c0_81] : memref<72x256xbf16, #tpu.memory_space<vmem>>, vector<8x256xbf16>
    tpu.vector_store %arg14[%c48_80, %c0_81], %106 {strides = array<i32>} : memref<72x256xbf16, #tpu.memory_space<vmem>>, vector<8x256xbf16>,
    %c0_82 = arith.constant 0 : index
    %c33_83 = arith.constant 33 : index
    %108 = vector.load %arg13[%c0_82, %c33_83] : memref<8x290xf32, #tpu.memory_space<vmem>>, vector<8x256xf32>
    %109 = arith.truncf %108 : vector<8x256xf32> to vector<8x256xbf16>
    %c56_84 = arith.constant 56 : index
    %c0_85 = arith.constant 0 : index
    %110 = vector.load %arg14[%c56_84, %c0_85] : memref<72x256xbf16, #tpu.memory_space<vmem>>, vector<8x256xbf16>
    tpu.vector_store %arg14[%c56_84, %c0_85], %109 {strides = array<i32>} : memref<72x256xbf16, #tpu.memory_space<vmem>>, vector<8x256xbf16>,
    %c0_86 = arith.constant 0 : index
    %c34_87 = arith.constant 34 : index
    %111 = vector.load %arg13[%c0_86, %c34_87] : memref<8x290xf32, #tpu.memory_space<vmem>>, vector<8x256xf32>
    %112 = vector.broadcast %1 : vector<1x256xf32> to vector<8x256xf32>
    %113 = arith.mulf %111, %112 : vector<8x256xf32>
    %114 = arith.truncf %113 : vector<8x256xf32> to vector<8x256xbf16>
    %c64_88 = arith.constant 64 : index
    %c0_89 = arith.constant 0 : index
    %115 = vector.load %arg14[%c64_88, %c0_89] : memref<72x256xbf16, #tpu.memory_space<vmem>>, vector<8x256xbf16>
    tpu.vector_store %arg14[%c64_88, %c0_89], %114 {strides = array<i32>} : memref<72x256xbf16, #tpu.memory_space<vmem>>, vector<8x256xbf16>,
    %c0_90 = arith.constant 0 : index
    %c0_91 = arith.constant 0 : index
    %116 = vector.load %arg6[%c0_90, %c0_91] : memref<8x72xbf16, #tpu.memory_space<vmem>>, vector<8x72xbf16>
    %c0_92 = arith.constant 0 : index
    %c0_93 = arith.constant 0 : index
    %117 = vector.load %arg14[%c0_92, %c0_93] : memref<72x256xbf16, #tpu.memory_space<vmem>>, vector<72x256xbf16>
    %cst_94 = arith.constant dense<0.000000e+00> : vector<8x256xf32>
    %118 = tpu.matmul %116, %117, %cst_94 {dimension_numbers = #tpu.dot_dimension_numbers<[1], [0], [0], [1], [0, 0, 1, 1], [], []>} : vector<8x72xbf16>, vector<72x256xbf16>, vector<8x256xf32> -> vector<8x256xf32>
    %c0_95 = arith.constant 0 : index
    %c0_96 = arith.constant 0 : index
    %119 = vector.load %arg7[%c0_95, %c0_96] : memref<8x1xf32, #tpu.memory_space<vmem>>, vector<8x1xf32>
    %120 = vector.broadcast %119 : vector<8x1xf32> to vector<8x256xf32>
    %121 = arith.mulf %118, %120 : vector<8x256xf32>
    %c0_97 = arith.constant 0 : index
    %c0_98 = arith.constant 0 : index
    %122 = vector.load %arg8[%c0_97, %c0_98] : memref<8x1xf32, #tpu.memory_space<vmem>>, vector<8x1xf32>
    %123 = vector.broadcast %122 : vector<8x1xf32> to vector<8x256xf32>
    %124 = arith.addf %121, %123 : vector<8x256xf32>
    %c0_99 = arith.constant 0 : index
    %c0_100 = arith.constant 0 : index
    %125 = vector.load %arg9[%c0_99, %c0_100] : memref<8x4xbf16, #tpu.memory_space<vmem>>, vector<8x4xbf16>
    %c0_101 = arith.constant 0 : index
    %c0_102 = arith.constant 0 : index
    %c0_103 = arith.constant 0 : index
    %126 = vector.load %arg1[%c0_101, %c0_102, %c0_103] : memref<1x4x256xf32, #tpu.memory_space<vmem>>, vector<1x4x256xf32>
    %127 = vector.shape_cast %126 : vector<1x4x256xf32> to vector<4x256xf32>
    %128 = arith.truncf %127 : vector<4x256xf32> to vector<4x256xbf16>
    %cst_104 = arith.constant dense<0.000000e+00> : vector<8x256xf32>
    %129 = tpu.matmul %125, %128, %cst_104 {dimension_numbers = #tpu.dot_dimension_numbers<[1], [0], [0], [1], [0, 0, 1, 1], [], []>} : vector<8x4xbf16>, vector<4x256xbf16>, vector<8x256xf32> -> vector<8x256xf32>
    %c0_105 = arith.constant 0 : index
    %c0_106 = arith.constant 0 : index
    %130 = vector.load %arg10[%c0_105, %c0_106] : memref<8x1xf32, #tpu.memory_space<vmem>>, vector<8x1xf32>
    %131 = vector.broadcast %130 : vector<8x1xf32> to vector<8x256xf32>
    %132 = arith.mulf %129, %131 : vector<8x256xf32>
    %c0_107 = arith.constant 0 : index
    %c0_108 = arith.constant 0 : index
    %133 = vector.load %arg11[%c0_107, %c0_108] : memref<8x1xf32, #tpu.memory_space<vmem>>, vector<8x1xf32>
    %134 = vector.broadcast %133 : vector<8x1xf32> to vector<8x256xf32>
    %135 = arith.addf %132, %134 : vector<8x256xf32>
    %136 = arith.addf %124, %135 : vector<8x256xf32>
    %cst_109 = arith.constant 0.000000e+00 : f32
    %137 = vector.broadcast %cst_109 : f32 to vector<8x256xf32>
    %138 = arith.maximumf %136, %137 : vector<8x256xf32>
    %c0_110 = arith.constant 0 : index
    %c0_111 = arith.constant 0 : index
    %c0_112 = arith.constant 0 : index
    %139 = vector.load %arg12[%c0_110, %c0_111, %c0_112] : memref<1x8x256xf32, #tpu.memory_space<vmem>>, vector<1x8x256xf32>
    %140 = vector.shape_cast %139 : vector<1x8x256xf32> to vector<8x256xf32>
    %141 = vector.shape_cast %138 : vector<8x256xf32> to vector<1x8x256xf32>
    tpu.vector_store %arg12[%c0_110, %c0_111, %c0_112], %141 {strides = array<i32>} : memref<1x8x256xf32, #tpu.memory_space<vmem>>, vector<1x8x256xf32>,
    return
  }
  func.func @transform_0(%arg0: i32) -> (i32, i32, i32) {
    %c0_i32 = arith.constant 0 : i32
    %c0_i32_0 = arith.constant 0 : i32
    %c0_i32_1 = arith.constant 0 : i32
    return %arg0, %c0_i32, %c0_i32_0 : i32, i32, i32
  }
  func.func @transform_1(%arg0: i32) -> (i32, i32) {
    %c0_i32 = arith.constant 0 : i32
    %c0_i32_0 = arith.constant 0 : i32
    %c0_i32_1 = arith.constant 0 : i32
    return %c0_i32, %c0_i32_0 : i32, i32
  }
  func.func @transform_2(%arg0: i32) -> (i32, i32) {
    %c0_i32 = arith.constant 0 : i32
    %c0_i32_0 = arith.constant 0 : i32
    %c0_i32_1 = arith.constant 0 : i32
    return %c0_i32, %c0_i32_0 : i32, i32
  }
  func.func @transform_3(%arg0: i32) -> (i32, i32) {
    %c0_i32 = arith.constant 0 : i32
    %c0_i32_0 = arith.constant 0 : i32
    %c0_i32_1 = arith.constant 0 : i32
    return %c0_i32, %c0_i32_0 : i32, i32
  }
  func.func @transform_4(%arg0: i32) -> (i32, i32) {
    %c0_i32 = arith.constant 0 : i32
    %c0_i32_0 = arith.constant 0 : i32
    %c0_i32_1 = arith.constant 0 : i32
    return %c0_i32, %c0_i32_0 : i32, i32
  }
  func.func @transform_5(%arg0: i32) -> (i32, i32) {
    %c0_i32 = arith.constant 0 : i32
    %c0_i32_0 = arith.constant 0 : i32
    %c0_i32_1 = arith.constant 0 : i32
    return %c0_i32, %c0_i32_0 : i32, i32
  }
  func.func @transform_6(%arg0: i32) -> (i32, i32) {
    %c0_i32 = arith.constant 0 : i32
    %c0_i32_0 = arith.constant 0 : i32
    %c0_i32_1 = arith.constant 0 : i32
    return %c0_i32, %c0_i32_0 : i32, i32
  }
  func.func @transform_7(%arg0: i32) -> (i32, i32) {
    %c0_i32 = arith.constant 0 : i32
    %c0_i32_0 = arith.constant 0 : i32
    %c0_i32_1 = arith.constant 0 : i32
    return %c0_i32, %c0_i32_0 : i32, i32
  }
  func.func @transform_8(%arg0: i32) -> (i32, i32) {
    %c0_i32 = arith.constant 0 : i32
    %c0_i32_0 = arith.constant 0 : i32
    %c0_i32_1 = arith.constant 0 : i32
    return %c0_i32, %c0_i32_0 : i32, i32
  }
  func.func @transform_9(%arg0: i32) -> (i32, i32) {
    %c0_i32 = arith.constant 0 : i32
    %c0_i32_0 = arith.constant 0 : i32
    %c0_i32_1 = arith.constant 0 : i32
    return %c0_i32, %c0_i32_0 : i32, i32
  }
  func.func @transform_10(%arg0: i32) -> (i32, i32) {
    %c0_i32 = arith.constant 0 : i32
    %c0_i32_0 = arith.constant 0 : i32
    %c0_i32_1 = arith.constant 0 : i32
    return %c0_i32, %c0_i32_0 : i32, i32
  }
  func.func @transform_11(%arg0: i32) -> (i32, i32, i32) {
    %c0_i32 = arith.constant 0 : i32
    %c0_i32_0 = arith.constant 0 : i32
    %c0_i32_1 = arith.constant 0 : i32
    return %arg0, %c0_i32, %c0_i32_0 : i32, i32, i32
  }
}

module attributes {stable_mosaic.version = 11 : i64} {
  func.func @body(%arg0: i32, %arg1: memref<1x4x256xf32, #tpu.memory_space<vmem>>, %arg2: memref<2x256xf32, #tpu.memory_space<vmem>>, %arg3: memref<8x72xbf16, #tpu.memory_space<vmem>>, %arg4: memref<8x1xf32, #tpu.memory_space<vmem>>, %arg5: memref<8x1xf32, #tpu.memory_space<vmem>>, %arg6: memref<8x72xbf16, #tpu.memory_space<vmem>>, %arg7: memref<8x1xf32, #tpu.memory_space<vmem>>, %arg8: memref<8x1xf32, #tpu.memory_space<vmem>>, %arg9: memref<8x4xbf16, #tpu.memory_space<vmem>>, %arg10: memref<8x1xf32, #tpu.memory_space<vmem>>, %arg11: memref<8x1xf32, #tpu.memory_space<vmem>>, %arg12: memref<1x8x256xf32, #tpu.memory_space<vmem>>, %arg13: memref<8x290xf32, #tpu.memory_space<vmem>>, %arg14: memref<72x256xbf16, #tpu.memory_space<vmem>>) attributes {dimension_semantics = [#tpu.dimension_semantics<parallel>], iteration_bounds = array<i64: 2>, scalar_prefetch = 0 : i64, scratch_operands = 2 : i64, tpu.core_type = #tpu.core_type<tc>, window_params = [{transform_indices = @transform_0, window_bounds = array<i64: 1, 4, 256>}, {pipeline_mode = #tpu.pipeline_mode<synchronous>, transform_indices = @transform_1, window_bounds = array<i64: 2, 256>}, {pipeline_mode = #tpu.pipeline_mode<synchronous>, transform_indices = @transform_2, window_bounds = array<i64: 8, 72>}, {pipeline_mode = #tpu.pipeline_mode<synchronous>, transform_indices = @transform_3, window_bounds = array<i64: 8, 1>}, {pipeline_mode = #tpu.pipeline_mode<synchronous>, transform_indices = @transform_4, window_bounds = array<i64: 8, 1>}, {pipeline_mode = #tpu.pipeline_mode<synchronous>, transform_indices = @transform_5, window_bounds = array<i64: 8, 72>}, {pipeline_mode = #tpu.pipeline_mode<synchronous>, transform_indices = @transform_6, window_bounds = array<i64: 8, 1>}, {pipeline_mode = #tpu.pipeline_mode<synchronous>, transform_indices = @transform_7, window_bounds = array<i64: 8, 1>}, {pipeline_mode = #tpu.pipeline_mode<synchronous>, transform_indices = @transform_8, window_bounds = array<i64: 8, 4>}, {pipeline_mode = #tpu.pipeline_mode<synchronous>, transform_indices = @transform_9, window_bounds = array<i64: 8, 1>}, {pipeline_mode = #tpu.pipeline_mode<synchronous>, transform_indices = @transform_10, window_bounds = array<i64: 8, 1>}, {transform_indices = @transform_11, window_bounds = array<i64: 1, 8, 256>}]} {
    %c0 = arith.constant 0 : index
    %c0_0 = arith.constant 0 : index
    %0 = vector.load %arg2[%c0, %c0_0] : memref<2x256xf32, #tpu.memory_space<vmem>>, vector<1x256xf32>
    %c1 = arith.constant 1 : index
    %c0_1 = arith.constant 0 : index
    %1 = vector.load %arg2[%c1, %c0_1] : memref<2x256xf32, #tpu.memory_space<vmem>>, vector<1x256xf32>
    %cst = arith.constant 0.000000e+00 : f32
    %2 = vector.broadcast %cst : f32 to vector<8x17xf32>
    %c0_2 = arith.constant 0 : index
    %c0_3 = arith.constant 0 : index
    %3 = vector.load %arg13[%c0_2, %c0_3] : memref<8x290xf32, #tpu.memory_space<vmem>>, vector<8x17xf32>
    tpu.vector_store %arg13[%c0_2, %c0_3], %2 {strides = array<i32>} : memref<8x290xf32, #tpu.memory_space<vmem>>, vector<8x17xf32>,
    %c0_4 = arith.constant 0 : index
    %c273 = arith.constant 273 : index
    %4 = vector.load %arg13[%c0_4, %c273] : memref<8x290xf32, #tpu.memory_space<vmem>>, vector<8x17xf32>
    tpu.vector_store %arg13[%c0_4, %c273], %2 {strides = array<i32>} : memref<8x290xf32, #tpu.memory_space<vmem>>, vector<8x17xf32>,
    %c0_5 = arith.constant 0 : index
    %c0_6 = arith.constant 0 : index
    %c0_7 = arith.constant 0 : index
    %5 = vector.load %arg1[%c0_5, %c0_6, %c0_7] : memref<1x4x256xf32, #tpu.memory_space<vmem>>, vector<1x4x256xf32>
    %6 = vector.shape_cast %5 : vector<1x4x256xf32> to vector<4x256xf32>
    %c0_8 = arith.constant 0 : index
    %c17 = arith.constant 17 : index
    %7 = vector.load %arg13[%c0_8, %c17] : memref<8x290xf32, #tpu.memory_space<vmem>>, vector<4x256xf32>
    tpu.vector_store %arg13[%c0_8, %c17], %6 {strides = array<i32>} : memref<8x290xf32, #tpu.memory_space<vmem>>, vector<4x256xf32>,
    %c0_9 = arith.constant 0 : index
    %c0_10 = arith.constant 0 : index
    %8 = vector.load %arg13[%c0_9, %c0_10] : memref<8x290xf32, #tpu.memory_space<vmem>>, vector<4x256xf32>
    %9 = vector.broadcast %0 : vector<1x256xf32> to vector<4x256xf32>
    %10 = arith.mulf %8, %9 : vector<4x256xf32>
    %cst_11 = arith.constant 0.000000e+00 : f32
    %11 = vector.broadcast %cst_11 : f32 to vector<4x256xf32>
    %12 = tpu.concatenate %10, %11 in 0 : vector<4x256xf32>, vector<4x256xf32> -> vector<8x256xf32>
    %13 = arith.truncf %12 : vector<8x256xf32> to vector<8x256xbf16>
    %c0_12 = arith.constant 0 : index
    %c0_13 = arith.constant 0 : index
    %14 = vector.load %arg14[%c0_12, %c0_13] : memref<72x256xbf16, #tpu.memory_space<vmem>>, vector<8x256xbf16>
    tpu.vector_store %arg14[%c0_12, %c0_13], %13 {strides = array<i32>} : memref<72x256xbf16, #tpu.memory_space<vmem>>, vector<8x256xbf16>,
    %c0_14 = arith.constant 0 : index
    %c1_15 = arith.constant 1 : index
    %15 = vector.load %arg13[%c0_14, %c1_15] : memref<8x290xf32, #tpu.memory_space<vmem>>, vector<4x256xf32>
    %cst_16 = arith.constant 0.000000e+00 : f32
    %16 = vector.broadcast %cst_16 : f32 to vector<4x256xf32>
    %17 = tpu.concatenate %15, %16 in 0 : vector<4x256xf32>, vector<4x256xf32> -> vector<8x256xf32>
    %18 = arith.truncf %17 : vector<8x256xf32> to vector<8x256xbf16>
    %c8 = arith.constant 8 : index
    %c0_17 = arith.constant 0 : index
    %19 = vector.load %arg14[%c8, %c0_17] : memref<72x256xbf16, #tpu.memory_space<vmem>>, vector<8x256xbf16>
    tpu.vector_store %arg14[%c8, %c0_17], %18 {strides = array<i32>} : memref<72x256xbf16, #tpu.memory_space<vmem>>, vector<8x256xbf16>,
    %c0_18 = arith.constant 0 : index
    %c2 = arith.constant 2 : index
    %20 = vector.load %arg13[%c0_18, %c2] : memref<8x290xf32, #tpu.memory_space<vmem>>, vector<4x256xf32>
    %21 = vector.broadcast %1 : vector<1x256xf32> to vector<4x256xf32>
    %22 = arith.mulf %20, %21 : vector<4x256xf32>
    %cst_19 = arith.constant 0.000000e+00 : f32
    %23 = vector.broadcast %cst_19 : f32 to vector<4x256xf32>
    %24 = tpu.concatenate %22, %23 in 0 : vector<4x256xf32>, vector<4x256xf32> -> vector<8x256xf32>
    %25 = arith.truncf %24 : vector<8x256xf32> to vector<8x256xbf16>
    %c16 = arith.constant 16 : index
    %c0_20 = arith.constant 0 : index
    %26 = vector.load %arg14[%c16, %c0_20] : memref<72x256xbf16, #tpu.memory_space<vmem>>, vector<8x256xbf16>
    tpu.vector_store %arg14[%c16, %c0_20], %25 {strides = array<i32>} : memref<72x256xbf16, #tpu.memory_space<vmem>>, vector<8x256xbf16>,
    %c0_21 = arith.constant 0 : index
    %c16_22 = arith.constant 16 : index
    %27 = vector.load %arg13[%c0_21, %c16_22] : memref<8x290xf32, #tpu.memory_space<vmem>>, vector<4x256xf32>
    %28 = vector.broadcast %0 : vector<1x256xf32> to vector<4x256xf32>
    %29 = arith.mulf %27, %28 : vector<4x256xf32>
    %cst_23 = arith.constant 0.000000e+00 : f32
    %30 = vector.broadcast %cst_23 : f32 to vector<4x256xf32>
    %31 = tpu.concatenate %29, %30 in 0 : vector<4x256xf32>, vector<4x256xf32> -> vector<8x256xf32>
    %32 = arith.truncf %31 : vector<8x256xf32> to vector<8x256xbf16>
    %c24 = arith.constant 24 : index
    %c0_24 = arith.constant 0 : index
    %33 = vector.load %arg14[%c24, %c0_24] : memref<72x256xbf16, #tpu.memory_space<vmem>>, vector<8x256xbf16>
    tpu.vector_store %arg14[%c24, %c0_24], %32 {strides = array<i32>} : memref<72x256xbf16, #tpu.memory_space<vmem>>, vector<8x256xbf16>,
    %c0_25 = arith.constant 0 : index
    %c17_26 = arith.constant 17 : index
    %34 = vector.load %arg13[%c0_25, %c17_26] : memref<8x290xf32, #tpu.memory_space<vmem>>, vector<4x256xf32>
    %cst_27 = arith.constant 0.000000e+00 : f32
    %35 = vector.broadcast %cst_27 : f32 to vector<4x256xf32>
    %36 = tpu.concatenate %34, %35 in 0 : vector<4x256xf32>, vector<4x256xf32> -> vector<8x256xf32>
    %37 = arith.truncf %36 : vector<8x256xf32> to vector<8x256xbf16>
    %c32 = arith.constant 32 : index
    %c0_28 = arith.constant 0 : index
    %38 = vector.load %arg14[%c32, %c0_28] : memref<72x256xbf16, #tpu.memory_space<vmem>>, vector<8x256xbf16>
    tpu.vector_store %arg14[%c32, %c0_28], %37 {strides = array<i32>} : memref<72x256xbf16, #tpu.memory_space<vmem>>, vector<8x256xbf16>,
    %c0_29 = arith.constant 0 : index
    %c18 = arith.constant 18 : index
    %39 = vector.load %arg13[%c0_29, %c18] : memref<8x290xf32, #tpu.memory_space<vmem>>, vector<4x256xf32>
    %40 = vector.broadcast %1 : vector<1x256xf32> to vector<4x256xf32>
    %41 = arith.mulf %39, %40 : vector<4x256xf32>
    %cst_30 = arith.constant 0.000000e+00 : f32
    %42 = vector.broadcast %cst_30 : f32 to vector<4x256xf32>
    %43 = tpu.concatenate %41, %42 in 0 : vector<4x256xf32>, vector<4x256xf32> -> vector<8x256xf32>
    %44 = arith.truncf %43 : vector<8x256xf32> to vector<8x256xbf16>
    %c40 = arith.constant 40 : index
    %c0_31 = arith.constant 0 : index
    %45 = vector.load %arg14[%c40, %c0_31] : memref<72x256xbf16, #tpu.memory_space<vmem>>, vector<8x256xbf16>
    tpu.vector_store %arg14[%c40, %c0_31], %44 {strides = array<i32>} : memref<72x256xbf16, #tpu.memory_space<vmem>>, vector<8x256xbf16>,
    %c0_32 = arith.constant 0 : index
    %c32_33 = arith.constant 32 : index
    %46 = vector.load %arg13[%c0_32, %c32_33] : memref<8x290xf32, #tpu.memory_space<vmem>>, vector<4x256xf32>
    %47 = vector.broadcast %0 : vector<1x256xf32> to vector<4x256xf32>
    %48 = arith.mulf %46, %47 : vector<4x256xf32>
    %cst_34 = arith.constant 0.000000e+00 : f32
    %49 = vector.broadcast %cst_34 : f32 to vector<4x256xf32>
    %50 = tpu.concatenate %48, %49 in 0 : vector<4x256xf32>, vector<4x256xf32> -> vector<8x256xf32>
    %51 = arith.truncf %50 : vector<8x256xf32> to vector<8x256xbf16>
    %c48 = arith.constant 48 : index
    %c0_35 = arith.constant 0 : index
    %52 = vector.load %arg14[%c48, %c0_35] : memref<72x256xbf16, #tpu.memory_space<vmem>>, vector<8x256xbf16>
    tpu.vector_store %arg14[%c48, %c0_35], %51 {strides = array<i32>} : memref<72x256xbf16, #tpu.memory_space<vmem>>, vector<8x256xbf16>,
    %c0_36 = arith.constant 0 : index
    %c33 = arith.constant 33 : index
    %53 = vector.load %arg13[%c0_36, %c33] : memref<8x290xf32, #tpu.memory_space<vmem>>, vector<4x256xf32>
    %cst_37 = arith.constant 0.000000e+00 : f32
    %54 = vector.broadcast %cst_37 : f32 to vector<4x256xf32>
    %55 = tpu.concatenate %53, %54 in 0 : vector<4x256xf32>, vector<4x256xf32> -> vector<8x256xf32>
    %56 = arith.truncf %55 : vector<8x256xf32> to vector<8x256xbf16>
    %c56 = arith.constant 56 : index
    %c0_38 = arith.constant 0 : index
    %57 = vector.load %arg14[%c56, %c0_38] : memref<72x256xbf16, #tpu.memory_space<vmem>>, vector<8x256xbf16>
    tpu.vector_store %arg14[%c56, %c0_38], %56 {strides = array<i32>} : memref<72x256xbf16, #tpu.memory_space<vmem>>, vector<8x256xbf16>,
    %c0_39 = arith.constant 0 : index
    %c34 = arith.constant 34 : index
    %58 = vector.load %arg13[%c0_39, %c34] : memref<8x290xf32, #tpu.memory_space<vmem>>, vector<4x256xf32>
    %59 = vector.broadcast %1 : vector<1x256xf32> to vector<4x256xf32>
    %60 = arith.mulf %58, %59 : vector<4x256xf32>
    %cst_40 = arith.constant 0.000000e+00 : f32
    %61 = vector.broadcast %cst_40 : f32 to vector<4x256xf32>
    %62 = tpu.concatenate %60, %61 in 0 : vector<4x256xf32>, vector<4x256xf32> -> vector<8x256xf32>
    %63 = arith.truncf %62 : vector<8x256xf32> to vector<8x256xbf16>
    %c64 = arith.constant 64 : index
    %c0_41 = arith.constant 0 : index
    %64 = vector.load %arg14[%c64, %c0_41] : memref<72x256xbf16, #tpu.memory_space<vmem>>, vector<8x256xbf16>
    tpu.vector_store %arg14[%c64, %c0_41], %63 {strides = array<i32>} : memref<72x256xbf16, #tpu.memory_space<vmem>>, vector<8x256xbf16>,
    %c0_42 = arith.constant 0 : index
    %c0_43 = arith.constant 0 : index
    %65 = vector.load %arg3[%c0_42, %c0_43] : memref<8x72xbf16, #tpu.memory_space<vmem>>, vector<8x72xbf16>
    %c0_44 = arith.constant 0 : index
    %c0_45 = arith.constant 0 : index
    %66 = vector.load %arg14[%c0_44, %c0_45] : memref<72x256xbf16, #tpu.memory_space<vmem>>, vector<72x256xbf16>
    %cst_46 = arith.constant dense<0.000000e+00> : vector<8x256xf32>
    %67 = tpu.matmul %65, %66, %cst_46 {dimension_numbers = #tpu.dot_dimension_numbers<[1], [0], [0], [1], [0, 0, 1, 1], [], []>} : vector<8x72xbf16>, vector<72x256xbf16>, vector<8x256xf32> -> vector<8x256xf32>
    %c0_47 = arith.constant 0 : index
    %c0_48 = arith.constant 0 : index
    %68 = vector.load %arg4[%c0_47, %c0_48] : memref<8x1xf32, #tpu.memory_space<vmem>>, vector<8x1xf32>
    %69 = vector.broadcast %68 : vector<8x1xf32> to vector<8x256xf32>
    %70 = arith.mulf %67, %69 : vector<8x256xf32>
    %c0_49 = arith.constant 0 : index
    %c0_50 = arith.constant 0 : index
    %71 = vector.load %arg5[%c0_49, %c0_50] : memref<8x1xf32, #tpu.memory_space<vmem>>, vector<8x1xf32>
    %72 = vector.broadcast %71 : vector<8x1xf32> to vector<8x256xf32>
    %73 = arith.addf %70, %72 : vector<8x256xf32>
    %cst_51 = arith.constant 0.000000e+00 : f32
    %74 = vector.broadcast %cst_51 : f32 to vector<8x256xf32>
    %75 = arith.maximumf %73, %74 : vector<8x256xf32>
    %c0_52 = arith.constant 0 : index
    %c17_53 = arith.constant 17 : index
    %76 = vector.load %arg13[%c0_52, %c17_53] : memref<8x290xf32, #tpu.memory_space<vmem>>, vector<8x256xf32>
    tpu.vector_store %arg13[%c0_52, %c17_53], %75 {strides = array<i32>} : memref<8x290xf32, #tpu.memory_space<vmem>>, vector<8x256xf32>,
    %c0_54 = arith.constant 0 : index
    %c0_55 = arith.constant 0 : index
    %77 = vector.load %arg13[%c0_54, %c0_55] : memref<8x290xf32, #tpu.memory_space<vmem>>, vector<8x256xf32>
    %78 = vector.broadcast %0 : vector<1x256xf32> to vector<8x256xf32>
    %79 = arith.mulf %77, %78 : vector<8x256xf32>
    %80 = arith.truncf %79 : vector<8x256xf32> to vector<8x256xbf16>
    %c0_56 = arith.constant 0 : index
    %c0_57 = arith.constant 0 : index
    %81 = vector.load %arg14[%c0_56, %c0_57] : memref<72x256xbf16, #tpu.memory_space<vmem>>, vector<8x256xbf16>
    tpu.vector_store %arg14[%c0_56, %c0_57], %80 {strides = array<i32>} : memref<72x256xbf16, #tpu.memory_space<vmem>>, vector<8x256xbf16>,
    %c0_58 = arith.constant 0 : index
    %c1_59 = arith.constant 1 : index
    %82 = vector.load %arg13[%c0_58, %c1_59] : memref<8x290xf32, #tpu.memory_space<vmem>>, vector<8x256xf32>
    %83 = arith.truncf %82 : vector<8x256xf32> to vector<8x256xbf16>
    %c8_60 = arith.constant 8 : index
    %c0_61 = arith.constant 0 : index
    %84 = vector.load %arg14[%c8_60, %c0_61] : memref<72x256xbf16, #tpu.memory_space<vmem>>, vector<8x256xbf16>
    tpu.vector_store %arg14[%c8_60, %c0_61], %83 {strides = array<i32>} : memref<72x256xbf16, #tpu.memory_space<vmem>>, vector<8x256xbf16>,
    %c0_62 = arith.constant 0 : index
    %c2_63 = arith.constant 2 : index
    %85 = vector.load %arg13[%c0_62, %c2_63] : memref<8x290xf32, #tpu.memory_space<vmem>>, vector<8x256xf32>
    %86 = vector.broadcast %1 : vector<1x256xf32> to vector<8x256xf32>
    %87 = arith.mulf %85, %86 : vector<8x256xf32>
    %88 = arith.truncf %87 : vector<8x256xf32> to vector<8x256xbf16>
    %c16_64 = arith.constant 16 : index
    %c0_65 = arith.constant 0 : index
    %89 = vector.load %arg14[%c16_64, %c0_65] : memref<72x256xbf16, #tpu.memory_space<vmem>>, vector<8x256xbf16>
    tpu.vector_store %arg14[%c16_64, %c0_65], %88 {strides = array<i32>} : memref<72x256xbf16, #tpu.memory_space<vmem>>, vector<8x256xbf16>,
    %c0_66 = arith.constant 0 : index
    %c16_67 = arith.constant 16 : index
    %90 = vector.load %arg13[%c0_66, %c16_67] : memref<8x290xf32, #tpu.memory_space<vmem>>, vector<8x256xf32>
    %91 = vector.broadcast %0 : vector<1x256xf32> to vector<8x256xf32>
    %92 = arith.mulf %90, %91 : vector<8x256xf32>
    %93 = arith.truncf %92 : vector<8x256xf32> to vector<8x256xbf16>
    %c24_68 = arith.constant 24 : index
    %c0_69 = arith.constant 0 : index
    %94 = vector.load %arg14[%c24_68, %c0_69] : memref<72x256xbf16, #tpu.memory_space<vmem>>, vector<8x256xbf16>
    tpu.vector_store %arg14[%c24_68, %c0_69], %93 {strides = array<i32>} : memref<72x256xbf16, #tpu.memory_space<vmem>>, vector<8x256xbf16>,
    %c0_70 = arith.constant 0 : index
    %c17_71 = arith.constant 17 : index
    %95 = vector.load %arg13[%c0_70, %c17_71] : memref<8x290xf32, #tpu.memory_space<vmem>>, vector<8x256xf32>
    %96 = arith.truncf %95 : vector<8x256xf32> to vector<8x256xbf16>
    %c32_72 = arith.constant 32 : index
    %c0_73 = arith.constant 0 : index
    %97 = vector.load %arg14[%c32_72, %c0_73] : memref<72x256xbf16, #tpu.memory_space<vmem>>, vector<8x256xbf16>
    tpu.vector_store %arg14[%c32_72, %c0_73], %96 {strides = array<i32>} : memref<72x256xbf16, #tpu.memory_space<vmem>>, vector<8x256xbf16>,
    %c0_74 = arith.constant 0 : index
    %c18_75 = arith.constant 18 : index
    %98 = vector.load %arg13[%c0_74, %c18_75] : memref<8x290xf32, #tpu.memory_space<vmem>>, vector<8x256xf32>
    %99 = vector.broadcast %1 : vector<1x256xf32> to vector<8x256xf32>
    %100 = arith.mulf %98, %99 : vector<8x256xf32>
    %101 = arith.truncf %100 : vector<8x256xf32> to vector<8x256xbf16>
    %c40_76 = arith.constant 40 : index
    %c0_77 = arith.constant 0 : index
    %102 = vector.load %arg14[%c40_76, %c0_77] : memref<72x256xbf16, #tpu.memory_space<vmem>>, vector<8x256xbf16>
    tpu.vector_store %arg14[%c40_76, %c0_77], %101 {strides = array<i32>} : memref<72x256xbf16, #tpu.memory_space<vmem>>, vector<8x256xbf16>,
    %c0_78 = arith.constant 0 : index
    %c32_79 = arith.constant 32 : index
    %103 = vector.load %arg13[%c0_78, %c32_79] : memref<8x290xf32, #tpu.memory_space<vmem>>, vector<8x256xf32>
    %104 = vector.broadcast %0 : vector<1x256xf32> to vector<8x256xf32>
    %105 = arith.mulf %103, %104 : vector<8x256xf32>
    %106 = arith.truncf %105 : vector<8x256xf32> to vector<8x256xbf16>
    %c48_80 = arith.constant 48 : index
    %c0_81 = arith.constant 0 : index
    %107 = vector.load %arg14[%c48_80, %c0_81] : memref<72x256xbf16, #tpu.memory_space<vmem>>, vector<8x256xbf16>
    tpu.vector_store %arg14[%c48_80, %c0_81], %106 {strides = array<i32>} : memref<72x256xbf16, #tpu.memory_space<vmem>>, vector<8x256xbf16>,
    %c0_82 = arith.constant 0 : index
    %c33_83 = arith.constant 33 : index
    %108 = vector.load %arg13[%c0_82, %c33_83] : memref<8x290xf32, #tpu.memory_space<vmem>>, vector<8x256xf32>
    %109 = arith.truncf %108 : vector<8x256xf32> to vector<8x256xbf16>
    %c56_84 = arith.constant 56 : index
    %c0_85 = arith.constant 0 : index
    %110 = vector.load %arg14[%c56_84, %c0_85] : memref<72x256xbf16, #tpu.memory_space<vmem>>, vector<8x256xbf16>
    tpu.vector_store %arg14[%c56_84, %c0_85], %109 {strides = array<i32>} : memref<72x256xbf16, #tpu.memory_space<vmem>>, vector<8x256xbf16>,
    %c0_86 = arith.constant 0 : index
    %c34_87 = arith.constant 34 : index
    %111 = vector.load %arg13[%c0_86, %c34_87] : memref<8x290xf32, #tpu.memory_space<vmem>>, vector<8x256xf32>
    %112 = vector.broadcast %1 : vector<1x256xf32> to vector<8x256xf32>
    %113 = arith.mulf %111, %112 : vector<8x256xf32>
    %114 = arith.truncf %113 : vector<8x256xf32> to vector<8x256xbf16>
    %c64_88 = arith.constant 64 : index
    %c0_89 = arith.constant 0 : index
    %115 = vector.load %arg14[%c64_88, %c0_89] : memref<72x256xbf16, #tpu.memory_space<vmem>>, vector<8x256xbf16>
    tpu.vector_store %arg14[%c64_88, %c0_89], %114 {strides = array<i32>} : memref<72x256xbf16, #tpu.memory_space<vmem>>, vector<8x256xbf16>,
    %c0_90 = arith.constant 0 : index
    %c0_91 = arith.constant 0 : index
    %116 = vector.load %arg6[%c0_90, %c0_91] : memref<8x72xbf16, #tpu.memory_space<vmem>>, vector<8x72xbf16>
    %c0_92 = arith.constant 0 : index
    %c0_93 = arith.constant 0 : index
    %117 = vector.load %arg14[%c0_92, %c0_93] : memref<72x256xbf16, #tpu.memory_space<vmem>>, vector<72x256xbf16>
    %cst_94 = arith.constant dense<0.000000e+00> : vector<8x256xf32>
    %118 = tpu.matmul %116, %117, %cst_94 {dimension_numbers = #tpu.dot_dimension_numbers<[1], [0], [0], [1], [0, 0, 1, 1], [], []>} : vector<8x72xbf16>, vector<72x256xbf16>, vector<8x256xf32> -> vector<8x256xf32>
    %c0_95 = arith.constant 0 : index
    %c0_96 = arith.constant 0 : index
    %119 = vector.load %arg7[%c0_95, %c0_96] : memref<8x1xf32, #tpu.memory_space<vmem>>, vector<8x1xf32>
    %120 = vector.broadcast %119 : vector<8x1xf32> to vector<8x256xf32>
    %121 = arith.mulf %118, %120 : vector<8x256xf32>
    %c0_97 = arith.constant 0 : index
    %c0_98 = arith.constant 0 : index
    %122 = vector.load %arg8[%c0_97, %c0_98] : memref<8x1xf32, #tpu.memory_space<vmem>>, vector<8x1xf32>
    %123 = vector.broadcast %122 : vector<8x1xf32> to vector<8x256xf32>
    %124 = arith.addf %121, %123 : vector<8x256xf32>
    %c0_99 = arith.constant 0 : index
    %c0_100 = arith.constant 0 : index
    %125 = vector.load %arg9[%c0_99, %c0_100] : memref<8x4xbf16, #tpu.memory_space<vmem>>, vector<8x4xbf16>
    %c0_101 = arith.constant 0 : index
    %c0_102 = arith.constant 0 : index
    %c0_103 = arith.constant 0 : index
    %126 = vector.load %arg1[%c0_101, %c0_102, %c0_103] : memref<1x4x256xf32, #tpu.memory_space<vmem>>, vector<1x4x256xf32>
    %127 = vector.shape_cast %126 : vector<1x4x256xf32> to vector<4x256xf32>
    %128 = arith.truncf %127 : vector<4x256xf32> to vector<4x256xbf16>
    %cst_104 = arith.constant dense<0.000000e+00> : vector<8x256xf32>
    %129 = tpu.matmul %125, %128, %cst_104 {dimension_numbers = #tpu.dot_dimension_numbers<[1], [0], [0], [1], [0, 0, 1, 1], [], []>} : vector<8x4xbf16>, vector<4x256xbf16>, vector<8x256xf32> -> vector<8x256xf32>
    %c0_105 = arith.constant 0 : index
    %c0_106 = arith.constant 0 : index
    %130 = vector.load %arg10[%c0_105, %c0_106] : memref<8x1xf32, #tpu.memory_space<vmem>>, vector<8x1xf32>
    %131 = vector.broadcast %130 : vector<8x1xf32> to vector<8x256xf32>
    %132 = arith.mulf %129, %131 : vector<8x256xf32>
    %c0_107 = arith.constant 0 : index
    %c0_108 = arith.constant 0 : index
    %133 = vector.load %arg11[%c0_107, %c0_108] : memref<8x1xf32, #tpu.memory_space<vmem>>, vector<8x1xf32>
    %134 = vector.broadcast %133 : vector<8x1xf32> to vector<8x256xf32>
    %135 = arith.addf %132, %134 : vector<8x256xf32>
    %136 = arith.addf %124, %135 : vector<8x256xf32>
    %cst_109 = arith.constant 0.000000e+00 : f32
    %137 = vector.broadcast %cst_109 : f32 to vector<8x256xf32>
    %138 = arith.maximumf %136, %137 : vector<8x256xf32>
    %c0_110 = arith.constant 0 : index
    %c0_111 = arith.constant 0 : index
    %c0_112 = arith.constant 0 : index
    %139 = vector.load %arg12[%c0_110, %c0_111, %c0_112] : memref<1x8x256xf32, #tpu.memory_space<vmem>>, vector<1x8x256xf32>
    %140 = vector.shape_cast %139 : vector<1x8x256xf32> to vector<8x256xf32>
    %141 = vector.shape_cast %138 : vector<8x256xf32> to vector<1x8x256xf32>
    tpu.vector_store %arg12[%c0_110, %c0_111, %c0_112], %141 {strides = array<i32>} : memref<1x8x256xf32, #tpu.memory_space<vmem>>, vector<1x8x256xf32>,
    return
  }
  func.func @transform_0(%arg0: i32) -> (i32, i32, i32) {
    %c0_i32 = arith.constant 0 : i32
    %c0_i32_0 = arith.constant 0 : i32
    %c0_i32_1 = arith.constant 0 : i32
    return %arg0, %c0_i32, %c0_i32_0 : i32, i32, i32
  }
  func.func @transform_1(%arg0: i32) -> (i32, i32) {
    %c0_i32 = arith.constant 0 : i32
    %c0_i32_0 = arith.constant 0 : i32
    %c0_i32_1 = arith.constant 0 : i32
    return %c0_i32, %c0_i32_0 : i32, i32
  }
  func.func @transform_2(%arg0: i32) -> (i32, i32) {
    %c0_i32 = arith.constant 0 : i32
    %c0_i32_0 = arith.constant 0 : i32
    %c0_i32_1 = arith.constant 0 : i32
    return %c0_i32, %c0_i32_0 : i32, i32
  }
  func.func @transform_3(%arg0: i32) -> (i32, i32) {
    %c0_i32 = arith.constant 0 : i32
    %c0_i32_0 = arith.constant 0 : i32
    %c0_i32_1 = arith.constant 0 : i32
    return %c0_i32, %c0_i32_0 : i32, i32
  }
  func.func @transform_4(%arg0: i32) -> (i32, i32) {
    %c0_i32 = arith.constant 0 : i32
    %c0_i32_0 = arith.constant 0 : i32
    %c0_i32_1 = arith.constant 0 : i32
    return %c0_i32, %c0_i32_0 : i32, i32
  }
  func.func @transform_5(%arg0: i32) -> (i32, i32) {
    %c0_i32 = arith.constant 0 : i32
    %c0_i32_0 = arith.constant 0 : i32
    %c0_i32_1 = arith.constant 0 : i32
    return %c0_i32, %c0_i32_0 : i32, i32
  }
  func.func @transform_6(%arg0: i32) -> (i32, i32) {
    %c0_i32 = arith.constant 0 : i32
    %c0_i32_0 = arith.constant 0 : i32
    %c0_i32_1 = arith.constant 0 : i32
    return %c0_i32, %c0_i32_0 : i32, i32
  }
  func.func @transform_7(%arg0: i32) -> (i32, i32) {
    %c0_i32 = arith.constant 0 : i32
    %c0_i32_0 = arith.constant 0 : i32
    %c0_i32_1 = arith.constant 0 : i32
    return %c0_i32, %c0_i32_0 : i32, i32
  }
  func.func @transform_8(%arg0: i32) -> (i32, i32) {
    %c0_i32 = arith.constant 0 : i32
    %c0_i32_0 = arith.constant 0 : i32
    %c0_i32_1 = arith.constant 0 : i32
    return %c0_i32, %c0_i32_0 : i32, i32
  }
  func.func @transform_9(%arg0: i32) -> (i32, i32) {
    %c0_i32 = arith.constant 0 : i32
    %c0_i32_0 = arith.constant 0 : i32
    %c0_i32_1 = arith.constant 0 : i32
    return %c0_i32, %c0_i32_0 : i32, i32
  }
  func.func @transform_10(%arg0: i32) -> (i32, i32) {
    %c0_i32 = arith.constant 0 : i32
    %c0_i32_0 = arith.constant 0 : i32
    %c0_i32_1 = arith.constant 0 : i32
    return %c0_i32, %c0_i32_0 : i32, i32
  }
  func.func @transform_11(%arg0: i32) -> (i32, i32, i32) {
    %c0_i32 = arith.constant 0 : i32
    %c0_i32_0 = arith.constant 0 : i32
    %c0_i32_1 = arith.constant 0 : i32
    return %arg0, %c0_i32, %c0_i32_0 : i32, i32, i32
  }
}

</mosaic_0001>

<llo_original>
// kernel: tpu_custom_call.1
$region0: #{tpu_custom_call.1}
  #allocation0 [shape = 'u32[]', space=smem, size = 0x4, offset = 0x4, fixed_abs, tag = 'smem constant byte address 0x4 - core index']
  #allocation1 [shape = 'u32[144,128]{1,0:T(1,128)}', space=vmem, size = 0x12000, scoped, tag = 'internal scratch']
  #allocation2 [shape = 'f32[8,290]{1,0:T(8,128)}', space=vmem, size = 0x3000, scoped, tag = 'scratch operand']
  #allocation3 [shape = 'bf16[72,256]{1,0:T(8,128)(2,1)}', space=vmem, size = 0x9000, scoped, tag = 'scratch operand']
  %s0 = inlined_call_operand.vmem [shape: f32[2,4,256], index: 0, kind: input, shape index: {}]
  %s1 = inlined_call_operand.vmem [shape: f32[2,256], index: 1, kind: input, shape index: {}]
  %s2 = inlined_call_operand.vmem [shape: bf16[8,72], index: 2, kind: input, shape index: {}]
  %s3 = inlined_call_operand.vmem [shape: f32[8,1], index: 3, kind: input, shape index: {}]
  %s4 = inlined_call_operand.vmem [shape: f32[8,1], index: 4, kind: input, shape index: {}]
  %s5 = inlined_call_operand.vmem [shape: bf16[8,72], index: 5, kind: input, shape index: {}]
  %s6 = inlined_call_operand.vmem [shape: f32[8,1], index: 6, kind: input, shape index: {}]
  %s7 = inlined_call_operand.vmem [shape: f32[8,1], index: 7, kind: input, shape index: {}]
  %s8 = inlined_call_operand.vmem [shape: bf16[8,4], index: 8, kind: input, shape index: {}]
  %s9 = inlined_call_operand.vmem [shape: f32[8,1], index: 9, kind: input, shape index: {}]
  %s10 = inlined_call_operand.vmem [shape: f32[8,1], index: 10, kind: input, shape index: {}]
  %s11 = inlined_call_operand.hbm [shape: f32[2,8,256], index: 11, kind: output, shape index: {}]
  %s12 = sld [smem:[#allocation0]]
  $region77: #{tpu_custom_call.1} parent=0
    _
  %s14 = ssub.s32 1, %s12
  %s15 = scalar_select 0, %s14, %s12
  $region1: #{tpu_custom_call.1} parent=0
    #allocation4 [shape = 'u8[16384]{0}', space=vmem, size = 0x4000, scoped, tag = 'output window, operand 0']
    #allocation5 [shape = 's32[2]{0}', space=sflag, size = 0x8, scoped, tag = 'scoped memory for tpu_custom_call.1']
    %16 = vsyncpa [#allocation5], 0
    %s17 = scalar_lea.sflag [#allocation5], 1
    %18 = vsyncpa %s17, 0
    loop: start=0, step=1, limit=4
    $region2: #{tpu_custom_call.1} parent=1 // loop_pre_header
      _
    $region3: #{tpu_custom_call.1} parent=1 // loop_header
      %s20 = sphi 0, %s24
      %p21 = scmp.ge.s32.totalorder %s20, 4
      %s30 = sphi 0, %s32
      %s33 = sphi 0, %s30
      %s34 = sphi 0, %s33
      %s50 = sphi 0, %s34
      %s54 = sphi 0, %s54
      %s56 = sphi 0, %s54
      %s57 = sphi 0, %s56
      %s71 = sphi 0, %s57
      %s75 = sphi 0, %s75
      %s77 = sphi 0, %s75
      %s78 = sphi 0, %s77
      %s92 = sphi 0, %s78
      %s96 = sphi 0, %s96
      %s98 = sphi 0, %s96
      %s99 = sphi 0, %s98
      %s113 = sphi 0, %s99
      %s117 = sphi 0, %s117
      %s119 = sphi 0, %s117
      %s120 = sphi 0, %s119
      %s134 = sphi 0, %s120
      %s138 = sphi 0, %s138
      %s140 = sphi 0, %s138
      %s141 = sphi 0, %s140
      %s155 = sphi 0, %s141
      %s159 = sphi 0, %s159
      %s161 = sphi 0, %s159
      %s162 = sphi 0, %s161
      %s176 = sphi 0, %s162
      %s180 = sphi 0, %s180
      %s182 = sphi 0, %s180
      %s183 = sphi 0, %s182
      %s197 = sphi 0, %s183
      %s201 = sphi 0, %s201
      %s203 = sphi 0, %s201
      %s204 = sphi 0, %s203
      %s218 = sphi 0, %s204
      %s222 = sphi 0, %s222
      %s224 = sphi 0, %s222
      %s225 = sphi 0, %s224
      %s239 = sphi 0, %s225
      %s243 = sphi 0, %s243
      %s245 = sphi 0, %s243
      %s246 = sphi 0, %s245
      %s260 = sphi 0, %s246
      %s266 = sphi 0, %s268
      %s269 = sphi 0, %s266
      %s270 = sphi 0, %s269
      %s286 = sphi 0, %s270
    $region4: #{tpu_custom_call.1} parent=1 // loop_header_branch
      %23 = sbr.rel (%p21) target = $region8
    $region5: #{tpu_custom_call.1} parent=1 // loop_body
      %s25 = ssub.s32 %s20, 1
      %s26 = ssub.s32 %s20, 2
      %s27 = sadd.s32 %s20, 1
      %s28 = ssub.s32 %s20, %s27
      %p29 = scmp.eq.s32.totalorder %s28, 0
      %s31 = sadd.s32 %s30, 1
      %s32 = scalar_select %p29, %s30, %s31
      %p35 = pneg %p29
      %p36 = scmp.eq.s32.totalorder %s20, 1
      %p37 = por %p35, %p36
      %p38 = scmp.ne.s32.totalorder %s30, %s33
      %p39 = scmp.eq.s32.totalorder %s20, 0
      %p40 = por %p38, %p39
      %p41 = scmp.ne.s32.totalorder %s30, %s33
      %p42 = scmp.eq.s32.totalorder %s25, 1
      %p43 = por %p41, %p42
      %p44 = scmp.ne.s32.totalorder %s33, %s34
      %p45 = scmp.eq.s32.totalorder %s25, 0
      %p46 = por %p44, %p45
      %p47 = scmp.ne.s32.totalorder %s33, %s34
      %p48 = scmp.eq.s32.totalorder %s26, 1
      %p49 = por %p47, %p48
      %p51 = scmp.ne.s32.totalorder %s34, %s50
      %p52 = scmp.eq.s32.totalorder %s26, 0
      %p53 = por %p51, %p52
      %s55 = sadd.s32 %s54, 1
      %p58 = scmp.eq.s32.totalorder %s20, 1
      %p59 = scmp.ne.s32.totalorder %s54, %s56
      %p60 = scmp.eq.s32.totalorder %s20, 0
      %p61 = por %p59, %p60
      %p62 = scmp.ne.s32.totalorder %s54, %s56
      %p63 = scmp.eq.s32.totalorder %s25, 1
      %p64 = por %p62, %p63
      %p65 = scmp.ne.s32.totalorder %s56, %s57
      %p66 = scmp.eq.s32.totalorder %s25, 0
      %p67 = por %p65, %p66
      %p68 = scmp.ne.s32.totalorder %s56, %s57
      %p69 = scmp.eq.s32.totalorder %s26, 1
      %p70 = por %p68, %p69
      %p72 = scmp.ne.s32.totalorder %s57, %s71
      %p73 = scmp.eq.s32.totalorder %s26, 0
      %p74 = por %p72, %p73
      %s76 = sadd.s32 %s75, 1
      %p79 = scmp.eq.s32.totalorder %s20, 1
      %p80 = scmp.ne.s32.totalorder %s75, %s77
      %p81 = scmp.eq.s32.totalorder %s20, 0
      %p82 = por %p80, %p81
      %p83 = scmp.ne.s32.totalorder %s75, %s77
      %p84 = scmp.eq.s32.totalorder %s25, 1
      %p85 = por %p83, %p84
      %p86 = scmp.ne.s32.totalorder %s77, %s78
      %p87 = scmp.eq.s32.totalorder %s25, 0
      %p88 = por %p86, %p87
      %p89 = scmp.ne.s32.totalorder %s77, %s78
      %p90 = scmp.eq.s32.totalorder %s26, 1
      %p91 = por %p89, %p90
      %p93 = scmp.ne.s32.totalorder %s78, %s92
      %p94 = scmp.eq.s32.totalorder %s26, 0
      %p95 = por %p93, %p94
      %s97 = sadd.s32 %s96, 1
      %p100 = scmp.eq.s32.totalorder %s20, 1
      %p101 = scmp.ne.s32.totalorder %s96, %s98
      %p102 = scmp.eq.s32.totalorder %s20, 0
      %p103 = por %p101, %p102
      %p104 = scmp.ne.s32.totalorder %s96, %s98
      %p105 = scmp.eq.s32.totalorder %s25, 1
      %p106 = por %p104, %p105
      %p107 = scmp.ne.s32.totalorder %s98, %s99
      %p108 = scmp.eq.s32.totalorder %s25, 0
      %p109 = por %p107, %p108
      %p110 = scmp.ne.s32.totalorder %s98, %s99
      %p111 = scmp.eq.s32.totalorder %s26, 1
      %p112 = por %p110, %p111
      %p114 = scmp.ne.s32.totalorder %s99, %s113
      %p115 = scmp.eq.s32.totalorder %s26, 0
      %p116 = por %p114, %p115
      %s118 = sadd.s32 %s117, 1
      %p121 = scmp.eq.s32.totalorder %s20, 1
      %p122 = scmp.ne.s32.totalorder %s117, %s119
      %p123 = scmp.eq.s32.totalorder %s20, 0
      %p124 = por %p122, %p123
      %p125 = scmp.ne.s32.totalorder %s117, %s119
      %p126 = scmp.eq.s32.totalorder %s25, 1
      %p127 = por %p125, %p126
      %p128 = scmp.ne.s32.totalorder %s119, %s120
      %p129 = scmp.eq.s32.totalorder %s25, 0
      %p130 = por %p128, %p129
      %p131 = scmp.ne.s32.totalorder %s119, %s120
      %p132 = scmp.eq.s32.totalorder %s26, 1
      %p133 = por %p131, %p132
      %p135 = scmp.ne.s32.totalorder %s120, %s134
      %p136 = scmp.eq.s32.totalorder %s26, 0
      %p137 = por %p135, %p136
      %s139 = sadd.s32 %s138, 1
      %p142 = scmp.eq.s32.totalorder %s20, 1
      %p143 = scmp.ne.s32.totalorder %s138, %s140
      %p144 = scmp.eq.s32.totalorder %s20, 0
      %p145 = por %p143, %p144
      %p146 = scmp.ne.s32.totalorder %s138, %s140
      %p147 = scmp.eq.s32.totalorder %s25, 1
      %p148 = por %p146, %p147
      %p149 = scmp.ne.s32.totalorder %s140, %s141
      %p150 = scmp.eq.s32.totalorder %s25, 0
      %p151 = por %p149, %p150
      %p152 = scmp.ne.s32.totalorder %s140, %s141
      %p153 = scmp.eq.s32.totalorder %s26, 1
      %p154 = por %p152, %p153
      %p156 = scmp.ne.s32.totalorder %s141, %s155
      %p157 = scmp.eq.s32.totalorder %s26, 0
      %p158 = por %p156, %p157
      %s160 = sadd.s32 %s159, 1
      %p163 = scmp.eq.s32.totalorder %s20, 1
      %p164 = scmp.ne.s32.totalorder %s159, %s161
      %p165 = scmp.eq.s32.totalorder %s20, 0
      %p166 = por %p164, %p165
      %p167 = scmp.ne.s32.totalorder %s159, %s161
      %p168 = scmp.eq.s32.totalorder %s25, 1
      %p169 = por %p167, %p168
      %p170 = scmp.ne.s32.totalorder %s161, %s162
      %p171 = scmp.eq.s32.totalorder %s25, 0
      %p172 = por %p170, %p171
      %p173 = scmp.ne.s32.totalorder %s161, %s162
      %p174 = scmp.eq.s32.totalorder %s26, 1
      %p175 = por %p173, %p174
      %p177 = scmp.ne.s32.totalorder %s162, %s176
      %p178 = scmp.eq.s32.totalorder %s26, 0
      %p179 = por %p177, %p178
      %s181 = sadd.s32 %s180, 1
      %p184 = scmp.eq.s32.totalorder %s20, 1
      %p185 = scmp.ne.s32.totalorder %s180, %s182
      %p186 = scmp.eq.s32.totalorder %s20, 0
      %p187 = por %p185, %p186
      %p188 = scmp.ne.s32.totalorder %s180, %s182
      %p189 = scmp.eq.s32.totalorder %s25, 1
      %p190 = por %p188, %p189
      %p191 = scmp.ne.s32.totalorder %s182, %s183
      %p192 = scmp.eq.s32.totalorder %s25, 0
      %p193 = por %p191, %p192
      %p194 = scmp.ne.s32.totalorder %s182, %s183
      %p195 = scmp.eq.s32.totalorder %s26, 1
      %p196 = por %p194, %p195
      %p198 = scmp.ne.s32.totalorder %s183, %s197
      %p199 = scmp.eq.s32.totalorder %s26, 0
      %p200 = por %p198, %p199
      %s202 = sadd.s32 %s201, 1
      %p205 = scmp.eq.s32.totalorder %s20, 1
      %p206 = scmp.ne.s32.totalorder %s201, %s203
      %p207 = scmp.eq.s32.totalorder %s20, 0
      %p208 = por %p206, %p207
      %p209 = scmp.ne.s32.totalorder %s201, %s203
      %p210 = scmp.eq.s32.totalorder %s25, 1
      %p211 = por %p209, %p210
      %p212 = scmp.ne.s32.totalorder %s203, %s204
      %p213 = scmp.eq.s32.totalorder %s25, 0
      %p214 = por %p212, %p213
      %p215 = scmp.ne.s32.totalorder %s203, %s204
      %p216 = scmp.eq.s32.totalorder %s26, 1
      %p217 = por %p215, %p216
      %p219 = scmp.ne.s32.totalorder %s204, %s218
      %p220 = scmp.eq.s32.totalorder %s26, 0
      %p221 = por %p219, %p220
      %s223 = sadd.s32 %s222, 1
      %p226 = scmp.eq.s32.totalorder %s20, 1
      %p227 = scmp.ne.s32.totalorder %s222, %s224
      %p228 = scmp.eq.s32.totalorder %s20, 0
      %p229 = por %p227, %p228
      %p230 = scmp.ne.s32.totalorder %s222, %s224
      %p231 = scmp.eq.s32.totalorder %s25, 1
      %p232 = por %p230, %p231
      %p233 = scmp.ne.s32.totalorder %s224, %s225
      %p234 = scmp.eq.s32.totalorder %s25, 0
      %p235 = por %p233, %p234
      %p236 = scmp.ne.s32.totalorder %s224, %s225
      %p237 = scmp.eq.s32.totalorder %s26, 1
      %p238 = por %p236, %p237
      %p240 = scmp.ne.s32.totalorder %s225, %s239
      %p241 = scmp.eq.s32.totalorder %s26, 0
      %p242 = por %p240, %p241
      %s244 = sadd.s32 %s243, 1
      %p247 = scmp.eq.s32.totalorder %s20, 1
      %p248 = scmp.ne.s32.totalorder %s243, %s245
      %p249 = scmp.eq.s32.totalorder %s20, 0
      %p250 = por %p248, %p249
      %p251 = scmp.ne.s32.totalorder %s243, %s245
      %p252 = scmp.eq.s32.totalorder %s25, 1
      %p253 = por %p251, %p252
      %p254 = scmp.ne.s32.totalorder %s245, %s246
      %p255 = scmp.eq.s32.totalorder %s25, 0
      %p256 = por %p254, %p255
      %p257 = scmp.ne.s32.totalorder %s245, %s246
      %p258 = scmp.eq.s32.totalorder %s26, 1
      %p259 = por %p257, %p258
      %p261 = scmp.ne.s32.totalorder %s246, %s260
      %p262 = scmp.eq.s32.totalorder %s26, 0
      %p263 = por %p261, %p262
      %s264 = ssub.s32 %s20, %s27
      %p265 = scmp.eq.s32.totalorder %s264, 0
      %s267 = sadd.s32 %s266, 1
      %s268 = scalar_select %p265, %s266, %s267
      %p271 = pneg %p265
      %p272 = scmp.eq.s32.totalorder %s20, 1
      %p273 = por %p271, %p272
      %p274 = scmp.ne.s32.totalorder %s266, %s269
      %p275 = scmp.eq.s32.totalorder %s20, 0
      %p276 = por %p274, %p275
      %p277 = scmp.ne.s32.totalorder %s266, %s269
      %p278 = scmp.eq.s32.totalorder %s25, 1
      %p279 = por %p277, %p278
      %p280 = scmp.ne.s32.totalorder %s269, %s270
      %p281 = scmp.eq.s32.totalorder %s25, 0
      %p282 = por %p280, %p281
      %p283 = scmp.ne.s32.totalorder %s269, %s270
      %p284 = scmp.eq.s32.totalorder %s26, 1
      %p285 = por %p283, %p284
      %p287 = scmp.ne.s32.totalorder %s270, %s286
      %p288 = scmp.eq.s32.totalorder %s26, 0
      %p289 = por %p287, %p288
      %p290 = scmp.le.s32.totalorder 1, %s20
      %p291 = scmp.lt.s32.totalorder %s20, 3
      %p292 = pnand %p290, %p291
      %p293 = pneg %p292
      // Predicated region
      $region9: #{tpu_custom_call.1} parent=5 // pred_check
        _
      $region10: #{tpu_custom_call.1} parent=5 // pred_check_branch
        %295 = sbr.rel (%p292) target = $region12
      $region11: #{tpu_custom_call.1} parent=5 // pred_region
        %s296 = ssub.s32 %s20, 1
        // Predicated region
        $region13: #{tpu_custom_call.1} parent=11 // pred_check
          %p297 = pneg %p67
        $region14: #{tpu_custom_call.1} parent=11 // pred_check_branch
          %299 = sbr.rel (%p297) target = $region16
        $region15: #{tpu_custom_call.1} parent=11 // pred_region
          _
        $region16: #{tpu_custom_call.1} parent=11 // pred_fallthru
          _
        // Predicated region
        $region17: #{tpu_custom_call.1} parent=11 // pred_check
          %p300 = pneg %p88
        $region18: #{tpu_custom_call.1} parent=11 // pred_check_branch
          %302 = sbr.rel (%p300) target = $region20
        $region19: #{tpu_custom_call.1} parent=11 // pred_region
          _
        $region20: #{tpu_custom_call.1} parent=11 // pred_fallthru
          _
        // Predicated region
        $region21: #{tpu_custom_call.1} parent=11 // pred_check
          %p303 = pneg %p109
        $region22: #{tpu_custom_call.1} parent=11 // pred_check_branch
          %305 = sbr.rel (%p303) target = $region24
        $region23: #{tpu_custom_call.1} parent=11 // pred_region
          _
        $region24: #{tpu_custom_call.1} parent=11 // pred_fallthru
          _
        // Predicated region
        $region25: #{tpu_custom_call.1} parent=11 // pred_check
          %p306 = pneg %p130
        $region26: #{tpu_custom_call.1} parent=11 // pred_check_branch
          %308 = sbr.rel (%p306) target = $region28
        $region27: #{tpu_custom_call.1} parent=11 // pred_region
          _
        $region28: #{tpu_custom_call.1} parent=11 // pred_fallthru
          _
        // Predicated region
        $region29: #{tpu_custom_call.1} parent=11 // pred_check
          %p309 = pneg %p151
        $region30: #{tpu_custom_call.1} parent=11 // pred_check_branch
          %311 = sbr.rel (%p309) target = $region32
        $region31: #{tpu_custom_call.1} parent=11 // pred_region
          _
        $region32: #{tpu_custom_call.1} parent=11 // pred_fallthru
          _
        // Predicated region
        $region33: #{tpu_custom_call.1} parent=11 // pred_check
          %p312 = pneg %p172
        $region34: #{tpu_custom_call.1} parent=11 // pred_check_branch
          %314 = sbr.rel (%p312) target = $region36
        $region35: #{tpu_custom_call.1} parent=11 // pred_region
          _
        $region36: #{tpu_custom_call.1} parent=11 // pred_fallthru
          _
        // Predicated region
        $region37: #{tpu_custom_call.1} parent=11 // pred_check
          %p315 = pneg %p193
        $region38: #{tpu_custom_call.1} parent=11 // pred_check_branch
          %317 = sbr.rel (%p315) target = $region40
        $region39: #{tpu_custom_call.1} parent=11 // pred_region
          _
        $region40: #{tpu_custom_call.1} parent=11 // pred_fallthru
          _
        // Predicated region
        $region41: #{tpu_custom_call.1} parent=11 // pred_check
          %p318 = pneg %p214
        $region42: #{tpu_custom_call.1} parent=11 // pred_check_branch
          %320 = sbr.rel (%p318) target = $region44
        $region43: #{tpu_custom_call.1} parent=11 // pred_region
          _
        $region44: #{tpu_custom_call.1} parent=11 // pred_fallthru
          _
        // Predicated region
        $region45: #{tpu_custom_call.1} parent=11 // pred_check
          %p321 = pneg %p235
        $region46: #{tpu_custom_call.1} parent=11 // pred_check_branch
          %323 = sbr.rel (%p321) target = $region48
        $region47: #{tpu_custom_call.1} parent=11 // pred_region
          _
        $region48: #{tpu_custom_call.1} parent=11 // pred_fallthru
          _
        // Predicated region
        $region49: #{tpu_custom_call.1} parent=11 // pred_check
          %p324 = pneg %p256
        $region50: #{tpu_custom_call.1} parent=11 // pred_check_branch
          %326 = sbr.rel (%p324) target = $region52
        $region51: #{tpu_custom_call.1} parent=11 // pred_region
          _
        $region52: #{tpu_custom_call.1} parent=11 // pred_fallthru
          _
      $region12: #{tpu_custom_call.1} parent=5 // pred_fallthru
        _
      %p327 = scmp.lt.s32.totalorder %s20, 2
      // Predicated region
      $region53: #{tpu_custom_call.1} parent=5 // pred_check
        %p328 = pneg %p327
      $region54: #{tpu_custom_call.1} parent=5 // pred_check_branch
        %330 = sbr.rel (%p328) target = $region56
      $region55: #{tpu_custom_call.1} parent=5 // pred_region
        // Predicated region
        $region57: #{tpu_custom_call.1} parent=55 // pred_check
          %p331 = pneg %p40
        $region58: #{tpu_custom_call.1} parent=55 // pred_check_branch
          %333 = sbr.rel (%p331) target = $region60
        $region59: #{tpu_custom_call.1} parent=55 // pred_region
          %p334 = scmp.lt.s32.totalorder %s20, 1
          %s335 = scalar_select %p334, %s20, 1
          %s336 = smul.addr %s335, 2
          %s337 = smul.addr %s336, 4
          %s338 = scalar_lea.vmem %s0, %s337
        $region60: #{tpu_custom_call.1} parent=55 // pred_fallthru
          _
      $region56: #{tpu_custom_call.1} parent=5 // pred_fallthru
        _
      %p339 = scmp.le.s32.totalorder 1, %s20
      %p340 = scmp.lt.s32.totalorder %s20, 3
      %p341 = pnand %p339, %p340
      %p342 = pneg %p341
      // Predicated region
      $region61: #{tpu_custom_call.1} parent=5 // pred_check
        _
      $region62: #{tpu_custom_call.1} parent=5 // pred_check_branch
        %344 = sbr.rel (%p341) target = $region64
      $region63: #{tpu_custom_call.1} parent=5 // pred_region
        %s345 = ssub.s32 %s20, 1
        %p346 = scmp.lt.s32.totalorder %s25, 1
        %s347 = scalar_select %p346, %s25, 1
        %s348 = smul.addr %s347, 2
        %s349 = smul.addr %s348, 4
        %s350 = scalar_lea.vmem %s0, %s349
        %p351 = pneg %p46
        %p352 = pneg %p43
        %p353 = pneg %p67
        %p354 = pneg %p64
        %p355 = pneg %p88
        %p356 = pneg %p85
        %p357 = pneg %p109
        %p358 = pneg %p106
        %p359 = pneg %p130
        %p360 = pneg %p127
        %p361 = pneg %p151
        %p362 = pneg %p148
        %p363 = pneg %p172
        %p364 = pneg %p169
        %p365 = pneg %p193
        %p366 = pneg %p190
        %p367 = pneg %p214
        %p368 = pneg %p211
        %p369 = pneg %p235
        %p370 = pneg %p232
        %p371 = pneg %p256
        %p372 = pneg %p253
        %p373 = pneg %p282
        %p374 = pneg %p279
        %s375 = sand.u32 %s269, 1
        %s376 = scalar_lea.sflag [#allocation5], %s375
        %s377 = sand.u32 %s269, 1
        %s378 = smul.addr %s377, 16
        %s379 = scalar_lea.vmem [#allocation4], %s378
        %p380 = scmp.lt.s32.totalorder %s25, 1
        %s381 = scalar_select %p380, %s25, 1
        %s382 = smul.addr %s381, 2
        %s383 = smul.addr %s382, 4
        %s384 = scalar_lea.vmem %s0, %s383
        %v386 = vld [vmem:[%s1] ss:$2 sm:$0x3]
        %s387 = scalar_lea.vmem %s1, 1
        %v388 = vld [vmem:[%s387] ss:$2 sm:$0x3]
        %vm389 = vcmask 138240
        %390 = vst.msk [vmem:[#allocation2] sm:$0xff] %vm389, 0.0
        %vm391 = vcmask 277640
        %392 = vst.msk [vmem:[#allocation2 + $0x10] sm:$0xff] %vm391, 0.0
        %v393 = vld [vmem:[%s384] sm:$0xff]
        %v395 = vcombine.high %v393, %v393
        %396 = vrot.lane.b32.xlu0 %v393, 17
        %v397 = vpop.permute.xlu0 %396
        %398 = vrot.lane.b32.xlu0 %v395, 17
        %v399 = vpop.permute.xlu0 %398
        %v400 = vsel %vm389, %v397, %v399
        %vm404 = vcmask 1043592
        %405 = vst.msk [vmem:[#allocation2] sm:$0xf] %vm404, %v397
        %406 = vst [vmem:[#allocation2 + $0x8] sm:$0xf] %v400
        %vm407 = vcmask 134144
        %408 = vst.msk [vmem:[#allocation2 + $0x10] sm:$0xf] %vm407, %v399
        %v409 = vld [vmem:[#allocation2] sm:$0xf]
        %v410 = vld [vmem:[#allocation2 + $0x8] sm:$0xf]
        %v412 = vlaneseq
        %v413 = vshrl.u32 %v412, 7
        %v414 = vsub.s32 0, %v413
        %v415 = vrot.slane %v386, %v414
        %v416 = vlaneseq
        %v417 = vshrl.u32 %v416, 7
        %v418 = vsub.s32 1, %v417
        %v419 = vrot.slane %v386, %v418
        %v422 = vmul.f32 %v409, %v415
        %v423 = vmul.f32 %v410, %v419
        %vm424 = vcmask 1043456
        %v425 = vsel %vm424, %v422, 0.0
        %v426 = vsel %vm424, %v423, 0.0
        %v427 = vpack.c.bf16 %v425, %v425
        %v428 = vpack.c.bf16 %v426, %v426
        %v431 = vunpack.c.l.b16 %v427
        %v432 = vunpack.c.l.b16 %v428
        %v433 = vpack.c.b16 %v432, %v431
        %435 = vst [vmem:[#allocation3] sm:$0xff] %v433
        %v436 = vld [vmem:[#allocation2] sm:$0xf]
        %v437 = vld [vmem:[#allocation2 + $0x8] sm:$0xf]
        %v438 = vld [vmem:[#allocation2 + $0x10] sm:$0xf]
        %v439 = vsel %vm424, %v436, 0.0
        %v440 = vsel %vm424, %v437, 0.0
        %v441 = vsel %vm424, %v438, 0.0
        %v442 = vpack.c.bf16 %v439, %v439
        %v443 = vpack.c.bf16 %v440, %v440
        %v444 = vpack.c.bf16 %v441, %v441
        %v448 = vunpack.c.l.b16 %v442
        %v449 = vunpack.c.l.b16 %v443
        %v450 = vunpack.c.l.b16 %v444
        %v451 = vpack.c.b16 %v449, %v448
        %v452 = vpack.c.b16 %v450, %v450
        %453 = vrot.lane.b32.xlu0 %v451, 127
        %v454 = vpop.permute.xlu0 %453
        %455 = vrot.lane.b32.xlu0 %v452, 127
        %v456 = vpop.permute.xlu0 %455
        %v457 = vrot.slane %v454, 4
        %v458 = vrot.slane %v456, 4
        %vm459 = vcmask 1043456
        %v460 = vsel %vm459, %v457, %v458
        %vm461 = vcmask 1039360
        %v462 = vsel %vm461, %v454, %v460
        %464 = vst [vmem:[#allocation3 + $0x8] sm:$0xff] %v462
        %v465 = vld [vmem:[#allocation2] sm:$0xf]
        %v466 = vld [vmem:[#allocation2 + $0x8] sm:$0xf]
        %v467 = vld [vmem:[#allocation2 + $0x10] sm:$0xf]
        %v469 = vlaneseq
        %v470 = vshrl.u32 %v469, 7
        %v471 = vsub.s32 0, %v470
        %v472 = vrot.slane %v388, %v471
        %v473 = vlaneseq
        %v474 = vshrl.u32 %v473, 7
        %v475 = vsub.s32 1, %v474
        %v476 = vrot.slane %v388, %v475
        %477 = vrot.lane.b32.xlu0 %v472, 2
        %v478 = vpop.permute.xlu0 %477
        %479 = vrot.lane.b32.xlu0 %v476, 2
        %v480 = vpop.permute.xlu0 %479
        %vm481 = vcmask 15360
        %v482 = vsel %vm481, %v478, %v480
        %v486 = vmul.f32 %v465, %v478
        %v487 = vmul.f32 %v466, %v482
        %v488 = vmul.f32 %v467, %v480
        %v489 = vsel %vm424, %v486, 0.0
        %v490 = vsel %vm424, %v487, 0.0
        %v491 = vsel %vm424, %v488, 0.0
        %v492 = vpack.c.bf16 %v489, %v489
        %v493 = vpack.c.bf16 %v490, %v490
        %v494 = vpack.c.bf16 %v491, %v491
        %v498 = vunpack.c.l.b16 %v492
        %v499 = vunpack.c.l.b16 %v493
        %v500 = vunpack.c.l.b16 %v494
        %v501 = vpack.c.b16 %v499, %v498
        %v502 = vpack.c.b16 %v500, %v500
        %503 = vrot.lane.b32.xlu0 %v501, 126
        %v504 = vpop.permute.xlu0 %503
        %505 = vrot.lane.b32.xlu0 %v502, 126
        %v506 = vpop.permute.xlu0 %505
        %v507 = vrot.slane %v504, 4
        %v508 = vrot.slane %v506, 4
        %v509 = vsel %vm459, %v507, %v508
        %vm510 = vcmask 1031168
        %v511 = vsel %vm510, %v504, %v509
        %513 = vst [vmem:[#allocation3 + $0x10] sm:$0xff] %v511
        %v514 = vld [vmem:[#allocation2] sm:$0xf]
        %v515 = vld [vmem:[#allocation2 + $0x8] sm:$0xf]
        %v516 = vld [vmem:[#allocation2 + $0x10] sm:$0xf]
        %517 = vrot.lane.b32.xlu0 %v415, 16
        %v518 = vpop.permute.xlu0 %517
        %519 = vrot.lane.b32.xlu0 %v419, 16
        %v520 = vpop.permute.xlu0 %519
        %vm521 = vcmask 130048
        %v522 = vsel %vm521, %v518, %v520
        %v526 = vmul.f32 %v514, %v518
        %v527 = vmul.f32 %v515, %v522
        %v528 = vmul.f32 %v516, %v520
        %v529 = vsel %vm424, %v526, 0.0
        %v530 = vsel %vm424, %v527, 0.0
        %v531 = vsel %vm424, %v528, 0.0
        %v532 = vpack.c.bf16 %v529, %v529
        %v533 = vpack.c.bf16 %v530, %v530
        %v534 = vpack.c.bf16 %v531, %v531
        %v538 = vunpack.c.l.b16 %v532
        %v539 = vunpack.c.l.b16 %v533
        %v540 = vunpack.c.l.b16 %v534
        %v541 = vpack.c.b16 %v539, %v538
        %v542 = vpack.c.b16 %v540, %v540
        %543 = vrot.lane.b32.xlu0 %v541, 112
        %v544 = vpop.permute.xlu0 %543
        %545 = vrot.lane.b32.xlu0 %v542, 112
        %v546 = vpop.permute.xlu0 %545
        %v547 = vrot.slane %v544, 4
        %v548 = vrot.slane %v546, 4
        %v549 = vsel %vm459, %v547, %v548
        %vm550 = vcmask 916480
        %v551 = vsel %vm550, %v544, %v549
        %553 = vst [vmem:[#allocation3 + $0x18] sm:$0xff] %v551
        %v554 = vld [vmem:[#allocation2] sm:$0xf]
        %v555 = vld [vmem:[#allocation2 + $0x8] sm:$0xf]
        %v556 = vld [vmem:[#allocation2 + $0x10] sm:$0xf]
        %v557 = vsel %vm424, %v554, 0.0
        %v558 = vsel %vm424, %v555, 0.0
        %v559 = vsel %vm424, %v556, 0.0
        %v560 = vpack.c.bf16 %v557, %v557
        %v561 = vpack.c.bf16 %v558, %v558
        %v562 = vpack.c.bf16 %v559, %v559
        %v566 = vunpack.c.l.b16 %v560
        %v567 = vunpack.c.l.b16 %v561
        %v568 = vunpack.c.l.b16 %v562
        %v569 = vpack.c.b16 %v567, %v566
        %v570 = vpack.c.b16 %v568, %v568
        %571 = vrot.lane.b32.xlu0 %v569, 111
        %v572 = vpop.permute.xlu0 %571
        %573 = vrot.lane.b32.xlu0 %v570, 111
        %v574 = vpop.permute.xlu0 %573
        %v575 = vrot.slane %v572, 4
        %v576 = vrot.slane %v574, 4
        %v577 = vsel %vm459, %v575, %v576
        %vm578 = vcmask 908288
        %v579 = vsel %vm578, %v572, %v577
        %581 = vst [vmem:[#allocation3 + $0x20] sm:$0xff] %v579
        %v582 = vld [vmem:[#allocation2] sm:$0xf]
        %v583 = vld [vmem:[#allocation2 + $0x8] sm:$0xf]
        %v584 = vld [vmem:[#allocation2 + $0x10] sm:$0xf]
        %585 = vrot.lane.b32.xlu0 %v472, 18
        %v586 = vpop.permute.xlu0 %585
        %587 = vrot.lane.b32.xlu0 %v476, 18
        %v588 = vpop.permute.xlu0 %587
        %vm589 = vcmask 146432
        %v590 = vsel %vm589, %v586, %v588
        %v594 = vmul.f32 %v582, %v586
        %v595 = vmul.f32 %v583, %v590
        %v596 = vmul.f32 %v584, %v588
        %v597 = vsel %vm424, %v594, 0.0
        %v598 = vsel %vm424, %v595, 0.0
        %v599 = vsel %vm424, %v596, 0.0
        %v600 = vpack.c.bf16 %v597, %v597
        %v601 = vpack.c.bf16 %v598, %v598
        %v602 = vpack.c.bf16 %v599, %v599
        %v606 = vunpack.c.l.b16 %v600
        %v607 = vunpack.c.l.b16 %v601
        %v608 = vunpack.c.l.b16 %v602
        %v609 = vpack.c.b16 %v607, %v606
        %v610 = vpack.c.b16 %v608, %v608
        %611 = vrot.lane.b32.xlu0 %v609, 110
        %v612 = vpop.permute.xlu0 %611
        %613 = vrot.lane.b32.xlu0 %v610, 110
        %v614 = vpop.permute.xlu0 %613
        %v615 = vrot.slane %v612, 4
        %v616 = vrot.slane %v614, 4
        %v617 = vsel %vm459, %v615, %v616
        %vm618 = vcmask 900096
        %v619 = vsel %vm618, %v612, %v617
        %621 = vst [vmem:[#allocation3 + $0x28] sm:$0xff] %v619
        %v622 = vld [vmem:[#allocation2] sm:$0xf]
        %v623 = vld [vmem:[#allocation2 + $0x8] sm:$0xf]
        %v624 = vld [vmem:[#allocation2 + $0x10] sm:$0xf]
        %625 = vrot.lane.b32.xlu0 %v415, 32
        %v626 = vpop.permute.xlu0 %625
        %627 = vrot.lane.b32.xlu0 %v419, 32
        %v628 = vpop.permute.xlu0 %627
        %vm629 = vcmask 261120
        %v630 = vsel %vm629, %v626, %v628
        %v634 = vmul.f32 %v622, %v626
        %v635 = vmul.f32 %v623, %v630
        %v636 = vmul.f32 %v624, %v628
        %v637 = vsel %vm424, %v634, 0.0
        %v638 = vsel %vm424, %v635, 0.0
        %v639 = vsel %vm424, %v636, 0.0
        %v640 = vpack.c.bf16 %v637, %v637
        %v641 = vpack.c.bf16 %v638, %v638
        %v642 = vpack.c.bf16 %v639, %v639
        %v646 = vunpack.c.l.b16 %v640
        %v647 = vunpack.c.l.b16 %v641
        %v648 = vunpack.c.l.b16 %v642
        %v649 = vpack.c.b16 %v647, %v646
        %v650 = vpack.c.b16 %v648, %v648
        %651 = vrot.lane.b32.xlu0 %v649, 96
        %v652 = vpop.permute.xlu0 %651
        %653 = vrot.lane.b32.xlu0 %v650, 96
        %v654 = vpop.permute.xlu0 %653
        %v655 = vrot.slane %v652, 4
        %v656 = vrot.slane %v654, 4
        %v657 = vsel %vm459, %v655, %v656
        %vm658 = vcmask 785408
        %v659 = vsel %vm658, %v652, %v657
        %661 = vst [vmem:[#allocation3 + $0x30] sm:$0xff] %v659
        %v662 = vld [vmem:[#allocation2] sm:$0xf]
        %v663 = vld [vmem:[#allocation2 + $0x8] sm:$0xf]
        %v664 = vld [vmem:[#allocation2 + $0x10] sm:$0xf]
        %v665 = vsel %vm424, %v662, 0.0
        %v666 = vsel %vm424, %v663, 0.0
        %v667 = vsel %vm424, %v664, 0.0
        %v668 = vpack.c.bf16 %v665, %v665
        %v669 = vpack.c.bf16 %v666, %v666
        %v670 = vpack.c.bf16 %v667, %v667
        %v674 = vunpack.c.l.b16 %v668
        %v675 = vunpack.c.l.b16 %v669
        %v676 = vunpack.c.l.b16 %v670
        %v677 = vpack.c.b16 %v675, %v674
        %v678 = vpack.c.b16 %v676, %v676
        %679 = vrot.lane.b32.xlu0 %v677, 95
        %v680 = vpop.permute.xlu0 %679
        %681 = vrot.lane.b32.xlu0 %v678, 95
        %v682 = vpop.permute.xlu0 %681
        %v683 = vrot.slane %v680, 4
        %v684 = vrot.slane %v682, 4
        %v685 = vsel %vm459, %v683, %v684
        %vm686 = vcmask 777216
        %v687 = vsel %vm686, %v680, %v685
        %689 = vst [vmem:[#allocation3 + $0x38] sm:$0xff] %v687
        %v690 = vld [vmem:[#allocation2] sm:$0xf]
        %v691 = vld [vmem:[#allocation2 + $0x8] sm:$0xf]
        %v692 = vld [vmem:[#allocation2 + $0x10] sm:$0xf]
        %693 = vrot.lane.b32.xlu0 %v472, 34
        %v694 = vpop.permute.xlu0 %693
        %695 = vrot.lane.b32.xlu0 %v476, 34
        %v696 = vpop.permute.xlu0 %695
        %vm697 = vcmask 277504
        %v698 = vsel %vm697, %v694, %v696
        %v702 = vmul.f32 %v690, %v694
        %v703 = vmul.f32 %v691, %v698
        %v704 = vmul.f32 %v692, %v696
        %v705 = vsel %vm424, %v702, 0.0
        %v706 = vsel %vm424, %v703, 0.0
        %v707 = vsel %vm424, %v704, 0.0
        %v708 = vpack.c.bf16 %v705, %v705
        %v709 = vpack.c.bf16 %v706, %v706
        %v710 = vpack.c.bf16 %v707, %v707
        %v714 = vunpack.c.l.b16 %v708
        %v715 = vunpack.c.l.b16 %v709
        %v716 = vunpack.c.l.b16 %v710
        %v717 = vpack.c.b16 %v715, %v714
        %v718 = vpack.c.b16 %v716, %v716
        %719 = vrot.lane.b32.xlu0 %v717, 94
        %v720 = vpop.permute.xlu0 %719
        %721 = vrot.lane.b32.xlu0 %v718, 94
        %v722 = vpop.permute.xlu0 %721
        %v723 = vrot.slane %v720, 4
        %v724 = vrot.slane %v722, 4
        %v725 = vsel %vm459, %v723, %v724
        %vm726 = vcmask 769024
        %v727 = vsel %vm726, %v720, %v725
        %729 = vst [vmem:[#allocation3 + $0x40] sm:$0xff] %v727
        %v730 = vld [vmem:[%s2] sm:$0xf]
        %v731 = vld [vmem:[#allocation3] sm:$0xff]
        %v732 = vld [vmem:[#allocation3 + $0x8] sm:$0xff]
        %v733 = vld [vmem:[#allocation3 + $0x10] sm:$0xff]
        %v734 = vld [vmem:[#allocation3 + $0x18] sm:$0xff]
        %v735 = vld [vmem:[#allocation3 + $0x20] sm:$0xff]
        %v736 = vld [vmem:[#allocation3 + $0x28] sm:$0xff]
        %v737 = vld [vmem:[#allocation3 + $0x30] sm:$0xff]
        %v738 = vld [vmem:[#allocation3 + $0x38] sm:$0xff]
        %v739 = vld [vmem:[#allocation3 + $0x40] sm:$0xff]
        %v749 = vunpack.c.l.b16 %v731
        %v750 = vunpack.c.h.b16 %v731
        %v751 = vunpack.c.l.b16 %v732
        %v752 = vunpack.c.h.b16 %v732
        %v753 = vunpack.c.l.b16 %v733
        %v754 = vunpack.c.h.b16 %v733
        %v755 = vunpack.c.l.b16 %v734
        %v756 = vunpack.c.h.b16 %v734
        %v757 = vunpack.c.l.b16 %v735
        %v758 = vunpack.c.h.b16 %v735
        %v759 = vunpack.c.l.b16 %v736
        %v760 = vunpack.c.h.b16 %v736
        %v761 = vunpack.c.l.b16 %v737
        %v762 = vunpack.c.h.b16 %v737
        %v763 = vunpack.c.l.b16 %v738
        %v764 = vunpack.c.h.b16 %v738
        %v765 = vunpack.c.l.b16 %v739
        %v766 = vunpack.c.h.b16 %v739
        %v767 = vpack.c.b16 %v751, %v749
        %v768 = vpack.c.b16 %v752, %v750
        %v769 = vpack.c.b16 %v755, %v753
        %v770 = vpack.c.b16 %v756, %v754
        %v771 = vpack.c.b16 %v759, %v757
        %v772 = vpack.c.b16 %v760, %v758
        %v773 = vpack.c.b16 %v763, %v761
        %v774 = vpack.c.b16 %v764, %v762
        %v775 = vpack.c.b16 %v765, %v765
        %v776 = vpack.c.b16 %v766, %v766
        %vm785 = vcmask 588800
        %v787 = vsel %vm785, %v730, 0
        %v790 = vsel %vm424, %v775, 0
        %v793 = vsel %vm424, %v776, 0
        %795 = vmatprep.subr.bf16.mxu0 0
        %796 = vmatpush1.bf16.msra.mxu0 0
        %797 = vmatprep.subr.bf16.mxu0 0
        %798 = vmatpush1.bf16.msra.mxu0 0
        %799 = vmatprep.subr.bf16.mxu0 0
        %800 = vmatpush1.bf16.msra.mxu0 0
        %801 = vmatprep.subr.bf16.mxu0 %v793
        %802 = vmatpush1.bf16.msra.mxu0 %v790
        %803 = vmatprep.subr.bf16.mxu0 %v774
        %804 = vmatpush1.bf16.msra.mxu0 %v773
        %805 = vmatprep.subr.bf16.mxu0 %v772
        %806 = vmatpush1.bf16.msra.mxu0 %v771
        %807 = vmatprep.subr.bf16.mxu0 %v770
        %808 = vmatpush1.bf16.msra.mxu0 %v769
        %809 = vmatprep.subr.bf16.mxu0 %v768
        %810 = vmatpush1.bf16.msra.mxu0 %v767
        %811 = vmatprep.subr.bf16.mxu0 0
        %812 = vmatpush2.bf16.msra.mxu0 0
        %813 = vmatprep.subr.bf16.mxu0 0
        %814 = vmatpush2.bf16.msra.mxu0 0
        %815 = vmatprep.subr.bf16.mxu0 0
        %816 = vmatpush2.bf16.msra.mxu0 0
        %817 = vmatprep.subr.bf16.mxu0 0
        %818 = vmatpush2.bf16.msra.mxu0 0
        %819 = vmatprep.subr.bf16.mxu0 0
        %820 = vmatpush2.bf16.msra.mxu0 0
        %821 = vmatprep.subr.bf16.mxu0 0
        %822 = vmatpush2.bf16.msra.mxu0 0
        %823 = vmatprep.subr.bf16.mxu0 0
        %824 = vmatpush2.bf16.msra.mxu0 0
        %825 = vmatprep.subr.bf16.mxu0 0
        %826 = vmatpush2.bf16.msra.mxu0 0
        %827 = vmatprep.mubr.bf16.mxu0 0
        %828 = vmatmul.mubr.bf16.gmra.mxu0 %v787
        %v829 = vpop.f32.mrf.mxu0
        %v830 = vadd.f32 0.0, %v829
        %v831 = vpop.f32.mrf.mxu0
        %v832 = vadd.f32 0.0, %v831
        %v833 = vpop.f32.mrf.mxu0
        %v834 = vpop.f32.mrf.mxu0
        %835 = vdwg.mxu0
        %v836 = vld [vmem:[%s3] sm:$0xff]
        %838 = vset.pattern.permute.xlu0 0
        %839 = vperm.xlu0 %838, %v836
        %v840 = vpop.permute.xlu0 %839
        %v842 = vmul.f32 %v830, %v840
        %v843 = vmul.f32 %v832, %v840
        %v844 = vld [vmem:[%s4] sm:$0xff]
        %846 = vset.pattern.permute.xlu0 0
        %847 = vperm.xlu0 %846, %v844
        %v848 = vpop.permute.xlu0 %847
        %v850 = vadd.f32 %v842, %v848
        %v851 = vadd.f32 %v843, %v848
        %v852 = vmax.f32 %v850, 0.0
        %v853 = vmax.f32 %v851, 0.0
        %856 = vrot.lane.b32.xlu0 %v852, 17
        %v857 = vpop.permute.xlu0 %856
        %858 = vrot.lane.b32.xlu0 %v853, 17
        %v859 = vpop.permute.xlu0 %858
        %v860 = vsel %vm389, %v857, %v859
        %vm864 = vcmask 1047688
        %865 = vst.msk [vmem:[#allocation2] sm:$0xff] %vm864, %v857
        %866 = vst [vmem:[#allocation2 + $0x8] sm:$0xff] %v860
        %867 = vst.msk [vmem:[#allocation2 + $0x10] sm:$0xff] %vm389, %v859
        %v868 = vld [vmem:[#allocation2] sm:$0xff]
        %v869 = vld [vmem:[#allocation2 + $0x8] sm:$0xff]
        %v870 = vmul.f32 %v868, %v415
        %v871 = vmul.f32 %v869, %v419
        %v872 = vpack.c.bf16 %v870, %v870
        %v873 = vpack.c.bf16 %v871, %v871
        %v876 = vunpack.c.l.b16 %v872
        %v877 = vunpack.c.l.b16 %v873
        %v878 = vpack.c.b16 %v877, %v876
        %880 = vst [vmem:[#allocation3] sm:$0xff] %v878
        %v881 = vld [vmem:[#allocation2] sm:$0xff]
        %v882 = vld [vmem:[#allocation2 + $0x8] sm:$0xff]
        %v883 = vld [vmem:[#allocation2 + $0x10] sm:$0xff]
        %v884 = vpack.c.bf16 %v881, %v881
        %v885 = vpack.c.bf16 %v882, %v882
        %v886 = vpack.c.bf16 %v883, %v883
        %v890 = vunpack.c.l.b16 %v884
        %v891 = vunpack.c.l.b16 %v885
        %v892 = vunpack.c.l.b16 %v886
        %v893 = vpack.c.b16 %v891, %v890
        %v894 = vpack.c.b16 %v892, %v892
        %895 = vrot.lane.b32.xlu0 %v893, 127
        %v896 = vpop.permute.xlu0 %895
        %897 = vrot.lane.b32.xlu0 %v894, 127
        %v898 = vpop.permute.xlu0 %897
        %v899 = vrot.slane %v896, 4
        %v900 = vrot.slane %v898, 4
        %v901 = vsel %vm459, %v899, %v900
        %v902 = vsel %vm461, %v896, %v901
        %904 = vst [vmem:[#allocation3 + $0x8] sm:$0xff] %v902
        %v905 = vld [vmem:[#allocation2] sm:$0xff]
        %v906 = vld [vmem:[#allocation2 + $0x8] sm:$0xff]
        %v907 = vld [vmem:[#allocation2 + $0x10] sm:$0xff]
        %v908 = vmul.f32 %v905, %v478
        %v909 = vmul.f32 %v906, %v482
        %v910 = vmul.f32 %v907, %v480
        %v911 = vpack.c.bf16 %v908, %v908
        %v912 = vpack.c.bf16 %v909, %v909
        %v913 = vpack.c.bf16 %v910, %v910
        %v917 = vunpack.c.l.b16 %v911
        %v918 = vunpack.c.l.b16 %v912
        %v919 = vunpack.c.l.b16 %v913
        %v920 = vpack.c.b16 %v918, %v917
        %v921 = vpack.c.b16 %v919, %v919
        %922 = vrot.lane.b32.xlu0 %v920, 126
        %v923 = vpop.permute.xlu0 %922
        %924 = vrot.lane.b32.xlu0 %v921, 126
        %v925 = vpop.permute.xlu0 %924
        %v926 = vrot.slane %v923, 4
        %v927 = vrot.slane %v925, 4
        %v928 = vsel %vm459, %v926, %v927
        %v929 = vsel %vm510, %v923, %v928
        %931 = vst [vmem:[#allocation3 + $0x10] sm:$0xff] %v929
        %v932 = vld [vmem:[#allocation2] sm:$0xff]
        %v933 = vld [vmem:[#allocation2 + $0x8] sm:$0xff]
        %v934 = vld [vmem:[#allocation2 + $0x10] sm:$0xff]
        %v935 = vmul.f32 %v932, %v518
        %v936 = vmul.f32 %v933, %v522
        %v937 = vmul.f32 %v934, %v520
        %v938 = vpack.c.bf16 %v935, %v935
        %v939 = vpack.c.bf16 %v936, %v936
        %v940 = vpack.c.bf16 %v937, %v937
        %v944 = vunpack.c.l.b16 %v938
        %v945 = vunpack.c.l.b16 %v939
        %v946 = vunpack.c.l.b16 %v940
        %v947 = vpack.c.b16 %v945, %v944
        %v948 = vpack.c.b16 %v946, %v946
        %949 = vrot.lane.b32.xlu0 %v947, 112
        %v950 = vpop.permute.xlu0 %949
        %951 = vrot.lane.b32.xlu0 %v948, 112
        %v952 = vpop.permute.xlu0 %951
        %v953 = vrot.slane %v950, 4
        %v954 = vrot.slane %v952, 4
        %v955 = vsel %vm459, %v953, %v954
        %v956 = vsel %vm550, %v950, %v955
        %958 = vst [vmem:[#allocation3 + $0x18] sm:$0xff] %v956
        %v959 = vld [vmem:[#allocation2] sm:$0xff]
        %v960 = vld [vmem:[#allocation2 + $0x8] sm:$0xff]
        %v961 = vld [vmem:[#allocation2 + $0x10] sm:$0xff]
        %v962 = vpack.c.bf16 %v959, %v959
        %v963 = vpack.c.bf16 %v960, %v960
        %v964 = vpack.c.bf16 %v961, %v961
        %v968 = vunpack.c.l.b16 %v962
        %v969 = vunpack.c.l.b16 %v963
        %v970 = vunpack.c.l.b16 %v964
        %v971 = vpack.c.b16 %v969, %v968
        %v972 = vpack.c.b16 %v970, %v970
        %973 = vrot.lane.b32.xlu0 %v971, 111
        %v974 = vpop.permute.xlu0 %973
        %975 = vrot.lane.b32.xlu0 %v972, 111
        %v976 = vpop.permute.xlu0 %975
        %v977 = vrot.slane %v974, 4
        %v978 = vrot.slane %v976, 4
        %v979 = vsel %vm459, %v977, %v978
        %v980 = vsel %vm578, %v974, %v979
        %982 = vst [vmem:[#allocation3 + $0x20] sm:$0xff] %v980
        %v983 = vld [vmem:[#allocation2] sm:$0xff]
        %v984 = vld [vmem:[#allocation2 + $0x8] sm:$0xff]
        %v985 = vld [vmem:[#allocation2 + $0x10] sm:$0xff]
        %v986 = vmul.f32 %v983, %v586
        %v987 = vmul.f32 %v984, %v590
        %v988 = vmul.f32 %v985, %v588
        %v989 = vpack.c.bf16 %v986, %v986
        %v990 = vpack.c.bf16 %v987, %v987
        %v991 = vpack.c.bf16 %v988, %v988
        %v995 = vunpack.c.l.b16 %v989
        %v996 = vunpack.c.l.b16 %v990
        %v997 = vunpack.c.l.b16 %v991
        %v998 = vpack.c.b16 %v996, %v995
        %v999 = vpack.c.b16 %v997, %v997
        %1000 = vrot.lane.b32.xlu0 %v998, 110
        %v1001 = vpop.permute.xlu0 %1000
        %1002 = vrot.lane.b32.xlu0 %v999, 110
        %v1003 = vpop.permute.xlu0 %1002
        %v1004 = vrot.slane %v1001, 4
        %v1005 = vrot.slane %v1003, 4
        %v1006 = vsel %vm459, %v1004, %v1005
        %v1007 = vsel %vm618, %v1001, %v1006
        %1009 = vst [vmem:[#allocation3 + $0x28] sm:$0xff] %v1007
        %v1010 = vld [vmem:[#allocation2] sm:$0xff]
        %v1011 = vld [vmem:[#allocation2 + $0x8] sm:$0xff]
        %v1012 = vld [vmem:[#allocation2 + $0x10] sm:$0xff]
        %v1013 = vmul.f32 %v1010, %v626
        %v1014 = vmul.f32 %v1011, %v630
        %v1015 = vmul.f32 %v1012, %v628
        %v1016 = vpack.c.bf16 %v1013, %v1013
        %v1017 = vpack.c.bf16 %v1014, %v1014
        %v1018 = vpack.c.bf16 %v1015, %v1015
        %v1022 = vunpack.c.l.b16 %v1016
        %v1023 = vunpack.c.l.b16 %v1017
        %v1024 = vunpack.c.l.b16 %v1018
        %v1025 = vpack.c.b16 %v1023, %v1022
        %v1026 = vpack.c.b16 %v1024, %v1024
        %1027 = vrot.lane.b32.xlu0 %v1025, 96
        %v1028 = vpop.permute.xlu0 %1027
        %1029 = vrot.lane.b32.xlu0 %v1026, 96
        %v1030 = vpop.permute.xlu0 %1029
        %v1031 = vrot.slane %v1028, 4
        %v1032 = vrot.slane %v1030, 4
        %v1033 = vsel %vm459, %v1031, %v1032
        %v1034 = vsel %vm658, %v1028, %v1033
        %1036 = vst [vmem:[#allocation3 + $0x30] sm:$0xff] %v1034
        %v1037 = vld [vmem:[#allocation2] sm:$0xff]
        %v1038 = vld [vmem:[#allocation2 + $0x8] sm:$0xff]
        %v1039 = vld [vmem:[#allocation2 + $0x10] sm:$0xff]
        %v1040 = vpack.c.bf16 %v1037, %v1037
        %v1041 = vpack.c.bf16 %v1038, %v1038
        %v1042 = vpack.c.bf16 %v1039, %v1039
        %v1046 = vunpack.c.l.b16 %v1040
        %v1047 = vunpack.c.l.b16 %v1041
        %v1048 = vunpack.c.l.b16 %v1042
        %v1049 = vpack.c.b16 %v1047, %v1046
        %v1050 = vpack.c.b16 %v1048, %v1048
        %1051 = vrot.lane.b32.xlu0 %v1049, 95
        %v1052 = vpop.permute.xlu0 %1051
        %1053 = vrot.lane.b32.xlu0 %v1050, 95
        %v1054 = vpop.permute.xlu0 %1053
        %v1055 = vrot.slane %v1052, 4
        %v1056 = vrot.slane %v1054, 4
        %v1057 = vsel %vm459, %v1055, %v1056
        %v1058 = vsel %vm686, %v1052, %v1057
        %1060 = vst [vmem:[#allocation3 + $0x38] sm:$0xff] %v1058
        %v1061 = vld [vmem:[#allocation2] sm:$0xff]
        %v1062 = vld [vmem:[#allocation2 + $0x8] sm:$0xff]
        %v1063 = vld [vmem:[#allocation2 + $0x10] sm:$0xff]
        %v1064 = vmul.f32 %v1061, %v694
        %v1065 = vmul.f32 %v1062, %v698
        %v1066 = vmul.f32 %v1063, %v696
        %v1067 = vpack.c.bf16 %v1064, %v1064
        %v1068 = vpack.c.bf16 %v1065, %v1065
        %v1069 = vpack.c.bf16 %v1066, %v1066
        %v1073 = vunpack.c.l.b16 %v1067
        %v1074 = vunpack.c.l.b16 %v1068
        %v1075 = vunpack.c.l.b16 %v1069
        %v1076 = vpack.c.b16 %v1074, %v1073
        %v1077 = vpack.c.b16 %v1075, %v1075
        %1078 = vrot.lane.b32.xlu0 %v1076, 94
        %v1079 = vpop.permute.xlu0 %1078
        %1080 = vrot.lane.b32.xlu0 %v1077, 94
        %v1081 = vpop.permute.xlu0 %1080
        %v1082 = vrot.slane %v1079, 4
        %v1083 = vrot.slane %v1081, 4
        %v1084 = vsel %vm459, %v1082, %v1083
        %v1085 = vsel %vm726, %v1079, %v1084
        %1087 = vst [vmem:[#allocation3 + $0x40] sm:$0xff] %v1085
        %v1088 = vld [vmem:[%s5] sm:$0xf]
        %v1089 = vld [vmem:[#allocation3] sm:$0xff]
        %v1090 = vld [vmem:[#allocation3 + $0x8] sm:$0xff]
        %v1091 = vld [vmem:[#allocation3 + $0x10] sm:$0xff]
        %v1092 = vld [vmem:[#allocation3 + $0x18] sm:$0xff]
        %v1093 = vld [vmem:[#allocation3 + $0x20] sm:$0xff]
        %v1094 = vld [vmem:[#allocation3 + $0x28] sm:$0xff]
        %v1095 = vld [vmem:[#allocation3 + $0x30] sm:$0xff]
        %v1096 = vld [vmem:[#allocation3 + $0x38] sm:$0xff]
        %v1097 = vld [vmem:[#allocation3 + $0x40] sm:$0xff]
        %v1107 = vunpack.c.l.b16 %v1089
        %v1108 = vunpack.c.h.b16 %v1089
        %v1109 = vunpack.c.l.b16 %v1090
        %v1110 = vunpack.c.h.b16 %v1090
        %v1111 = vunpack.c.l.b16 %v1091
        %v1112 = vunpack.c.h.b16 %v1091
        %v1113 = vunpack.c.l.b16 %v1092
        %v1114 = vunpack.c.h.b16 %v1092
        %v1115 = vunpack.c.l.b16 %v1093
        %v1116 = vunpack.c.h.b16 %v1093
        %v1117 = vunpack.c.l.b16 %v1094
        %v1118 = vunpack.c.h.b16 %v1094
        %v1119 = vunpack.c.l.b16 %v1095
        %v1120 = vunpack.c.h.b16 %v1095
        %v1121 = vunpack.c.l.b16 %v1096
        %v1122 = vunpack.c.h.b16 %v1096
        %v1123 = vunpack.c.l.b16 %v1097
        %v1124 = vunpack.c.h.b16 %v1097
        %v1125 = vpack.c.b16 %v1109, %v1107
        %v1126 = vpack.c.b16 %v1110, %v1108
        %v1127 = vpack.c.b16 %v1113, %v1111
        %v1128 = vpack.c.b16 %v1114, %v1112
        %v1129 = vpack.c.b16 %v1117, %v1115
        %v1130 = vpack.c.b16 %v1118, %v1116
        %v1131 = vpack.c.b16 %v1121, %v1119
        %v1132 = vpack.c.b16 %v1122, %v1120
        %v1133 = vpack.c.b16 %v1123, %v1123
        %v1134 = vpack.c.b16 %v1124, %v1124
        %v1144 = vsel %vm785, %v1088, 0
        %v1147 = vsel %vm424, %v1133, 0
        %v1150 = vsel %vm424, %v1134, 0
        %1152 = vmatprep.subr.bf16.mxu0 0
        %1153 = vmatpush1.bf16.msra.mxu0 0
        %1154 = vmatprep.subr.bf16.mxu0 0
        %1155 = vmatpush1.bf16.msra.mxu0 0
        %1156 = vmatprep.subr.bf16.mxu0 0
        %1157 = vmatpush1.bf16.msra.mxu0 0
        %1158 = vmatprep.subr.bf16.mxu0 %v1150
        %1159 = vmatpush1.bf16.msra.mxu0 %v1147
        %1160 = vmatprep.subr.bf16.mxu0 %v1132
        %1161 = vmatpush1.bf16.msra.mxu0 %v1131
        %1162 = vmatprep.subr.bf16.mxu0 %v1130
        %1163 = vmatpush1.bf16.msra.mxu0 %v1129
        %1164 = vmatprep.subr.bf16.mxu0 %v1128
        %1165 = vmatpush1.bf16.msra.mxu0 %v1127
        %1166 = vmatprep.subr.bf16.mxu0 %v1126
        %1167 = vmatpush1.bf16.msra.mxu0 %v1125
        %1168 = vmatprep.subr.bf16.mxu0 0
        %1169 = vmatpush2.bf16.msra.mxu0 0
        %1170 = vmatprep.subr.bf16.mxu0 0
        %1171 = vmatpush2.bf16.msra.mxu0 0
        %1172 = vmatprep.subr.bf16.mxu0 0
        %1173 = vmatpush2.bf16.msra.mxu0 0
        %1174 = vmatprep.subr.bf16.mxu0 0
        %1175 = vmatpush2.bf16.msra.mxu0 0
        %1176 = vmatprep.subr.bf16.mxu0 0
        %1177 = vmatpush2.bf16.msra.mxu0 0
        %1178 = vmatprep.subr.bf16.mxu0 0
        %1179 = vmatpush2.bf16.msra.mxu0 0
        %1180 = vmatprep.subr.bf16.mxu0 0
        %1181 = vmatpush2.bf16.msra.mxu0 0
        %1182 = vmatprep.subr.bf16.mxu0 0
        %1183 = vmatpush2.bf16.msra.mxu0 0
        %1184 = vmatprep.mubr.bf16.mxu0 0
        %1185 = vmatmul.mubr.bf16.gmra.mxu0 %v1144
        %v1186 = vpop.f32.mrf.mxu0
        %v1187 = vadd.f32 0.0, %v1186
        %v1188 = vpop.f32.mrf.mxu0
        %v1189 = vadd.f32 0.0, %v1188
        %v1190 = vpop.f32.mrf.mxu0
        %v1191 = vpop.f32.mrf.mxu0
        %1192 = vdwg.mxu0
        %v1193 = vld [vmem:[%s6] sm:$0xff]
        %1195 = vset.pattern.permute.xlu0 0
        %1196 = vperm.xlu0 %1195, %v1193
        %v1197 = vpop.permute.xlu0 %1196
        %v1199 = vmul.f32 %v1187, %v1197
        %v1200 = vmul.f32 %v1189, %v1197
        %v1201 = vld [vmem:[%s7] sm:$0xff]
        %1203 = vset.pattern.permute.xlu0 0
        %1204 = vperm.xlu0 %1203, %v1201
        %v1205 = vpop.permute.xlu0 %1204
        %v1207 = vadd.f32 %v1199, %v1205
        %v1208 = vadd.f32 %v1200, %v1205
        %v1209 = vld [vmem:[%s8] sm:$0xf]
        %v1210 = vld [vmem:[%s384] sm:$0xff]
        %v1212 = vcombine.high %v1210, %v1210
        %v1214 = vpack.c.bf16 %v1210, %v1210
        %v1215 = vpack.c.bf16 %v1212, %v1212
        %vm1216 = vcmask 31744
        %v1218 = vsel %vm1216, %v1209, 0
        %vm1220 = vcmask 1041408
        %v1222 = vsel %vm1220, %v1214, 0
        %v1225 = vsel %vm1220, %v1215, 0
        %1227 = vmatprep.subr.bf16.mxu0 0
        %1228 = vmatpush1.bf16.msra.mxu0 0
        %1229 = vmatprep.subr.bf16.mxu0 0
        %1230 = vmatpush1.bf16.msra.mxu0 0
        %1231 = vmatprep.subr.bf16.mxu0 0
        %1232 = vmatpush1.bf16.msra.mxu0 0
        %1233 = vmatprep.subr.bf16.mxu0 0
        %1234 = vmatpush1.bf16.msra.mxu0 0
        %1235 = vmatprep.subr.bf16.mxu0 0
        %1236 = vmatpush1.bf16.msra.mxu0 0
        %1237 = vmatprep.subr.bf16.mxu0 0
        %1238 = vmatpush1.bf16.msra.mxu0 0
        %1239 = vmatprep.subr.bf16.mxu0 0
        %1240 = vmatpush1.bf16.msra.mxu0 0
        %1241 = vmatprep.subr.bf16.mxu0 %v1225
        %1242 = vmatpush1.bf16.msra.mxu0 %v1222
        %1243 = vmatprep.subr.bf16.mxu0 0
        %1244 = vmatpush2.bf16.msra.mxu0 0
        %1245 = vmatprep.subr.bf16.mxu0 0
        %1246 = vmatpush2.bf16.msra.mxu0 0
        %1247 = vmatprep.subr.bf16.mxu0 0
        %1248 = vmatpush2.bf16.msra.mxu0 0
        %1249 = vmatprep.subr.bf16.mxu0 0
        %1250 = vmatpush2.bf16.msra.mxu0 0
        %1251 = vmatprep.subr.bf16.mxu0 0
        %1252 = vmatpush2.bf16.msra.mxu0 0
        %1253 = vmatprep.subr.bf16.mxu0 0
        %1254 = vmatpush2.bf16.msra.mxu0 0
        %1255 = vmatprep.subr.bf16.mxu0 0
        %1256 = vmatpush2.bf16.msra.mxu0 0
        %1257 = vmatprep.subr.bf16.mxu0 0
        %1258 = vmatpush2.bf16.msra.mxu0 0
        %1259 = vmatprep.mubr.bf16.mxu0 0
        %1260 = vmatmul.mubr.bf16.gmra.mxu0 %v1218
        %v1261 = vpop.f32.mrf.mxu0
        %v1262 = vadd.f32 0.0, %v1261
        %v1263 = vpop.f32.mrf.mxu0
        %v1264 = vadd.f32 0.0, %v1263
        %v1265 = vpop.f32.mrf.mxu0
        %v1266 = vpop.f32.mrf.mxu0
        %1267 = vdwg.mxu0
        %v1268 = vld [vmem:[%s9] sm:$0xff]
        %1270 = vset.pattern.permute.xlu0 0
        %1271 = vperm.xlu0 %1270, %v1268
        %v1272 = vpop.permute.xlu0 %1271
        %v1274 = vmul.f32 %v1262, %v1272
        %v1275 = vmul.f32 %v1264, %v1272
        %v1276 = vld [vmem:[%s10] sm:$0xff]
        %1278 = vset.pattern.permute.xlu0 0
        %1279 = vperm.xlu0 %1278, %v1276
        %v1280 = vpop.permute.xlu0 %1279
        %v1282 = vadd.f32 %v1274, %v1280
        %v1283 = vadd.f32 %v1275, %v1280
        %v1284 = vadd.f32 %v1207, %v1282
        %v1285 = vadd.f32 %v1208, %v1283
        %v1286 = vmax.f32 %v1284, 0.0
        %v1287 = vmax.f32 %v1285, 0.0
        %1288 = vst [vmem:[%s379] sm:$0xff] %v1286
        %1289 = vst [vmem:[%s379 + $0x8] sm:$0xff] %v1287
        %s1290 = sand.u32 %s269, 1
        %s1291 = scalar_lea.sflag [#allocation5], %s1290
        %s1292 = sand.u32 %s269, 1
        %s1293 = smul.addr %s1292, 16
        %s1294 = scalar_lea.vmem [#allocation4], %s1293
        // Predicated region
        $region65: #{tpu_custom_call.1} parent=63 // pred_check
          %p1295 = pneg %p279
        $region66: #{tpu_custom_call.1} parent=63 // pred_check_branch
          %1297 = sbr.rel (%p1295) target = $region68
        $region67: #{tpu_custom_call.1} parent=63 // pred_region
          %s1299 = ssub.s32 256, 256
          %1300 = vsyncadd %s1291, %s1299
          %s1301 = smul.addr %s25, 2
          %s1302 = smul.addr %s1301, 128
          %s1303 = scalar_lea.hbm %s11, %s1302
          %s1305 = sshll.u32 %s1294, 4
          %s1306 = int_to_ptr.vmem [resolvable:$true] %s1305
          %1308 = dma.vmem_to_hbm [thread:$0]  %s1306, 256, %s1303, %s1291
        $region68: #{tpu_custom_call.1} parent=63 // pred_fallthru
          _
      $region64: #{tpu_custom_call.1} parent=5 // pred_fallthru
        _
      %p1309 = scmp.le.s32.totalorder 2, %s20
      // Predicated region
      $region69: #{tpu_custom_call.1} parent=5 // pred_check
        %p1310 = pneg %p1309
      $region70: #{tpu_custom_call.1} parent=5 // pred_check_branch
        %1312 = sbr.rel (%p1310) target = $region72
      $region71: #{tpu_custom_call.1} parent=5 // pred_region
        %s1313 = ssub.s32 %s20, 2
        // Predicated region
        $region73: #{tpu_custom_call.1} parent=71 // pred_check
          %p1314 = pneg %p285
        $region74: #{tpu_custom_call.1} parent=71 // pred_check_branch
          %1316 = sbr.rel (%p1314) target = $region76
        $region75: #{tpu_custom_call.1} parent=71 // pred_region
          %s1317 = sand.u32 %s270, 1
          %s1318 = scalar_lea.sflag [#allocation5], %s1317
          %s1319 = sand.u32 %s270, 1
          %s1320 = smul.addr %s1319, 16
          %s1321 = scalar_lea.vmem [#allocation4], %s1320
          %1322 = dma.done %s1318, 256
        $region76: #{tpu_custom_call.1} parent=71 // pred_fallthru
          _
      $region72: #{tpu_custom_call.1} parent=5 // pred_fallthru
        _
    $region6: #{tpu_custom_call.1} parent=1 // loop_footer
      %s24 = sadd.s32 1, %s20
    $region7: #{tpu_custom_call.1} parent=1 // loop_footer_branch
      %19 = sbr.rel target = $region3
    $region8: #{tpu_custom_call.1} parent=1 // loop_exit
      _
    %1323 = vsyncpa [#allocation5], 1
    %s1324 = scalar_lea.sflag [#allocation5], 1
    %1325 = vsyncpa %s1324, 1

// kernel: tpu_custom_call.1
$region0: #{tpu_custom_call.1}
  #allocation0 [shape = 'u32[]', space=smem, size = 0x4, offset = 0x4, fixed_abs, tag = 'smem constant byte address 0x4 - core index']
  #allocation1 [shape = 'u32[144,128]{1,0:T(1,128)}', space=vmem, size = 0x12000, scoped, tag = 'internal scratch']
  #allocation2 [shape = 'f32[8,290]{1,0:T(8,128)}', space=vmem, size = 0x3000, scoped, tag = 'scratch operand']
  #allocation3 [shape = 'bf16[72,256]{1,0:T(8,128)(2,1)}', space=vmem, size = 0x9000, scoped, tag = 'scratch operand']
  %s0 = inlined_call_operand.vmem [shape: f32[2,4,256], index: 0, kind: input, shape index: {}]
  %s1 = inlined_call_operand.vmem [shape: f32[2,256], index: 1, kind: input, shape index: {}]
  %s2 = inlined_call_operand.vmem [shape: bf16[8,72], index: 2, kind: input, shape index: {}]
  %s3 = inlined_call_operand.vmem [shape: f32[8,1], index: 3, kind: input, shape index: {}]
  %s4 = inlined_call_operand.vmem [shape: f32[8,1], index: 4, kind: input, shape index: {}]
  %s5 = inlined_call_operand.vmem [shape: bf16[8,72], index: 5, kind: input, shape index: {}]
  %s6 = inlined_call_operand.vmem [shape: f32[8,1], index: 6, kind: input, shape index: {}]
  %s7 = inlined_call_operand.vmem [shape: f32[8,1], index: 7, kind: input, shape index: {}]
  %s8 = inlined_call_operand.vmem [shape: bf16[8,4], index: 8, kind: input, shape index: {}]
  %s9 = inlined_call_operand.vmem [shape: f32[8,1], index: 9, kind: input, shape index: {}]
  %s10 = inlined_call_operand.vmem [shape: f32[8,1], index: 10, kind: input, shape index: {}]
  %s11 = inlined_call_operand.hbm [shape: f32[2,8,256], index: 11, kind: output, shape index: {}]
  %s12 = sld [smem:[#allocation0]]
  $region77: #{tpu_custom_call.1} parent=0
    _
  %s14 = ssub.s32 1, %s12
  %s15 = scalar_select 0, %s14, %s12
  $region1: #{tpu_custom_call.1} parent=0
    #allocation4 [shape = 'u8[16384]{0}', space=vmem, size = 0x4000, scoped, tag = 'output window, operand 0']
    #allocation5 [shape = 's32[2]{0}', space=sflag, size = 0x8, scoped, tag = 'scoped memory for tpu_custom_call.1']
    %16 = vsyncpa [#allocation5], 0
    %s17 = scalar_lea.sflag [#allocation5], 1
    %18 = vsyncpa %s17, 0
    loop: start=0, step=1, limit=4
    $region2: #{tpu_custom_call.1} parent=1 // loop_pre_header
      _
    $region3: #{tpu_custom_call.1} parent=1 // loop_header
      %s20 = sphi 0, %s24
      %p21 = scmp.ge.s32.totalorder %s20, 4
      %s30 = sphi 0, %s32
      %s33 = sphi 0, %s30
      %s34 = sphi 0, %s33
      %s50 = sphi 0, %s34
      %s54 = sphi 0, %s54
      %s56 = sphi 0, %s54
      %s57 = sphi 0, %s56
      %s71 = sphi 0, %s57
      %s75 = sphi 0, %s75
      %s77 = sphi 0, %s75
      %s78 = sphi 0, %s77
      %s92 = sphi 0, %s78
      %s96 = sphi 0, %s96
      %s98 = sphi 0, %s96
      %s99 = sphi 0, %s98
      %s113 = sphi 0, %s99
      %s117 = sphi 0, %s117
      %s119 = sphi 0, %s117
      %s120 = sphi 0, %s119
      %s134 = sphi 0, %s120
      %s138 = sphi 0, %s138
      %s140 = sphi 0, %s138
      %s141 = sphi 0, %s140
      %s155 = sphi 0, %s141
      %s159 = sphi 0, %s159
      %s161 = sphi 0, %s159
      %s162 = sphi 0, %s161
      %s176 = sphi 0, %s162
      %s180 = sphi 0, %s180
      %s182 = sphi 0, %s180
      %s183 = sphi 0, %s182
      %s197 = sphi 0, %s183
      %s201 = sphi 0, %s201
      %s203 = sphi 0, %s201
      %s204 = sphi 0, %s203
      %s218 = sphi 0, %s204
      %s222 = sphi 0, %s222
      %s224 = sphi 0, %s222
      %s225 = sphi 0, %s224
      %s239 = sphi 0, %s225
      %s243 = sphi 0, %s243
      %s245 = sphi 0, %s243
      %s246 = sphi 0, %s245
      %s260 = sphi 0, %s246
      %s266 = sphi 0, %s268
      %s269 = sphi 0, %s266
      %s270 = sphi 0, %s269
      %s286 = sphi 0, %s270
    $region4: #{tpu_custom_call.1} parent=1 // loop_header_branch
      %23 = sbr.rel (%p21) target = $region8
    $region5: #{tpu_custom_call.1} parent=1 // loop_body
      %s25 = ssub.s32 %s20, 1
      %s26 = ssub.s32 %s20, 2
      %s27 = sadd.s32 %s20, 1
      %s28 = ssub.s32 %s20, %s27
      %p29 = scmp.eq.s32.totalorder %s28, 0
      %s31 = sadd.s32 %s30, 1
      %s32 = scalar_select %p29, %s30, %s31
      %p35 = pneg %p29
      %p36 = scmp.eq.s32.totalorder %s20, 1
      %p37 = por %p35, %p36
      %p38 = scmp.ne.s32.totalorder %s30, %s33
      %p39 = scmp.eq.s32.totalorder %s20, 0
      %p40 = por %p38, %p39
      %p41 = scmp.ne.s32.totalorder %s30, %s33
      %p42 = scmp.eq.s32.totalorder %s25, 1
      %p43 = por %p41, %p42
      %p44 = scmp.ne.s32.totalorder %s33, %s34
      %p45 = scmp.eq.s32.totalorder %s25, 0
      %p46 = por %p44, %p45
      %p47 = scmp.ne.s32.totalorder %s33, %s34
      %p48 = scmp.eq.s32.totalorder %s26, 1
      %p49 = por %p47, %p48
      %p51 = scmp.ne.s32.totalorder %s34, %s50
      %p52 = scmp.eq.s32.totalorder %s26, 0
      %p53 = por %p51, %p52
      %s55 = sadd.s32 %s54, 1
      %p58 = scmp.eq.s32.totalorder %s20, 1
      %p59 = scmp.ne.s32.totalorder %s54, %s56
      %p60 = scmp.eq.s32.totalorder %s20, 0
      %p61 = por %p59, %p60
      %p62 = scmp.ne.s32.totalorder %s54, %s56
      %p63 = scmp.eq.s32.totalorder %s25, 1
      %p64 = por %p62, %p63
      %p65 = scmp.ne.s32.totalorder %s56, %s57
      %p66 = scmp.eq.s32.totalorder %s25, 0
      %p67 = por %p65, %p66
      %p68 = scmp.ne.s32.totalorder %s56, %s57
      %p69 = scmp.eq.s32.totalorder %s26, 1
      %p70 = por %p68, %p69
      %p72 = scmp.ne.s32.totalorder %s57, %s71
      %p73 = scmp.eq.s32.totalorder %s26, 0
      %p74 = por %p72, %p73
      %s76 = sadd.s32 %s75, 1
      %p79 = scmp.eq.s32.totalorder %s20, 1
      %p80 = scmp.ne.s32.totalorder %s75, %s77
      %p81 = scmp.eq.s32.totalorder %s20, 0
      %p82 = por %p80, %p81
      %p83 = scmp.ne.s32.totalorder %s75, %s77
      %p84 = scmp.eq.s32.totalorder %s25, 1
      %p85 = por %p83, %p84
      %p86 = scmp.ne.s32.totalorder %s77, %s78
      %p87 = scmp.eq.s32.totalorder %s25, 0
      %p88 = por %p86, %p87
      %p89 = scmp.ne.s32.totalorder %s77, %s78
      %p90 = scmp.eq.s32.totalorder %s26, 1
      %p91 = por %p89, %p90
      %p93 = scmp.ne.s32.totalorder %s78, %s92
      %p94 = scmp.eq.s32.totalorder %s26, 0
      %p95 = por %p93, %p94
      %s97 = sadd.s32 %s96, 1
      %p100 = scmp.eq.s32.totalorder %s20, 1
      %p101 = scmp.ne.s32.totalorder %s96, %s98
      %p102 = scmp.eq.s32.totalorder %s20, 0
      %p103 = por %p101, %p102
      %p104 = scmp.ne.s32.totalorder %s96, %s98
      %p105 = scmp.eq.s32.totalorder %s25, 1
      %p106 = por %p104, %p105
      %p107 = scmp.ne.s32.totalorder %s98, %s99
      %p108 = scmp.eq.s32.totalorder %s25, 0
      %p109 = por %p107, %p108
      %p110 = scmp.ne.s32.totalorder %s98, %s99
      %p111 = scmp.eq.s32.totalorder %s26, 1
      %p112 = por %p110, %p111
      %p114 = scmp.ne.s32.totalorder %s99, %s113
      %p115 = scmp.eq.s32.totalorder %s26, 0
      %p116 = por %p114, %p115
      %s118 = sadd.s32 %s117, 1
      %p121 = scmp.eq.s32.totalorder %s20, 1
      %p122 = scmp.ne.s32.totalorder %s117, %s119
      %p123 = scmp.eq.s32.totalorder %s20, 0
      %p124 = por %p122, %p123
      %p125 = scmp.ne.s32.totalorder %s117, %s119
      %p126 = scmp.eq.s32.totalorder %s25, 1
      %p127 = por %p125, %p126
      %p128 = scmp.ne.s32.totalorder %s119, %s120
      %p129 = scmp.eq.s32.totalorder %s25, 0
      %p130 = por %p128, %p129
      %p131 = scmp.ne.s32.totalorder %s119, %s120
      %p132 = scmp.eq.s32.totalorder %s26, 1
      %p133 = por %p131, %p132
      %p135 = scmp.ne.s32.totalorder %s120, %s134
      %p136 = scmp.eq.s32.totalorder %s26, 0
      %p137 = por %p135, %p136
      %s139 = sadd.s32 %s138, 1
      %p142 = scmp.eq.s32.totalorder %s20, 1
      %p143 = scmp.ne.s32.totalorder %s138, %s140
      %p144 = scmp.eq.s32.totalorder %s20, 0
      %p145 = por %p143, %p144
      %p146 = scmp.ne.s32.totalorder %s138, %s140
      %p147 = scmp.eq.s32.totalorder %s25, 1
      %p148 = por %p146, %p147
      %p149 = scmp.ne.s32.totalorder %s140, %s141
      %p150 = scmp.eq.s32.totalorder %s25, 0
      %p151 = por %p149, %p150
      %p152 = scmp.ne.s32.totalorder %s140, %s141
      %p153 = scmp.eq.s32.totalorder %s26, 1
      %p154 = por %p152, %p153
      %p156 = scmp.ne.s32.totalorder %s141, %s155
      %p157 = scmp.eq.s32.totalorder %s26, 0
      %p158 = por %p156, %p157
      %s160 = sadd.s32 %s159, 1
      %p163 = scmp.eq.s32.totalorder %s20, 1
      %p164 = scmp.ne.s32.totalorder %s159, %s161
      %p165 = scmp.eq.s32.totalorder %s20, 0
      %p166 = por %p164, %p165
      %p167 = scmp.ne.s32.totalorder %s159, %s161
      %p168 = scmp.eq.s32.totalorder %s25, 1
      %p169 = por %p167, %p168
      %p170 = scmp.ne.s32.totalorder %s161, %s162
      %p171 = scmp.eq.s32.totalorder %s25, 0
      %p172 = por %p170, %p171
      %p173 = scmp.ne.s32.totalorder %s161, %s162
      %p174 = scmp.eq.s32.totalorder %s26, 1
      %p175 = por %p173, %p174
      %p177 = scmp.ne.s32.totalorder %s162, %s176
      %p178 = scmp.eq.s32.totalorder %s26, 0
      %p179 = por %p177, %p178
      %s181 = sadd.s32 %s180, 1
      %p184 = scmp.eq.s32.totalorder %s20, 1
      %p185 = scmp.ne.s32.totalorder %s180, %s182
      %p186 = scmp.eq.s32.totalorder %s20, 0
      %p187 = por %p185, %p186
      %p188 = scmp.ne.s32.totalorder %s180, %s182
      %p189 = scmp.eq.s32.totalorder %s25, 1
      %p190 = por %p188, %p189
      %p191 = scmp.ne.s32.totalorder %s182, %s183
      %p192 = scmp.eq.s32.totalorder %s25, 0
      %p193 = por %p191, %p192
      %p194 = scmp.ne.s32.totalorder %s182, %s183
      %p195 = scmp.eq.s32.totalorder %s26, 1
      %p196 = por %p194, %p195
      %p198 = scmp.ne.s32.totalorder %s183, %s197
      %p199 = scmp.eq.s32.totalorder %s26, 0
      %p200 = por %p198, %p199
      %s202 = sadd.s32 %s201, 1
      %p205 = scmp.eq.s32.totalorder %s20, 1
      %p206 = scmp.ne.s32.totalorder %s201, %s203
      %p207 = scmp.eq.s32.totalorder %s20, 0
      %p208 = por %p206, %p207
      %p209 = scmp.ne.s32.totalorder %s201, %s203
      %p210 = scmp.eq.s32.totalorder %s25, 1
      %p211 = por %p209, %p210
      %p212 = scmp.ne.s32.totalorder %s203, %s204
      %p213 = scmp.eq.s32.totalorder %s25, 0
      %p214 = por %p212, %p213
      %p215 = scmp.ne.s32.totalorder %s203, %s204
      %p216 = scmp.eq.s32.totalorder %s26, 1
      %p217 = por %p215, %p216
      %p219 = scmp.ne.s32.totalorder %s204, %s218
      %p220 = scmp.eq.s32.totalorder %s26, 0
      %p221 = por %p219, %p220
      %s223 = sadd.s32 %s222, 1
      %p226 = scmp.eq.s32.totalorder %s20, 1
      %p227 = scmp.ne.s32.totalorder %s222, %s224
      %p228 = scmp.eq.s32.totalorder %s20, 0
      %p229 = por %p227, %p228
      %p230 = scmp.ne.s32.totalorder %s222, %s224
      %p231 = scmp.eq.s32.totalorder %s25, 1
      %p232 = por %p230, %p231
      %p233 = scmp.ne.s32.totalorder %s224, %s225
      %p234 = scmp.eq.s32.totalorder %s25, 0
      %p235 = por %p233, %p234
      %p236 = scmp.ne.s32.totalorder %s224, %s225
      %p237 = scmp.eq.s32.totalorder %s26, 1
      %p238 = por %p236, %p237
      %p240 = scmp.ne.s32.totalorder %s225, %s239
      %p241 = scmp.eq.s32.totalorder %s26, 0
      %p242 = por %p240, %p241
      %s244 = sadd.s32 %s243, 1
      %p247 = scmp.eq.s32.totalorder %s20, 1
      %p248 = scmp.ne.s32.totalorder %s243, %s245
      %p249 = scmp.eq.s32.totalorder %s20, 0
      %p250 = por %p248, %p249
      %p251 = scmp.ne.s32.totalorder %s243, %s245
      %p252 = scmp.eq.s32.totalorder %s25, 1
      %p253 = por %p251, %p252
      %p254 = scmp.ne.s32.totalorder %s245, %s246
      %p255 = scmp.eq.s32.totalorder %s25, 0
      %p256 = por %p254, %p255
      %p257 = scmp.ne.s32.totalorder %s245, %s246
      %p258 = scmp.eq.s32.totalorder %s26, 1
      %p259 = por %p257, %p258
      %p261 = scmp.ne.s32.totalorder %s246, %s260
      %p262 = scmp.eq.s32.totalorder %s26, 0
      %p263 = por %p261, %p262
      %s264 = ssub.s32 %s20, %s27
      %p265 = scmp.eq.s32.totalorder %s264, 0
      %s267 = sadd.s32 %s266, 1
      %s268 = scalar_select %p265, %s266, %s267
      %p271 = pneg %p265
      %p272 = scmp.eq.s32.totalorder %s20, 1
      %p273 = por %p271, %p272
      %p274 = scmp.ne.s32.totalorder %s266, %s269
      %p275 = scmp.eq.s32.totalorder %s20, 0
      %p276 = por %p274, %p275
      %p277 = scmp.ne.s32.totalorder %s266, %s269
      %p278 = scmp.eq.s32.totalorder %s25, 1
      %p279 = por %p277, %p278
      %p280 = scmp.ne.s32.totalorder %s269, %s270
      %p281 = scmp.eq.s32.totalorder %s25, 0
      %p282 = por %p280, %p281
      %p283 = scmp.ne.s32.totalorder %s269, %s270
      %p284 = scmp.eq.s32.totalorder %s26, 1
      %p285 = por %p283, %p284
      %p287 = scmp.ne.s32.totalorder %s270, %s286
      %p288 = scmp.eq.s32.totalorder %s26, 0
      %p289 = por %p287, %p288
      %p290 = scmp.le.s32.totalorder 1, %s20
      %p291 = scmp.lt.s32.totalorder %s20, 3
      %p292 = pnand %p290, %p291
      %p293 = pneg %p292
      // Predicated region
      $region9: #{tpu_custom_call.1} parent=5 // pred_check
        _
      $region10: #{tpu_custom_call.1} parent=5 // pred_check_branch
        %295 = sbr.rel (%p292) target = $region12
      $region11: #{tpu_custom_call.1} parent=5 // pred_region
        %s296 = ssub.s32 %s20, 1
        // Predicated region
        $region13: #{tpu_custom_call.1} parent=11 // pred_check
          %p297 = pneg %p67
        $region14: #{tpu_custom_call.1} parent=11 // pred_check_branch
          %299 = sbr.rel (%p297) target = $region16
        $region15: #{tpu_custom_call.1} parent=11 // pred_region
          _
        $region16: #{tpu_custom_call.1} parent=11 // pred_fallthru
          _
        // Predicated region
        $region17: #{tpu_custom_call.1} parent=11 // pred_check
          %p300 = pneg %p88
        $region18: #{tpu_custom_call.1} parent=11 // pred_check_branch
          %302 = sbr.rel (%p300) target = $region20
        $region19: #{tpu_custom_call.1} parent=11 // pred_region
          _
        $region20: #{tpu_custom_call.1} parent=11 // pred_fallthru
          _
        // Predicated region
        $region21: #{tpu_custom_call.1} parent=11 // pred_check
          %p303 = pneg %p109
        $region22: #{tpu_custom_call.1} parent=11 // pred_check_branch
          %305 = sbr.rel (%p303) target = $region24
        $region23: #{tpu_custom_call.1} parent=11 // pred_region
          _
        $region24: #{tpu_custom_call.1} parent=11 // pred_fallthru
          _
        // Predicated region
        $region25: #{tpu_custom_call.1} parent=11 // pred_check
          %p306 = pneg %p130
        $region26: #{tpu_custom_call.1} parent=11 // pred_check_branch
          %308 = sbr.rel (%p306) target = $region28
        $region27: #{tpu_custom_call.1} parent=11 // pred_region
          _
        $region28: #{tpu_custom_call.1} parent=11 // pred_fallthru
          _
        // Predicated region
        $region29: #{tpu_custom_call.1} parent=11 // pred_check
          %p309 = pneg %p151
        $region30: #{tpu_custom_call.1} parent=11 // pred_check_branch
          %311 = sbr.rel (%p309) target = $region32
        $region31: #{tpu_custom_call.1} parent=11 // pred_region
          _
        $region32: #{tpu_custom_call.1} parent=11 // pred_fallthru
          _
        // Predicated region
        $region33: #{tpu_custom_call.1} parent=11 // pred_check
          %p312 = pneg %p172
        $region34: #{tpu_custom_call.1} parent=11 // pred_check_branch
          %314 = sbr.rel (%p312) target = $region36
        $region35: #{tpu_custom_call.1} parent=11 // pred_region
          _
        $region36: #{tpu_custom_call.1} parent=11 // pred_fallthru
          _
        // Predicated region
        $region37: #{tpu_custom_call.1} parent=11 // pred_check
          %p315 = pneg %p193
        $region38: #{tpu_custom_call.1} parent=11 // pred_check_branch
          %317 = sbr.rel (%p315) target = $region40
        $region39: #{tpu_custom_call.1} parent=11 // pred_region
          _
        $region40: #{tpu_custom_call.1} parent=11 // pred_fallthru
          _
        // Predicated region
        $region41: #{tpu_custom_call.1} parent=11 // pred_check
          %p318 = pneg %p214
        $region42: #{tpu_custom_call.1} parent=11 // pred_check_branch
          %320 = sbr.rel (%p318) target = $region44
        $region43: #{tpu_custom_call.1} parent=11 // pred_region
          _
        $region44: #{tpu_custom_call.1} parent=11 // pred_fallthru
          _
        // Predicated region
        $region45: #{tpu_custom_call.1} parent=11 // pred_check
          %p321 = pneg %p235
        $region46: #{tpu_custom_call.1} parent=11 // pred_check_branch
          %323 = sbr.rel (%p321) target = $region48
        $region47: #{tpu_custom_call.1} parent=11 // pred_region
          _
        $region48: #{tpu_custom_call.1} parent=11 // pred_fallthru
          _
        // Predicated region
        $region49: #{tpu_custom_call.1} parent=11 // pred_check
          %p324 = pneg %p256
        $region50: #{tpu_custom_call.1} parent=11 // pred_check_branch
          %326 = sbr.rel (%p324) target = $region52
        $region51: #{tpu_custom_call.1} parent=11 // pred_region
          _
        $region52: #{tpu_custom_call.1} parent=11 // pred_fallthru
          _
      $region12: #{tpu_custom_call.1} parent=5 // pred_fallthru
        _
      %p327 = scmp.lt.s32.totalorder %s20, 2
      // Predicated region
      $region53: #{tpu_custom_call.1} parent=5 // pred_check
        %p328 = pneg %p327
      $region54: #{tpu_custom_call.1} parent=5 // pred_check_branch
        %330 = sbr.rel (%p328) target = $region56
      $region55: #{tpu_custom_call.1} parent=5 // pred_region
        // Predicated region
        $region57: #{tpu_custom_call.1} parent=55 // pred_check
          %p331 = pneg %p40
        $region58: #{tpu_custom_call.1} parent=55 // pred_check_branch
          %333 = sbr.rel (%p331) target = $region60
        $region59: #{tpu_custom_call.1} parent=55 // pred_region
          %p334 = scmp.lt.s32.totalorder %s20, 1
          %s335 = scalar_select %p334, %s20, 1
          %s336 = smul.addr %s335, 2
          %s337 = smul.addr %s336, 4
          %s338 = scalar_lea.vmem %s0, %s337
        $region60: #{tpu_custom_call.1} parent=55 // pred_fallthru
          _
      $region56: #{tpu_custom_call.1} parent=5 // pred_fallthru
        _
      %p339 = scmp.le.s32.totalorder 1, %s20
      %p340 = scmp.lt.s32.totalorder %s20, 3
      %p341 = pnand %p339, %p340
      %p342 = pneg %p341
      // Predicated region
      $region61: #{tpu_custom_call.1} parent=5 // pred_check
        _
      $region62: #{tpu_custom_call.1} parent=5 // pred_check_branch
        %344 = sbr.rel (%p341) target = $region64
      $region63: #{tpu_custom_call.1} parent=5 // pred_region
        %s345 = ssub.s32 %s20, 1
        %p346 = scmp.lt.s32.totalorder %s25, 1
        %s347 = scalar_select %p346, %s25, 1
        %s348 = smul.addr %s347, 2
        %s349 = smul.addr %s348, 4
        %s350 = scalar_lea.vmem %s0, %s349
        %p351 = pneg %p46
        %p352 = pneg %p43
        %p353 = pneg %p67
        %p354 = pneg %p64
        %p355 = pneg %p88
        %p356 = pneg %p85
        %p357 = pneg %p109
        %p358 = pneg %p106
        %p359 = pneg %p130
        %p360 = pneg %p127
        %p361 = pneg %p151
        %p362 = pneg %p148
        %p363 = pneg %p172
        %p364 = pneg %p169
        %p365 = pneg %p193
        %p366 = pneg %p190
        %p367 = pneg %p214
        %p368 = pneg %p211
        %p369 = pneg %p235
        %p370 = pneg %p232
        %p371 = pneg %p256
        %p372 = pneg %p253
        %p373 = pneg %p282
        %p374 = pneg %p279
        %s375 = sand.u32 %s269, 1
        %s376 = scalar_lea.sflag [#allocation5], %s375
        %s377 = sand.u32 %s269, 1
        %s378 = smul.addr %s377, 16
        %s379 = scalar_lea.vmem [#allocation4], %s378
        %p380 = scmp.lt.s32.totalorder %s25, 1
        %s381 = scalar_select %p380, %s25, 1
        %s382 = smul.addr %s381, 2
        %s383 = smul.addr %s382, 4
        %s384 = scalar_lea.vmem %s0, %s383
        %v386 = vld [vmem:[%s1] ss:$2 sm:$0x3]
        %s387 = scalar_lea.vmem %s1, 1
        %v388 = vld [vmem:[%s387] ss:$2 sm:$0x3]
        %vm389 = vcmask 138240
        %390 = vst.msk [vmem:[#allocation2] sm:$0xff] %vm389, 0.0
        %vm391 = vcmask 277640
        %392 = vst.msk [vmem:[#allocation2 + $0x10] sm:$0xff] %vm391, 0.0
        %v393 = vld [vmem:[%s384] sm:$0xff]
        %v395 = vcombine.high %v393, %v393
        %396 = vrot.lane.b32.xlu0 %v393, 17
        %v397 = vpop.permute.xlu0 %396
        %398 = vrot.lane.b32.xlu0 %v395, 17
        %v399 = vpop.permute.xlu0 %398
        %v400 = vsel %vm389, %v397, %v399
        %vm404 = vcmask 1043592
        %405 = vst.msk [vmem:[#allocation2] sm:$0xf] %vm404, %v397
        %406 = vst [vmem:[#allocation2 + $0x8] sm:$0xf] %v400
        %vm407 = vcmask 134144
        %408 = vst.msk [vmem:[#allocation2 + $0x10] sm:$0xf] %vm407, %v399
        %v409 = vld [vmem:[#allocation2] sm:$0xf]
        %v410 = vld [vmem:[#allocation2 + $0x8] sm:$0xf]
        %v412 = vlaneseq
        %v413 = vshrl.u32 %v412, 7
        %v414 = vsub.s32 0, %v413
        %v415 = vrot.slane %v386, %v414
        %v416 = vlaneseq
        %v417 = vshrl.u32 %v416, 7
        %v418 = vsub.s32 1, %v417
        %v419 = vrot.slane %v386, %v418
        %v422 = vmul.f32 %v409, %v415
        %v423 = vmul.f32 %v410, %v419
        %vm424 = vcmask 1043456
        %v425 = vsel %vm424, %v422, 0.0
        %v426 = vsel %vm424, %v423, 0.0
        %v427 = vpack.c.bf16 %v425, %v425
        %v428 = vpack.c.bf16 %v426, %v426
        %v431 = vunpack.c.l.b16 %v427
        %v432 = vunpack.c.l.b16 %v428
        %v433 = vpack.c.b16 %v432, %v431
        %435 = vst [vmem:[#allocation3] sm:$0xff] %v433
        %v436 = vld [vmem:[#allocation2] sm:$0xf]
        %v437 = vld [vmem:[#allocation2 + $0x8] sm:$0xf]
        %v438 = vld [vmem:[#allocation2 + $0x10] sm:$0xf]
        %v439 = vsel %vm424, %v436, 0.0
        %v440 = vsel %vm424, %v437, 0.0
        %v441 = vsel %vm424, %v438, 0.0
        %v442 = vpack.c.bf16 %v439, %v439
        %v443 = vpack.c.bf16 %v440, %v440
        %v444 = vpack.c.bf16 %v441, %v441
        %v448 = vunpack.c.l.b16 %v442
        %v449 = vunpack.c.l.b16 %v443
        %v450 = vunpack.c.l.b16 %v444
        %v451 = vpack.c.b16 %v449, %v448
        %v452 = vpack.c.b16 %v450, %v450
        %453 = vrot.lane.b32.xlu0 %v451, 127
        %v454 = vpop.permute.xlu0 %453
        %455 = vrot.lane.b32.xlu0 %v452, 127
        %v456 = vpop.permute.xlu0 %455
        %v457 = vrot.slane %v454, 4
        %v458 = vrot.slane %v456, 4
        %vm459 = vcmask 1043456
        %v460 = vsel %vm459, %v457, %v458
        %vm461 = vcmask 1039360
        %v462 = vsel %vm461, %v454, %v460
        %464 = vst [vmem:[#allocation3 + $0x8] sm:$0xff] %v462
        %v465 = vld [vmem:[#allocation2] sm:$0xf]
        %v466 = vld [vmem:[#allocation2 + $0x8] sm:$0xf]
        %v467 = vld [vmem:[#allocation2 + $0x10] sm:$0xf]
        %v469 = vlaneseq
        %v470 = vshrl.u32 %v469, 7
        %v471 = vsub.s32 0, %v470
        %v472 = vrot.slane %v388, %v471
        %v473 = vlaneseq
        %v474 = vshrl.u32 %v473, 7
        %v475 = vsub.s32 1, %v474
        %v476 = vrot.slane %v388, %v475
        %477 = vrot.lane.b32.xlu0 %v472, 2
        %v478 = vpop.permute.xlu0 %477
        %479 = vrot.lane.b32.xlu0 %v476, 2
        %v480 = vpop.permute.xlu0 %479
        %vm481 = vcmask 15360
        %v482 = vsel %vm481, %v478, %v480
        %v486 = vmul.f32 %v465, %v478
        %v487 = vmul.f32 %v466, %v482
        %v488 = vmul.f32 %v467, %v480
        %v489 = vsel %vm424, %v486, 0.0
        %v490 = vsel %vm424, %v487, 0.0
        %v491 = vsel %vm424, %v488, 0.0
        %v492 = vpack.c.bf16 %v489, %v489
        %v493 = vpack.c.bf16 %v490, %v490
        %v494 = vpack.c.bf16 %v491, %v491
        %v498 = vunpack.c.l.b16 %v492
        %v499 = vunpack.c.l.b16 %v493
        %v500 = vunpack.c.l.b16 %v494
        %v501 = vpack.c.b16 %v499, %v498
        %v502 = vpack.c.b16 %v500, %v500
        %503 = vrot.lane.b32.xlu0 %v501, 126
        %v504 = vpop.permute.xlu0 %503
        %505 = vrot.lane.b32.xlu0 %v502, 126
        %v506 = vpop.permute.xlu0 %505
        %v507 = vrot.slane %v504, 4
        %v508 = vrot.slane %v506, 4
        %v509 = vsel %vm459, %v507, %v508
        %vm510 = vcmask 1031168
        %v511 = vsel %vm510, %v504, %v509
        %513 = vst [vmem:[#allocation3 + $0x10] sm:$0xff] %v511
        %v514 = vld [vmem:[#allocation2] sm:$0xf]
        %v515 = vld [vmem:[#allocation2 + $0x8] sm:$0xf]
        %v516 = vld [vmem:[#allocation2 + $0x10] sm:$0xf]
        %517 = vrot.lane.b32.xlu0 %v415, 16
        %v518 = vpop.permute.xlu0 %517
        %519 = vrot.lane.b32.xlu0 %v419, 16
        %v520 = vpop.permute.xlu0 %519
        %vm521 = vcmask 130048
        %v522 = vsel %vm521, %v518, %v520
        %v526 = vmul.f32 %v514, %v518
        %v527 = vmul.f32 %v515, %v522
        %v528 = vmul.f32 %v516, %v520
        %v529 = vsel %vm424, %v526, 0.0
        %v530 = vsel %vm424, %v527, 0.0
        %v531 = vsel %vm424, %v528, 0.0
        %v532 = vpack.c.bf16 %v529, %v529
        %v533 = vpack.c.bf16 %v530, %v530
        %v534 = vpack.c.bf16 %v531, %v531
        %v538 = vunpack.c.l.b16 %v532
        %v539 = vunpack.c.l.b16 %v533
        %v540 = vunpack.c.l.b16 %v534
        %v541 = vpack.c.b16 %v539, %v538
        %v542 = vpack.c.b16 %v540, %v540
        %543 = vrot.lane.b32.xlu0 %v541, 112
        %v544 = vpop.permute.xlu0 %543
        %545 = vrot.lane.b32.xlu0 %v542, 112
        %v546 = vpop.permute.xlu0 %545
        %v547 = vrot.slane %v544, 4
        %v548 = vrot.slane %v546, 4
        %v549 = vsel %vm459, %v547, %v548
        %vm550 = vcmask 916480
        %v551 = vsel %vm550, %v544, %v549
        %553 = vst [vmem:[#allocation3 + $0x18] sm:$0xff] %v551
        %v554 = vld [vmem:[#allocation2] sm:$0xf]
        %v555 = vld [vmem:[#allocation2 + $0x8] sm:$0xf]
        %v556 = vld [vmem:[#allocation2 + $0x10] sm:$0xf]
        %v557 = vsel %vm424, %v554, 0.0
        %v558 = vsel %vm424, %v555, 0.0
        %v559 = vsel %vm424, %v556, 0.0
        %v560 = vpack.c.bf16 %v557, %v557
        %v561 = vpack.c.bf16 %v558, %v558
        %v562 = vpack.c.bf16 %v559, %v559
        %v566 = vunpack.c.l.b16 %v560
        %v567 = vunpack.c.l.b16 %v561
        %v568 = vunpack.c.l.b16 %v562
        %v569 = vpack.c.b16 %v567, %v566
        %v570 = vpack.c.b16 %v568, %v568
        %571 = vrot.lane.b32.xlu0 %v569, 111
        %v572 = vpop.permute.xlu0 %571
        %573 = vrot.lane.b32.xlu0 %v570, 111
        %v574 = vpop.permute.xlu0 %573
        %v575 = vrot.slane %v572, 4
        %v576 = vrot.slane %v574, 4
        %v577 = vsel %vm459, %v575, %v576
        %vm578 = vcmask 908288
        %v579 = vsel %vm578, %v572, %v577
        %581 = vst [vmem:[#allocation3 + $0x20] sm:$0xff] %v579
        %v582 = vld [vmem:[#allocation2] sm:$0xf]
        %v583 = vld [vmem:[#allocation2 + $0x8] sm:$0xf]
        %v584 = vld [vmem:[#allocation2 + $0x10] sm:$0xf]
        %585 = vrot.lane.b32.xlu0 %v472, 18
        %v586 = vpop.permute.xlu0 %585
        %587 = vrot.lane.b32.xlu0 %v476, 18
        %v588 = vpop.permute.xlu0 %587
        %vm589 = vcmask 146432
        %v590 = vsel %vm589, %v586, %v588
        %v594 = vmul.f32 %v582, %v586
        %v595 = vmul.f32 %v583, %v590
        %v596 = vmul.f32 %v584, %v588
        %v597 = vsel %vm424, %v594, 0.0
        %v598 = vsel %vm424, %v595, 0.0
        %v599 = vsel %vm424, %v596, 0.0
        %v600 = vpack.c.bf16 %v597, %v597
        %v601 = vpack.c.bf16 %v598, %v598
        %v602 = vpack.c.bf16 %v599, %v599
        %v606 = vunpack.c.l.b16 %v600
        %v607 = vunpack.c.l.b16 %v601
        %v608 = vunpack.c.l.b16 %v602
        %v609 = vpack.c.b16 %v607, %v606
        %v610 = vpack.c.b16 %v608, %v608
        %611 = vrot.lane.b32.xlu0 %v609, 110
        %v612 = vpop.permute.xlu0 %611
        %613 = vrot.lane.b32.xlu0 %v610, 110
        %v614 = vpop.permute.xlu0 %613
        %v615 = vrot.slane %v612, 4
        %v616 = vrot.slane %v614, 4
        %v617 = vsel %vm459, %v615, %v616
        %vm618 = vcmask 900096
        %v619 = vsel %vm618, %v612, %v617
        %621 = vst [vmem:[#allocation3 + $0x28] sm:$0xff] %v619
        %v622 = vld [vmem:[#allocation2] sm:$0xf]
        %v623 = vld [vmem:[#allocation2 + $0x8] sm:$0xf]
        %v624 = vld [vmem:[#allocation2 + $0x10] sm:$0xf]
        %625 = vrot.lane.b32.xlu0 %v415, 32
        %v626 = vpop.permute.xlu0 %625
        %627 = vrot.lane.b32.xlu0 %v419, 32
        %v628 = vpop.permute.xlu0 %627
        %vm629 = vcmask 261120
        %v630 = vsel %vm629, %v626, %v628
        %v634 = vmul.f32 %v622, %v626
        %v635 = vmul.f32 %v623, %v630
        %v636 = vmul.f32 %v624, %v628
        %v637 = vsel %vm424, %v634, 0.0
        %v638 = vsel %vm424, %v635, 0.0
        %v639 = vsel %vm424, %v636, 0.0
        %v640 = vpack.c.bf16 %v637, %v637
        %v641 = vpack.c.bf16 %v638, %v638
        %v642 = vpack.c.bf16 %v639, %v639
        %v646 = vunpack.c.l.b16 %v640
        %v647 = vunpack.c.l.b16 %v641
        %v648 = vunpack.c.l.b16 %v642
        %v649 = vpack.c.b16 %v647, %v646
        %v650 = vpack.c.b16 %v648, %v648
        %651 = vrot.lane.b32.xlu0 %v649, 96
        %v652 = vpop.permute.xlu0 %651
        %653 = vrot.lane.b32.xlu0 %v650, 96
        %v654 = vpop.permute.xlu0 %653
        %v655 = vrot.slane %v652, 4
        %v656 = vrot.slane %v654, 4
        %v657 = vsel %vm459, %v655, %v656
        %vm658 = vcmask 785408
        %v659 = vsel %vm658, %v652, %v657
        %661 = vst [vmem:[#allocation3 + $0x30] sm:$0xff] %v659
        %v662 = vld [vmem:[#allocation2] sm:$0xf]
        %v663 = vld [vmem:[#allocation2 + $0x8] sm:$0xf]
        %v664 = vld [vmem:[#allocation2 + $0x10] sm:$0xf]
        %v665 = vsel %vm424, %v662, 0.0
        %v666 = vsel %vm424, %v663, 0.0
        %v667 = vsel %vm424, %v664, 0.0
        %v668 = vpack.c.bf16 %v665, %v665
        %v669 = vpack.c.bf16 %v666, %v666
        %v670 = vpack.c.bf16 %v667, %v667
        %v674 = vunpack.c.l.b16 %v668
        %v675 = vunpack.c.l.b16 %v669
        %v676 = vunpack.c.l.b16 %v670
        %v677 = vpack.c.b16 %v675, %v674
        %v678 = vpack.c.b16 %v676, %v676
        %679 = vrot.lane.b32.xlu0 %v677, 95
        %v680 = vpop.permute.xlu0 %679
        %681 = vrot.lane.b32.xlu0 %v678, 95
        %v682 = vpop.permute.xlu0 %681
        %v683 = vrot.slane %v680, 4
        %v684 = vrot.slane %v682, 4
        %v685 = vsel %vm459, %v683, %v684
        %vm686 = vcmask 777216
        %v687 = vsel %vm686, %v680, %v685
        %689 = vst [vmem:[#allocation3 + $0x38] sm:$0xff] %v687
        %v690 = vld [vmem:[#allocation2] sm:$0xf]
        %v691 = vld [vmem:[#allocation2 + $0x8] sm:$0xf]
        %v692 = vld [vmem:[#allocation2 + $0x10] sm:$0xf]
        %693 = vrot.lane.b32.xlu0 %v472, 34
        %v694 = vpop.permute.xlu0 %693
        %695 = vrot.lane.b32.xlu0 %v476, 34
        %v696 = vpop.permute.xlu0 %695
        %vm697 = vcmask 277504
        %v698 = vsel %vm697, %v694, %v696
        %v702 = vmul.f32 %v690, %v694
        %v703 = vmul.f32 %v691, %v698
        %v704 = vmul.f32 %v692, %v696
        %v705 = vsel %vm424, %v702, 0.0
        %v706 = vsel %vm424, %v703, 0.0
        %v707 = vsel %vm424, %v704, 0.0
        %v708 = vpack.c.bf16 %v705, %v705
        %v709 = vpack.c.bf16 %v706, %v706
        %v710 = vpack.c.bf16 %v707, %v707
        %v714 = vunpack.c.l.b16 %v708
        %v715 = vunpack.c.l.b16 %v709
        %v716 = vunpack.c.l.b16 %v710
        %v717 = vpack.c.b16 %v715, %v714
        %v718 = vpack.c.b16 %v716, %v716
        %719 = vrot.lane.b32.xlu0 %v717, 94
        %v720 = vpop.permute.xlu0 %719
        %721 = vrot.lane.b32.xlu0 %v718, 94
        %v722 = vpop.permute.xlu0 %721
        %v723 = vrot.slane %v720, 4
        %v724 = vrot.slane %v722, 4
        %v725 = vsel %vm459, %v723, %v724
        %vm726 = vcmask 769024
        %v727 = vsel %vm726, %v720, %v725
        %729 = vst [vmem:[#allocation3 + $0x40] sm:$0xff] %v727
        %v730 = vld [vmem:[%s2] sm:$0xf]
        %v731 = vld [vmem:[#allocation3] sm:$0xff]
        %v732 = vld [vmem:[#allocation3 + $0x8] sm:$0xff]
        %v733 = vld [vmem:[#allocation3 + $0x10] sm:$0xff]
        %v734 = vld [vmem:[#allocation3 + $0x18] sm:$0xff]
        %v735 = vld [vmem:[#allocation3 + $0x20] sm:$0xff]
        %v736 = vld [vmem:[#allocation3 + $0x28] sm:$0xff]
        %v737 = vld [vmem:[#allocation3 + $0x30] sm:$0xff]
        %v738 = vld [vmem:[#allocation3 + $0x38] sm:$0xff]
        %v739 = vld [vmem:[#allocation3 + $0x40] sm:$0xff]
        %v749 = vunpack.c.l.b16 %v731
        %v750 = vunpack.c.h.b16 %v731
        %v751 = vunpack.c.l.b16 %v732
        %v752 = vunpack.c.h.b16 %v732
        %v753 = vunpack.c.l.b16 %v733
        %v754 = vunpack.c.h.b16 %v733
        %v755 = vunpack.c.l.b16 %v734
        %v756 = vunpack.c.h.b16 %v734
        %v757 = vunpack.c.l.b16 %v735
        %v758 = vunpack.c.h.b16 %v735
        %v759 = vunpack.c.l.b16 %v736
        %v760 = vunpack.c.h.b16 %v736
        %v761 = vunpack.c.l.b16 %v737
        %v762 = vunpack.c.h.b16 %v737
        %v763 = vunpack.c.l.b16 %v738
        %v764 = vunpack.c.h.b16 %v738
        %v765 = vunpack.c.l.b16 %v739
        %v766 = vunpack.c.h.b16 %v739
        %v767 = vpack.c.b16 %v751, %v749
        %v768 = vpack.c.b16 %v752, %v750
        %v769 = vpack.c.b16 %v755, %v753
        %v770 = vpack.c.b16 %v756, %v754
        %v771 = vpack.c.b16 %v759, %v757
        %v772 = vpack.c.b16 %v760, %v758
        %v773 = vpack.c.b16 %v763, %v761
        %v774 = vpack.c.b16 %v764, %v762
        %v775 = vpack.c.b16 %v765, %v765
        %v776 = vpack.c.b16 %v766, %v766
        %vm785 = vcmask 588800
        %v787 = vsel %vm785, %v730, 0
        %v790 = vsel %vm424, %v775, 0
        %v793 = vsel %vm424, %v776, 0
        %795 = vmatprep.subr.bf16.mxu0 0
        %796 = vmatpush1.bf16.msra.mxu0 0
        %797 = vmatprep.subr.bf16.mxu0 0
        %798 = vmatpush1.bf16.msra.mxu0 0
        %799 = vmatprep.subr.bf16.mxu0 0
        %800 = vmatpush1.bf16.msra.mxu0 0
        %801 = vmatprep.subr.bf16.mxu0 %v793
        %802 = vmatpush1.bf16.msra.mxu0 %v790
        %803 = vmatprep.subr.bf16.mxu0 %v774
        %804 = vmatpush1.bf16.msra.mxu0 %v773
        %805 = vmatprep.subr.bf16.mxu0 %v772
        %806 = vmatpush1.bf16.msra.mxu0 %v771
        %807 = vmatprep.subr.bf16.mxu0 %v770
        %808 = vmatpush1.bf16.msra.mxu0 %v769
        %809 = vmatprep.subr.bf16.mxu0 %v768
        %810 = vmatpush1.bf16.msra.mxu0 %v767
        %811 = vmatprep.subr.bf16.mxu0 0
        %812 = vmatpush2.bf16.msra.mxu0 0
        %813 = vmatprep.subr.bf16.mxu0 0
        %814 = vmatpush2.bf16.msra.mxu0 0
        %815 = vmatprep.subr.bf16.mxu0 0
        %816 = vmatpush2.bf16.msra.mxu0 0
        %817 = vmatprep.subr.bf16.mxu0 0
        %818 = vmatpush2.bf16.msra.mxu0 0
        %819 = vmatprep.subr.bf16.mxu0 0
        %820 = vmatpush2.bf16.msra.mxu0 0
        %821 = vmatprep.subr.bf16.mxu0 0
        %822 = vmatpush2.bf16.msra.mxu0 0
        %823 = vmatprep.subr.bf16.mxu0 0
        %824 = vmatpush2.bf16.msra.mxu0 0
        %825 = vmatprep.subr.bf16.mxu0 0
        %826 = vmatpush2.bf16.msra.mxu0 0
        %827 = vmatprep.mubr.bf16.mxu0 0
        %828 = vmatmul.mubr.bf16.gmra.mxu0 %v787
        %v829 = vpop.f32.mrf.mxu0
        %v830 = vadd.f32 0.0, %v829
        %v831 = vpop.f32.mrf.mxu0
        %v832 = vadd.f32 0.0, %v831
        %v833 = vpop.f32.mrf.mxu0
        %v834 = vpop.f32.mrf.mxu0
        %835 = vdwg.mxu0
        %v836 = vld [vmem:[%s3] sm:$0xff]
        %838 = vset.pattern.permute.xlu0 0
        %839 = vperm.xlu0 %838, %v836
        %v840 = vpop.permute.xlu0 %839
        %v842 = vmul.f32 %v830, %v840
        %v843 = vmul.f32 %v832, %v840
        %v844 = vld [vmem:[%s4] sm:$0xff]
        %846 = vset.pattern.permute.xlu0 0
        %847 = vperm.xlu0 %846, %v844
        %v848 = vpop.permute.xlu0 %847
        %v850 = vadd.f32 %v842, %v848
        %v851 = vadd.f32 %v843, %v848
        %v852 = vmax.f32 %v850, 0.0
        %v853 = vmax.f32 %v851, 0.0
        %856 = vrot.lane.b32.xlu0 %v852, 17
        %v857 = vpop.permute.xlu0 %856
        %858 = vrot.lane.b32.xlu0 %v853, 17
        %v859 = vpop.permute.xlu0 %858
        %v860 = vsel %vm389, %v857, %v859
        %vm864 = vcmask 1047688
        %865 = vst.msk [vmem:[#allocation2] sm:$0xff] %vm864, %v857
        %866 = vst [vmem:[#allocation2 + $0x8] sm:$0xff] %v860
        %867 = vst.msk [vmem:[#allocation2 + $0x10] sm:$0xff] %vm389, %v859
        %v868 = vld [vmem:[#allocation2] sm:$0xff]
        %v869 = vld [vmem:[#allocation2 + $0x8] sm:$0xff]
        %v870 = vmul.f32 %v868, %v415
        %v871 = vmul.f32 %v869, %v419
        %v872 = vpack.c.bf16 %v870, %v870
        %v873 = vpack.c.bf16 %v871, %v871
        %v876 = vunpack.c.l.b16 %v872
        %v877 = vunpack.c.l.b16 %v873
        %v878 = vpack.c.b16 %v877, %v876
        %880 = vst [vmem:[#allocation3] sm:$0xff] %v878
        %v881 = vld [vmem:[#allocation2] sm:$0xff]
        %v882 = vld [vmem:[#allocation2 + $0x8] sm:$0xff]
        %v883 = vld [vmem:[#allocation2 + $0x10] sm:$0xff]
        %v884 = vpack.c.bf16 %v881, %v881
        %v885 = vpack.c.bf16 %v882, %v882
        %v886 = vpack.c.bf16 %v883, %v883
        %v890 = vunpack.c.l.b16 %v884
        %v891 = vunpack.c.l.b16 %v885
        %v892 = vunpack.c.l.b16 %v886
        %v893 = vpack.c.b16 %v891, %v890
        %v894 = vpack.c.b16 %v892, %v892
        %895 = vrot.lane.b32.xlu0 %v893, 127
        %v896 = vpop.permute.xlu0 %895
        %897 = vrot.lane.b32.xlu0 %v894, 127
        %v898 = vpop.permute.xlu0 %897
        %v899 = vrot.slane %v896, 4
        %v900 = vrot.slane %v898, 4
        %v901 = vsel %vm459, %v899, %v900
        %v902 = vsel %vm461, %v896, %v901
        %904 = vst [vmem:[#allocation3 + $0x8] sm:$0xff] %v902
        %v905 = vld [vmem:[#allocation2] sm:$0xff]
        %v906 = vld [vmem:[#allocation2 + $0x8] sm:$0xff]
        %v907 = vld [vmem:[#allocation2 + $0x10] sm:$0xff]
        %v908 = vmul.f32 %v905, %v478
        %v909 = vmul.f32 %v906, %v482
        %v910 = vmul.f32 %v907, %v480
        %v911 = vpack.c.bf16 %v908, %v908
        %v912 = vpack.c.bf16 %v909, %v909
        %v913 = vpack.c.bf16 %v910, %v910
        %v917 = vunpack.c.l.b16 %v911
        %v918 = vunpack.c.l.b16 %v912
        %v919 = vunpack.c.l.b16 %v913
        %v920 = vpack.c.b16 %v918, %v917
        %v921 = vpack.c.b16 %v919, %v919
        %922 = vrot.lane.b32.xlu0 %v920, 126
        %v923 = vpop.permute.xlu0 %922
        %924 = vrot.lane.b32.xlu0 %v921, 126
        %v925 = vpop.permute.xlu0 %924
        %v926 = vrot.slane %v923, 4
        %v927 = vrot.slane %v925, 4
        %v928 = vsel %vm459, %v926, %v927
        %v929 = vsel %vm510, %v923, %v928
        %931 = vst [vmem:[#allocation3 + $0x10] sm:$0xff] %v929
        %v932 = vld [vmem:[#allocation2] sm:$0xff]
        %v933 = vld [vmem:[#allocation2 + $0x8] sm:$0xff]
        %v934 = vld [vmem:[#allocation2 + $0x10] sm:$0xff]
        %v935 = vmul.f32 %v932, %v518
        %v936 = vmul.f32 %v933, %v522
        %v937 = vmul.f32 %v934, %v520
        %v938 = vpack.c.bf16 %v935, %v935
        %v939 = vpack.c.bf16 %v936, %v936
        %v940 = vpack.c.bf16 %v937, %v937
        %v944 = vunpack.c.l.b16 %v938
        %v945 = vunpack.c.l.b16 %v939
        %v946 = vunpack.c.l.b16 %v940
        %v947 = vpack.c.b16 %v945, %v944
        %v948 = vpack.c.b16 %v946, %v946
        %949 = vrot.lane.b32.xlu0 %v947, 112
        %v950 = vpop.permute.xlu0 %949
        %951 = vrot.lane.b32.xlu0 %v948, 112
        %v952 = vpop.permute.xlu0 %951
        %v953 = vrot.slane %v950, 4
        %v954 = vrot.slane %v952, 4
        %v955 = vsel %vm459, %v953, %v954
        %v956 = vsel %vm550, %v950, %v955
        %958 = vst [vmem:[#allocation3 + $0x18] sm:$0xff] %v956
        %v959 = vld [vmem:[#allocation2] sm:$0xff]
        %v960 = vld [vmem:[#allocation2 + $0x8] sm:$0xff]
        %v961 = vld [vmem:[#allocation2 + $0x10] sm:$0xff]
        %v962 = vpack.c.bf16 %v959, %v959
        %v963 = vpack.c.bf16 %v960, %v960
        %v964 = vpack.c.bf16 %v961, %v961
        %v968 = vunpack.c.l.b16 %v962
        %v969 = vunpack.c.l.b16 %v963
        %v970 = vunpack.c.l.b16 %v964
        %v971 = vpack.c.b16 %v969, %v968
        %v972 = vpack.c.b16 %v970, %v970
        %973 = vrot.lane.b32.xlu0 %v971, 111
        %v974 = vpop.permute.xlu0 %973
        %975 = vrot.lane.b32.xlu0 %v972, 111
        %v976 = vpop.permute.xlu0 %975
        %v977 = vrot.slane %v974, 4
        %v978 = vrot.slane %v976, 4
        %v979 = vsel %vm459, %v977, %v978
        %v980 = vsel %vm578, %v974, %v979
        %982 = vst [vmem:[#allocation3 + $0x20] sm:$0xff] %v980
        %v983 = vld [vmem:[#allocation2] sm:$0xff]
        %v984 = vld [vmem:[#allocation2 + $0x8] sm:$0xff]
        %v985 = vld [vmem:[#allocation2 + $0x10] sm:$0xff]
        %v986 = vmul.f32 %v983, %v586
        %v987 = vmul.f32 %v984, %v590
        %v988 = vmul.f32 %v985, %v588
        %v989 = vpack.c.bf16 %v986, %v986
        %v990 = vpack.c.bf16 %v987, %v987
        %v991 = vpack.c.bf16 %v988, %v988
        %v995 = vunpack.c.l.b16 %v989
        %v996 = vunpack.c.l.b16 %v990
        %v997 = vunpack.c.l.b16 %v991
        %v998 = vpack.c.b16 %v996, %v995
        %v999 = vpack.c.b16 %v997, %v997
        %1000 = vrot.lane.b32.xlu0 %v998, 110
        %v1001 = vpop.permute.xlu0 %1000
        %1002 = vrot.lane.b32.xlu0 %v999, 110
        %v1003 = vpop.permute.xlu0 %1002
        %v1004 = vrot.slane %v1001, 4
        %v1005 = vrot.slane %v1003, 4
        %v1006 = vsel %vm459, %v1004, %v1005
        %v1007 = vsel %vm618, %v1001, %v1006
        %1009 = vst [vmem:[#allocation3 + $0x28] sm:$0xff] %v1007
        %v1010 = vld [vmem:[#allocation2] sm:$0xff]
        %v1011 = vld [vmem:[#allocation2 + $0x8] sm:$0xff]
        %v1012 = vld [vmem:[#allocation2 + $0x10] sm:$0xff]
        %v1013 = vmul.f32 %v1010, %v626
        %v1014 = vmul.f32 %v1011, %v630
        %v1015 = vmul.f32 %v1012, %v628
        %v1016 = vpack.c.bf16 %v1013, %v1013
        %v1017 = vpack.c.bf16 %v1014, %v1014
        %v1018 = vpack.c.bf16 %v1015, %v1015
        %v1022 = vunpack.c.l.b16 %v1016
        %v1023 = vunpack.c.l.b16 %v1017
        %v1024 = vunpack.c.l.b16 %v1018
        %v1025 = vpack.c.b16 %v1023, %v1022
        %v1026 = vpack.c.b16 %v1024, %v1024
        %1027 = vrot.lane.b32.xlu0 %v1025, 96
        %v1028 = vpop.permute.xlu0 %1027
        %1029 = vrot.lane.b32.xlu0 %v1026, 96
        %v1030 = vpop.permute.xlu0 %1029
        %v1031 = vrot.slane %v1028, 4
        %v1032 = vrot.slane %v1030, 4
        %v1033 = vsel %vm459, %v1031, %v1032
        %v1034 = vsel %vm658, %v1028, %v1033
        %1036 = vst [vmem:[#allocation3 + $0x30] sm:$0xff] %v1034
        %v1037 = vld [vmem:[#allocation2] sm:$0xff]
        %v1038 = vld [vmem:[#allocation2 + $0x8] sm:$0xff]
        %v1039 = vld [vmem:[#allocation2 + $0x10] sm:$0xff]
        %v1040 = vpack.c.bf16 %v1037, %v1037
        %v1041 = vpack.c.bf16 %v1038, %v1038
        %v1042 = vpack.c.bf16 %v1039, %v1039
        %v1046 = vunpack.c.l.b16 %v1040
        %v1047 = vunpack.c.l.b16 %v1041
        %v1048 = vunpack.c.l.b16 %v1042
        %v1049 = vpack.c.b16 %v1047, %v1046
        %v1050 = vpack.c.b16 %v1048, %v1048
        %1051 = vrot.lane.b32.xlu0 %v1049, 95
        %v1052 = vpop.permute.xlu0 %1051
        %1053 = vrot.lane.b32.xlu0 %v1050, 95
        %v1054 = vpop.permute.xlu0 %1053
        %v1055 = vrot.slane %v1052, 4
        %v1056 = vrot.slane %v1054, 4
        %v1057 = vsel %vm459, %v1055, %v1056
        %v1058 = vsel %vm686, %v1052, %v1057
        %1060 = vst [vmem:[#allocation3 + $0x38] sm:$0xff] %v1058
        %v1061 = vld [vmem:[#allocation2] sm:$0xff]
        %v1062 = vld [vmem:[#allocation2 + $0x8] sm:$0xff]
        %v1063 = vld [vmem:[#allocation2 + $0x10] sm:$0xff]
        %v1064 = vmul.f32 %v1061, %v694
        %v1065 = vmul.f32 %v1062, %v698
        %v1066 = vmul.f32 %v1063, %v696
        %v1067 = vpack.c.bf16 %v1064, %v1064
        %v1068 = vpack.c.bf16 %v1065, %v1065
        %v1069 = vpack.c.bf16 %v1066, %v1066
        %v1073 = vunpack.c.l.b16 %v1067
        %v1074 = vunpack.c.l.b16 %v1068
        %v1075 = vunpack.c.l.b16 %v1069
        %v1076 = vpack.c.b16 %v1074, %v1073
        %v1077 = vpack.c.b16 %v1075, %v1075
        %1078 = vrot.lane.b32.xlu0 %v1076, 94
        %v1079 = vpop.permute.xlu0 %1078
        %1080 = vrot.lane.b32.xlu0 %v1077, 94
        %v1081 = vpop.permute.xlu0 %1080
        %v1082 = vrot.slane %v1079, 4
        %v1083 = vrot.slane %v1081, 4
        %v1084 = vsel %vm459, %v1082, %v1083
        %v1085 = vsel %vm726, %v1079, %v1084
        %1087 = vst [vmem:[#allocation3 + $0x40] sm:$0xff] %v1085
        %v1088 = vld [vmem:[%s5] sm:$0xf]
        %v1089 = vld [vmem:[#allocation3] sm:$0xff]
        %v1090 = vld [vmem:[#allocation3 + $0x8] sm:$0xff]
        %v1091 = vld [vmem:[#allocation3 + $0x10] sm:$0xff]
        %v1092 = vld [vmem:[#allocation3 + $0x18] sm:$0xff]
        %v1093 = vld [vmem:[#allocation3 + $0x20] sm:$0xff]
        %v1094 = vld [vmem:[#allocation3 + $0x28] sm:$0xff]
        %v1095 = vld [vmem:[#allocation3 + $0x30] sm:$0xff]
        %v1096 = vld [vmem:[#allocation3 + $0x38] sm:$0xff]
        %v1097 = vld [vmem:[#allocation3 + $0x40] sm:$0xff]
        %v1107 = vunpack.c.l.b16 %v1089
        %v1108 = vunpack.c.h.b16 %v1089
        %v1109 = vunpack.c.l.b16 %v1090
        %v1110 = vunpack.c.h.b16 %v1090
        %v1111 = vunpack.c.l.b16 %v1091
        %v1112 = vunpack.c.h.b16 %v1091
        %v1113 = vunpack.c.l.b16 %v1092
        %v1114 = vunpack.c.h.b16 %v1092
        %v1115 = vunpack.c.l.b16 %v1093
        %v1116 = vunpack.c.h.b16 %v1093
        %v1117 = vunpack.c.l.b16 %v1094
        %v1118 = vunpack.c.h.b16 %v1094
        %v1119 = vunpack.c.l.b16 %v1095
        %v1120 = vunpack.c.h.b16 %v1095
        %v1121 = vunpack.c.l.b16 %v1096
        %v1122 = vunpack.c.h.b16 %v1096
        %v1123 = vunpack.c.l.b16 %v1097
        %v1124 = vunpack.c.h.b16 %v1097
        %v1125 = vpack.c.b16 %v1109, %v1107
        %v1126 = vpack.c.b16 %v1110, %v1108
        %v1127 = vpack.c.b16 %v1113, %v1111
        %v1128 = vpack.c.b16 %v1114, %v1112
        %v1129 = vpack.c.b16 %v1117, %v1115
        %v1130 = vpack.c.b16 %v1118, %v1116
        %v1131 = vpack.c.b16 %v1121, %v1119
        %v1132 = vpack.c.b16 %v1122, %v1120
        %v1133 = vpack.c.b16 %v1123, %v1123
        %v1134 = vpack.c.b16 %v1124, %v1124
        %v1144 = vsel %vm785, %v1088, 0
        %v1147 = vsel %vm424, %v1133, 0
        %v1150 = vsel %vm424, %v1134, 0
        %1152 = vmatprep.subr.bf16.mxu0 0
        %1153 = vmatpush1.bf16.msra.mxu0 0
        %1154 = vmatprep.subr.bf16.mxu0 0
        %1155 = vmatpush1.bf16.msra.mxu0 0
        %1156 = vmatprep.subr.bf16.mxu0 0
        %1157 = vmatpush1.bf16.msra.mxu0 0
        %1158 = vmatprep.subr.bf16.mxu0 %v1150
        %1159 = vmatpush1.bf16.msra.mxu0 %v1147
        %1160 = vmatprep.subr.bf16.mxu0 %v1132
        %1161 = vmatpush1.bf16.msra.mxu0 %v1131
        %1162 = vmatprep.subr.bf16.mxu0 %v1130
        %1163 = vmatpush1.bf16.msra.mxu0 %v1129
        %1164 = vmatprep.subr.bf16.mxu0 %v1128
        %1165 = vmatpush1.bf16.msra.mxu0 %v1127
        %1166 = vmatprep.subr.bf16.mxu0 %v1126
        %1167 = vmatpush1.bf16.msra.mxu0 %v1125
        %1168 = vmatprep.subr.bf16.mxu0 0
        %1169 = vmatpush2.bf16.msra.mxu0 0
        %1170 = vmatprep.subr.bf16.mxu0 0
        %1171 = vmatpush2.bf16.msra.mxu0 0
        %1172 = vmatprep.subr.bf16.mxu0 0
        %1173 = vmatpush2.bf16.msra.mxu0 0
        %1174 = vmatprep.subr.bf16.mxu0 0
        %1175 = vmatpush2.bf16.msra.mxu0 0
        %1176 = vmatprep.subr.bf16.mxu0 0
        %1177 = vmatpush2.bf16.msra.mxu0 0
        %1178 = vmatprep.subr.bf16.mxu0 0
        %1179 = vmatpush2.bf16.msra.mxu0 0
        %1180 = vmatprep.subr.bf16.mxu0 0
        %1181 = vmatpush2.bf16.msra.mxu0 0
        %1182 = vmatprep.subr.bf16.mxu0 0
        %1183 = vmatpush2.bf16.msra.mxu0 0
        %1184 = vmatprep.mubr.bf16.mxu0 0
        %1185 = vmatmul.mubr.bf16.gmra.mxu0 %v1144
        %v1186 = vpop.f32.mrf.mxu0
        %v1187 = vadd.f32 0.0, %v1186
        %v1188 = vpop.f32.mrf.mxu0
        %v1189 = vadd.f32 0.0, %v1188
        %v1190 = vpop.f32.mrf.mxu0
        %v1191 = vpop.f32.mrf.mxu0
        %1192 = vdwg.mxu0
        %v1193 = vld [vmem:[%s6] sm:$0xff]
        %1195 = vset.pattern.permute.xlu0 0
        %1196 = vperm.xlu0 %1195, %v1193
        %v1197 = vpop.permute.xlu0 %1196
        %v1199 = vmul.f32 %v1187, %v1197
        %v1200 = vmul.f32 %v1189, %v1197
        %v1201 = vld [vmem:[%s7] sm:$0xff]
        %1203 = vset.pattern.permute.xlu0 0
        %1204 = vperm.xlu0 %1203, %v1201
        %v1205 = vpop.permute.xlu0 %1204
        %v1207 = vadd.f32 %v1199, %v1205
        %v1208 = vadd.f32 %v1200, %v1205
        %v1209 = vld [vmem:[%s8] sm:$0xf]
        %v1210 = vld [vmem:[%s384] sm:$0xff]
        %v1212 = vcombine.high %v1210, %v1210
        %v1214 = vpack.c.bf16 %v1210, %v1210
        %v1215 = vpack.c.bf16 %v1212, %v1212
        %vm1216 = vcmask 31744
        %v1218 = vsel %vm1216, %v1209, 0
        %vm1220 = vcmask 1041408
        %v1222 = vsel %vm1220, %v1214, 0
        %v1225 = vsel %vm1220, %v1215, 0
        %1227 = vmatprep.subr.bf16.mxu0 0
        %1228 = vmatpush1.bf16.msra.mxu0 0
        %1229 = vmatprep.subr.bf16.mxu0 0
        %1230 = vmatpush1.bf16.msra.mxu0 0
        %1231 = vmatprep.subr.bf16.mxu0 0
        %1232 = vmatpush1.bf16.msra.mxu0 0
        %1233 = vmatprep.subr.bf16.mxu0 0
        %1234 = vmatpush1.bf16.msra.mxu0 0
        %1235 = vmatprep.subr.bf16.mxu0 0
        %1236 = vmatpush1.bf16.msra.mxu0 0
        %1237 = vmatprep.subr.bf16.mxu0 0
        %1238 = vmatpush1.bf16.msra.mxu0 0
        %1239 = vmatprep.subr.bf16.mxu0 0
        %1240 = vmatpush1.bf16.msra.mxu0 0
        %1241 = vmatprep.subr.bf16.mxu0 %v1225
        %1242 = vmatpush1.bf16.msra.mxu0 %v1222
        %1243 = vmatprep.subr.bf16.mxu0 0
        %1244 = vmatpush2.bf16.msra.mxu0 0
        %1245 = vmatprep.subr.bf16.mxu0 0
        %1246 = vmatpush2.bf16.msra.mxu0 0
        %1247 = vmatprep.subr.bf16.mxu0 0
        %1248 = vmatpush2.bf16.msra.mxu0 0
        %1249 = vmatprep.subr.bf16.mxu0 0
        %1250 = vmatpush2.bf16.msra.mxu0 0
        %1251 = vmatprep.subr.bf16.mxu0 0
        %1252 = vmatpush2.bf16.msra.mxu0 0
        %1253 = vmatprep.subr.bf16.mxu0 0
        %1254 = vmatpush2.bf16.msra.mxu0 0
        %1255 = vmatprep.subr.bf16.mxu0 0
        %1256 = vmatpush2.bf16.msra.mxu0 0
        %1257 = vmatprep.subr.bf16.mxu0 0
        %1258 = vmatpush2.bf16.msra.mxu0 0
        %1259 = vmatprep.mubr.bf16.mxu0 0
        %1260 = vmatmul.mubr.bf16.gmra.mxu0 %v1218
        %v1261 = vpop.f32.mrf.mxu0
        %v1262 = vadd.f32 0.0, %v1261
        %v1263 = vpop.f32.mrf.mxu0
        %v1264 = vadd.f32 0.0, %v1263
        %v1265 = vpop.f32.mrf.mxu0
        %v1266 = vpop.f32.mrf.mxu0
        %1267 = vdwg.mxu0
        %v1268 = vld [vmem:[%s9] sm:$0xff]
        %1270 = vset.pattern.permute.xlu0 0
        %1271 = vperm.xlu0 %1270, %v1268
        %v1272 = vpop.permute.xlu0 %1271
        %v1274 = vmul.f32 %v1262, %v1272
        %v1275 = vmul.f32 %v1264, %v1272
        %v1276 = vld [vmem:[%s10] sm:$0xff]
        %1278 = vset.pattern.permute.xlu0 0
        %1279 = vperm.xlu0 %1278, %v1276
        %v1280 = vpop.permute.xlu0 %1279
        %v1282 = vadd.f32 %v1274, %v1280
        %v1283 = vadd.f32 %v1275, %v1280
        %v1284 = vadd.f32 %v1207, %v1282
        %v1285 = vadd.f32 %v1208, %v1283
        %v1286 = vmax.f32 %v1284, 0.0
        %v1287 = vmax.f32 %v1285, 0.0
        %1288 = vst [vmem:[%s379] sm:$0xff] %v1286
        %1289 = vst [vmem:[%s379 + $0x8] sm:$0xff] %v1287
        %s1290 = sand.u32 %s269, 1
        %s1291 = scalar_lea.sflag [#allocation5], %s1290
        %s1292 = sand.u32 %s269, 1
        %s1293 = smul.addr %s1292, 16
        %s1294 = scalar_lea.vmem [#allocation4], %s1293
        // Predicated region
        $region65: #{tpu_custom_call.1} parent=63 // pred_check
          %p1295 = pneg %p279
        $region66: #{tpu_custom_call.1} parent=63 // pred_check_branch
          %1297 = sbr.rel (%p1295) target = $region68
        $region67: #{tpu_custom_call.1} parent=63 // pred_region
          %s1299 = ssub.s32 256, 256
          %1300 = vsyncadd %s1291, %s1299
          %s1301 = smul.addr %s25, 2
          %s1302 = smul.addr %s1301, 128
          %s1303 = scalar_lea.hbm %s11, %s1302
          %s1305 = sshll.u32 %s1294, 4
          %s1306 = int_to_ptr.vmem [resolvable:$true] %s1305
          %1308 = dma.vmem_to_hbm [thread:$0]  %s1306, 256, %s1303, %s1291
        $region68: #{tpu_custom_call.1} parent=63 // pred_fallthru
          _
      $region64: #{tpu_custom_call.1} parent=5 // pred_fallthru
        _
      %p1309 = scmp.le.s32.totalorder 2, %s20
      // Predicated region
      $region69: #{tpu_custom_call.1} parent=5 // pred_check
        %p1310 = pneg %p1309
      $region70: #{tpu_custom_call.1} parent=5 // pred_check_branch
        %1312 = sbr.rel (%p1310) target = $region72
      $region71: #{tpu_custom_call.1} parent=5 // pred_region
        %s1313 = ssub.s32 %s20, 2
        // Predicated region
        $region73: #{tpu_custom_call.1} parent=71 // pred_check
          %p1314 = pneg %p285
        $region74: #{tpu_custom_call.1} parent=71 // pred_check_branch
          %1316 = sbr.rel (%p1314) target = $region76
        $region75: #{tpu_custom_call.1} parent=71 // pred_region
          %s1317 = sand.u32 %s270, 1
          %s1318 = scalar_lea.sflag [#allocation5], %s1317
          %s1319 = sand.u32 %s270, 1
          %s1320 = smul.addr %s1319, 16
          %s1321 = scalar_lea.vmem [#allocation4], %s1320
          %1322 = dma.done %s1318, 256
        $region76: #{tpu_custom_call.1} parent=71 // pred_fallthru
          _
      $region72: #{tpu_custom_call.1} parent=5 // pred_fallthru
        _
    $region6: #{tpu_custom_call.1} parent=1 // loop_footer
      %s24 = sadd.s32 1, %s20
    $region7: #{tpu_custom_call.1} parent=1 // loop_footer_branch
      %19 = sbr.rel target = $region3
    $region8: #{tpu_custom_call.1} parent=1 // loop_exit
      _
    %1323 = vsyncpa [#allocation5], 1
    %s1324 = scalar_lea.sflag [#allocation5], 1
    %1325 = vsyncpa %s1324, 1

</llo_original>
